<compile_context>
chip_gen: v5e
topology: v5e:2x2
jax: 0.10.0
libtpu: 0.0.40
codegen_flags: <defaults>
</compile_context>

<pallas_src>
import jax
import jax.numpy as jnp
from jax import lax
from jax.experimental import pallas as pl
from jax.experimental.pallas import tpu as pltpu

BN_EPS = 1e-5
HIDDEN1 = 500
HIDDEN2 = 4000
TN = 2048          # column-tile width over the (padded) HIDDEN2 axis


def _round_up(n, m):
    return -(-n // m) * m


def _pad_to(a, shape):
    return jnp.pad(a, [(0, t - s) for s, t in zip(a.shape, shape)])


def _bn_relu(h, g, beta):
    """BatchNorm1d (training-mode batch stats, centered variance) + ReLU."""
    mean = jnp.mean(h, axis=0, keepdims=True)
    c = h - mean
    var = jnp.mean(c * c, axis=0, keepdims=True)
    y = c * (g * lax.rsqrt(var + BN_EPS)) + beta
    return jnp.maximum(y, 0.0)


def decoder_kernel(x_ref,
                   w1_ref, b1_ref, g1_ref, beta1_ref,
                   w2_ref, b2_ref, g2_ref, beta2_ref,
                   w3_ref, b3_ref,
                   o_ref,
                   h1_ref):
    j = pl.program_id(0)

    @pl.when(j == 0)
    def _():
        # Layer 1 (tiny): Linear -> BN -> ReLU; kept resident in VMEM as bf16
        # so the per-step layer-2 matmul consumes it directly on the MXU.
        h = jnp.dot(x_ref[...], w1_ref[...],
                    preferred_element_type=jnp.float32) + b1_ref[...]
        h1_ref[...] = _bn_relu(h, g1_ref[...], beta1_ref[...]).astype(jnp.bfloat16)
        # Output block is resident across the reduction grid: init it here.
        o_ref[...] = jnp.zeros_like(o_ref)

    # Layer 2 on this column tile of w2: bf16 x bf16 on the MXU, f32 accum.
    # BN1d stats are per-feature over the batch, so column tiles are
    # independent; BN math stays f32.
    h2 = jnp.dot(h1_ref[...], w2_ref[...],
                 preferred_element_type=jnp.float32) + b2_ref[...]
    h2 = _bn_relu(h2, g2_ref[...], beta2_ref[...])

    # Layer 3 partial product for the matching row tile of w3, accumulated
    # directly into the resident f32 output block.
    o_ref[...] += jnp.dot(h2.astype(jnp.bfloat16), w3_ref[...],
                          preferred_element_type=jnp.float32)

    @pl.when(j == pl.num_programs(0) - 1)
    def _():
        logits = o_ref[...] + b3_ref[...]
        o_ref[...] = 1.0 / (1.0 + jnp.exp(-logits))


def prepare_params(params):
    """One-time weight prep: zero-pad hidden dims to lane multiples and cast
    the two large weight matrices to bf16.  Hoisted out of the per-call path
    so it amortizes across forward calls."""
    in_features = params["w1"].shape[0]
    h1 = params["w1"].shape[1]
    h2 = params["w2"].shape[1]
    out_features = params["w3"].shape[1]

    h1p = _round_up(h1, 128)          # 500 -> 512
    h2p = _round_up(h2, TN)           # 4000 -> 4096

    return dict(
        in_features=in_features, out_features=out_features,
        h1p=h1p, h2p=h2p,
        w1=_pad_to(params["w1"], (in_features, h1p)),
        b1=_pad_to(params["b1"], (1, h1p)),
        g1=_pad_to(params["g1"], (1, h1p)),
        beta1=_pad_to(params["beta1"], (1, h1p)),
        w2=_pad_to(params["w2"], (h1p, h2p)).astype(jnp.bfloat16),
        b2=_pad_to(params["b2"], (1, h2p)),
        g2=_pad_to(params["g2"], (1, h2p)),
        beta2=_pad_to(params["beta2"], (1, h2p)),
        w3=_pad_to(params["w3"], (h2p, out_features)).astype(jnp.bfloat16),
        b3=params["b3"],
    )


def decoder_forward(x, prep):
    B = x.shape[0]
    in_features = prep["in_features"]
    out_features = prep["out_features"]
    h1p = prep["h1p"]
    h2p = prep["h2p"]
    n_steps = h2p // TN

    grid_spec = pltpu.PrefetchScalarGridSpec(
        num_scalar_prefetch=0,
        grid=(n_steps,),
        in_specs=[
            pl.BlockSpec((B, in_features), lambda j: (0, 0)),      # x
            pl.BlockSpec((in_features, h1p), lambda j: (0, 0)),    # w1
            pl.BlockSpec((1, h1p), lambda j: (0, 0)),              # b1
            pl.BlockSpec((1, h1p), lambda j: (0, 0)),              # g1
            pl.BlockSpec((1, h1p), lambda j: (0, 0)),              # beta1
            pl.BlockSpec((h1p, TN), lambda j: (0, j)),             # w2 col tile
            pl.BlockSpec((1, TN), lambda j: (0, j)),               # b2
            pl.BlockSpec((1, TN), lambda j: (0, j)),               # g2
            pl.BlockSpec((1, TN), lambda j: (0, j)),               # beta2
            pl.BlockSpec((TN, out_features), lambda j: (j, 0)),    # w3 row tile
            pl.BlockSpec((1, out_features), lambda j: (0, 0)),     # b3
        ],
        out_specs=pl.BlockSpec((B, out_features), lambda j: (0, 0)),
        scratch_shapes=[
            pltpu.VMEM((B, h1p), jnp.bfloat16),   # resident layer-1 acts (bf16)
        ],
    )

    return pl.pallas_call(
        decoder_kernel,
        out_shape=jax.ShapeDtypeStruct((B, out_features), jnp.float32),
        grid_spec=grid_spec,
        compiler_params=pltpu.CompilerParams(
            dimension_semantics=("arbitrary",),       # reduction axis
            vmem_limit_bytes=32 * 1024 * 1024,        # legal on v5e/v6e/v7x
        ),
    )(x, prep["w1"], prep["b1"], prep["g1"], prep["beta1"],
      prep["w2"], prep["b2"], prep["g2"], prep["beta2"],
      prep["w3"], prep["b3"])


def init_params(key, in_features, out_features):
    """Deterministic synthetic parameters (shapes match Decoder.__init__)."""
    ks = jax.random.split(key, 6)

    def lin(k, fan_in, fan_out):
        bound = 1.0 / jnp.sqrt(jnp.float32(fan_in))
        kw, kb = jax.random.split(k)
        w = jax.random.uniform(kw, (fan_in, fan_out), jnp.float32, -bound, bound)
        b = jax.random.uniform(kb, (1, fan_out), jnp.float32, -bound, bound)
        return w, b

    w1, b1 = lin(ks[0], in_features, HIDDEN1)
    w2, b2 = lin(ks[1], HIDDEN1, HIDDEN2)
    w3, b3 = lin(ks[2], HIDDEN2, out_features)

    g1 = 1.0 + 0.1 * jax.random.normal(ks[3], (1, HIDDEN1), jnp.float32)
    beta1 = 0.1 * jax.random.normal(ks[4], (1, HIDDEN1), jnp.float32)
    g2 = 1.0 + 0.1 * jax.random.normal(ks[5], (1, HIDDEN2), jnp.float32)
    beta2 = 0.05 * jnp.ones((1, HIDDEN2), jnp.float32)

    return dict(w1=w1, b1=b1, g1=g1, beta1=beta1,
                w2=w2, b2=b2, g2=g2, beta2=beta2,
                w3=w3, b3=b3)


def decoder_reference(x, p):
    def lbr(h, w, b, g, beta):
        h = h @ w + b
        m = jnp.mean(h, axis=0, keepdims=True)
        v = jnp.mean((h - m) ** 2, axis=0, keepdims=True)
        h = (h - m) / jnp.sqrt(v + BN_EPS) * g + beta
        return jnp.maximum(h, 0.0)

    h = lbr(x, p["w1"], p["b1"], p["g1"], p["beta1"])
    h = lbr(h, p["w2"], p["b2"], p["g2"], p["beta2"])
    return jax.nn.sigmoid(h @ p["w3"] + p["b3"])


if __name__ == "__main__":
    B = 8
    IN_FEATURES = 32
    OUT_FEATURES = 128

    key = jax.random.PRNGKey(0)
    kx, kp = jax.random.split(key)

    x = jax.random.normal(kx, (B, IN_FEATURES), jnp.float32)
    params = init_params(kp, IN_FEATURES, OUT_FEATURES)

    prep = prepare_params(params)          # one-time padding + bf16 cast
    out = decoder_forward(x, prep)
    out = jax.block_until_ready(out)

    ref = decoder_reference(x, params)
    assert out.shape == (B, OUT_FEATURES)
    assert jnp.max(jnp.abs(out - ref)) < 1e-2

    print("KERNEL_OK")
</pallas_src>

<mosaic_0001>
module attributes {stable_mosaic.version = 11 : i64} {
  func.func @decoder_kernel(%arg0: i32, %arg1: memref<8x32xf32, #tpu.memory_space<vmem>>, %arg2: memref<32x512xf32, #tpu.memory_space<vmem>>, %arg3: memref<1x512xf32, #tpu.memory_space<vmem>>, %arg4: memref<1x512xf32, #tpu.memory_space<vmem>>, %arg5: memref<1x512xf32, #tpu.memory_space<vmem>>, %arg6: memref<512x2048xbf16, #tpu.memory_space<vmem>>, %arg7: memref<1x2048xf32, #tpu.memory_space<vmem>>, %arg8: memref<1x2048xf32, #tpu.memory_space<vmem>>, %arg9: memref<1x2048xf32, #tpu.memory_space<vmem>>, %arg10: memref<2048x128xbf16, #tpu.memory_space<vmem>>, %arg11: memref<1x128xf32, #tpu.memory_space<vmem>>, %arg12: memref<8x128xf32, #tpu.memory_space<vmem>>, %arg13: memref<8x512xbf16, #tpu.memory_space<vmem>>) attributes {dimension_semantics = [#tpu.dimension_semantics<arbitrary>], iteration_bounds = array<i64: 2>, scalar_prefetch = 0 : i64, scratch_operands = 1 : i64, tpu.core_type = #tpu.core_type<tc>, window_params = [{pipeline_mode = #tpu.pipeline_mode<synchronous>, transform_indices = @transform_0, window_bounds = array<i64: 8, 32>}, {pipeline_mode = #tpu.pipeline_mode<synchronous>, transform_indices = @transform_1, window_bounds = array<i64: 32, 512>}, {pipeline_mode = #tpu.pipeline_mode<synchronous>, transform_indices = @transform_2, window_bounds = array<i64: 1, 512>}, {pipeline_mode = #tpu.pipeline_mode<synchronous>, transform_indices = @transform_3, window_bounds = array<i64: 1, 512>}, {pipeline_mode = #tpu.pipeline_mode<synchronous>, transform_indices = @transform_4, window_bounds = array<i64: 1, 512>}, {transform_indices = @transform_5, window_bounds = array<i64: 512, 2048>}, {transform_indices = @transform_6, window_bounds = array<i64: 1, 2048>}, {transform_indices = @transform_7, window_bounds = array<i64: 1, 2048>}, {transform_indices = @transform_8, window_bounds = array<i64: 1, 2048>}, {transform_indices = @transform_9, window_bounds = array<i64: 2048, 128>}, {pipeline_mode = #tpu.pipeline_mode<synchronous>, transform_indices = @transform_10, window_bounds = array<i64: 1, 128>}, {pipeline_mode = #tpu.pipeline_mode<synchronous>, transform_indices = @transform_11, window_bounds = array<i64: 8, 128>}]} {
    %c0_i32 = arith.constant 0 : i32
    %0 = arith.cmpi eq, %arg0, %c0_i32 : i32
    %1 = arith.extui %0 : i1 to i32
    %c0_i32_0 = arith.constant 0 : i32
    %2 = arith.cmpi ne, %1, %c0_i32_0 : i32
    scf.if %2 {
      %c0_24 = arith.constant 0 : index
      %c0_25 = arith.constant 0 : index
      %41 = vector.load %arg1[%c0_24, %c0_25] : memref<8x32xf32, #tpu.memory_space<vmem>>, vector<8x32xf32>
      %c0_26 = arith.constant 0 : index
      %c0_27 = arith.constant 0 : index
      %42 = vector.load %arg2[%c0_26, %c0_27] : memref<32x512xf32, #tpu.memory_space<vmem>>, vector<32x512xf32>
      %cst_28 = arith.constant dense<0.000000e+00> : vector<8x512xf32>
      %43 = tpu.matmul %41, %42, %cst_28 {dimension_numbers = #tpu.dot_dimension_numbers<[1], [0], [0], [1], [0, 0, 1, 1], [], []>} : vector<8x32xf32>, vector<32x512xf32>, vector<8x512xf32> -> vector<8x512xf32>
      %c0_29 = arith.constant 0 : index
      %c0_30 = arith.constant 0 : index
      %44 = vector.load %arg3[%c0_29, %c0_30] : memref<1x512xf32, #tpu.memory_space<vmem>>, vector<1x512xf32>
      %45 = vector.broadcast %44 : vector<1x512xf32> to vector<8x512xf32>
      %46 = arith.addf %43, %45 : vector<8x512xf32>
      %c0_31 = arith.constant 0 : index
      %c0_32 = arith.constant 0 : index
      %47 = vector.load %arg4[%c0_31, %c0_32] : memref<1x512xf32, #tpu.memory_space<vmem>>, vector<1x512xf32>
      %c0_33 = arith.constant 0 : index
      %c0_34 = arith.constant 0 : index
      %48 = vector.load %arg5[%c0_33, %c0_34] : memref<1x512xf32, #tpu.memory_space<vmem>>, vector<1x512xf32>
      %cst_35 = arith.constant dense<0.000000e+00> : vector<512xf32>
      %49 = vector.multi_reduction <add>, %46, %cst_35 [0] : vector<8x512xf32> to vector<512xf32>
      %50 = vector.shape_cast %49 : vector<512xf32> to vector<1x512xf32>
      %cst_36 = arith.constant 8.000000e+00 : f32
      %51 = vector.broadcast %cst_36 : f32 to vector<1x512xf32>
      %52 = arith.divf %50, %51 : vector<1x512xf32>
      %53 = vector.broadcast %52 : vector<1x512xf32> to vector<8x512xf32>
      %54 = arith.subf %46, %53 : vector<8x512xf32>
      %55 = arith.mulf %54, %54 : vector<8x512xf32>
      %cst_37 = arith.constant dense<0.000000e+00> : vector<512xf32>
      %56 = vector.multi_reduction <add>, %55, %cst_37 [0] : vector<8x512xf32> to vector<512xf32>
      %57 = vector.shape_cast %56 : vector<512xf32> to vector<1x512xf32>
      %cst_38 = arith.constant 8.000000e+00 : f32
      %58 = vector.broadcast %cst_38 : f32 to vector<1x512xf32>
      %59 = arith.divf %57, %58 : vector<1x512xf32>
      %cst_39 = arith.constant 9.99999974E-6 : f32
      %60 = vector.broadcast %cst_39 : f32 to vector<1x512xf32>
      %61 = arith.addf %59, %60 : vector<1x512xf32>
      %62 = math.rsqrt %61 : vector<1x512xf32>
      %63 = arith.mulf %47, %62 : vector<1x512xf32>
      %64 = vector.broadcast %63 : vector<1x512xf32> to vector<8x512xf32>
      %65 = arith.mulf %54, %64 : vector<8x512xf32>
      %66 = vector.broadcast %48 : vector<1x512xf32> to vector<8x512xf32>
      %67 = arith.addf %65, %66 : vector<8x512xf32>
      %cst_40 = arith.constant 0.000000e+00 : f32
      %68 = vector.broadcast %cst_40 : f32 to vector<8x512xf32>
      %69 = arith.maximumf %67, %68 : vector<8x512xf32>
      %70 = arith.truncf %69 : vector<8x512xf32> to vector<8x512xbf16>
      %c0_41 = arith.constant 0 : index
      %c0_42 = arith.constant 0 : index
      %71 = vector.load %arg13[%c0_41, %c0_42] : memref<8x512xbf16, #tpu.memory_space<vmem>>, vector<8x512xbf16>
      tpu.vector_store %arg13[%c0_41, %c0_42], %70 {strides = array<i32>} : memref<8x512xbf16, #tpu.memory_space<vmem>>, vector<8x512xbf16>,
      %cst_43 = arith.constant 0.000000e+00 : f32
      %72 = vector.broadcast %cst_43 : f32 to vector<8x128xf32>
      %c0_44 = arith.constant 0 : index
      %c0_45 = arith.constant 0 : index
      %73 = vector.load %arg12[%c0_44, %c0_45] : memref<8x128xf32, #tpu.memory_space<vmem>>, vector<8x128xf32>
      tpu.vector_store %arg12[%c0_44, %c0_45], %72 {strides = array<i32>} : memref<8x128xf32, #tpu.memory_space<vmem>>, vector<8x128xf32>,
    } else {
    }
    %c0 = arith.constant 0 : index
    %c0_1 = arith.constant 0 : index
    %3 = vector.load %arg13[%c0, %c0_1] : memref<8x512xbf16, #tpu.memory_space<vmem>>, vector<8x512xbf16>
    %c0_2 = arith.constant 0 : index
    %c0_3 = arith.constant 0 : index
    %4 = vector.load %arg6[%c0_2, %c0_3] : memref<512x2048xbf16, #tpu.memory_space<vmem>>, vector<512x2048xbf16>
    %cst = arith.constant dense<0.000000e+00> : vector<8x2048xf32>
    %5 = tpu.matmul %3, %4, %cst {dimension_numbers = #tpu.dot_dimension_numbers<[1], [0], [0], [1], [0, 0, 1, 1], [], []>} : vector<8x512xbf16>, vector<512x2048xbf16>, vector<8x2048xf32> -> vector<8x2048xf32>
    %c0_4 = arith.constant 0 : index
    %c0_5 = arith.constant 0 : index
    %6 = vector.load %arg7[%c0_4, %c0_5] : memref<1x2048xf32, #tpu.memory_space<vmem>>, vector<1x2048xf32>
    %7 = vector.broadcast %6 : vector<1x2048xf32> to vector<8x2048xf32>
    %8 = arith.addf %5, %7 : vector<8x2048xf32>
    %c0_6 = arith.constant 0 : index
    %c0_7 = arith.constant 0 : index
    %9 = vector.load %arg8[%c0_6, %c0_7] : memref<1x2048xf32, #tpu.memory_space<vmem>>, vector<1x2048xf32>
    %c0_8 = arith.constant 0 : index
    %c0_9 = arith.constant 0 : index
    %10 = vector.load %arg9[%c0_8, %c0_9] : memref<1x2048xf32, #tpu.memory_space<vmem>>, vector<1x2048xf32>
    %cst_10 = arith.constant dense<0.000000e+00> : vector<2048xf32>
    %11 = vector.multi_reduction <add>, %8, %cst_10 [0] : vector<8x2048xf32> to vector<2048xf32>
    %12 = vector.shape_cast %11 : vector<2048xf32> to vector<1x2048xf32>
    %cst_11 = arith.constant 8.000000e+00 : f32
    %13 = vector.broadcast %cst_11 : f32 to vector<1x2048xf32>
    %14 = arith.divf %12, %13 : vector<1x2048xf32>
    %15 = vector.broadcast %14 : vector<1x2048xf32> to vector<8x2048xf32>
    %16 = arith.subf %8, %15 : vector<8x2048xf32>
    %17 = arith.mulf %16, %16 : vector<8x2048xf32>
    %cst_12 = arith.constant dense<0.000000e+00> : vector<2048xf32>
    %18 = vector.multi_reduction <add>, %17, %cst_12 [0] : vector<8x2048xf32> to vector<2048xf32>
    %19 = vector.shape_cast %18 : vector<2048xf32> to vector<1x2048xf32>
    %cst_13 = arith.constant 8.000000e+00 : f32
    %20 = vector.broadcast %cst_13 : f32 to vector<1x2048xf32>
    %21 = arith.divf %19, %20 : vector<1x2048xf32>
    %cst_14 = arith.constant 9.99999974E-6 : f32
    %22 = vector.broadcast %cst_14 : f32 to vector<1x2048xf32>
    %23 = arith.addf %21, %22 : vector<1x2048xf32>
    %24 = math.rsqrt %23 : vector<1x2048xf32>
    %25 = arith.mulf %9, %24 : vector<1x2048xf32>
    %26 = vector.broadcast %25 : vector<1x2048xf32> to vector<8x2048xf32>
    %27 = arith.mulf %16, %26 : vector<8x2048xf32>
    %28 = vector.broadcast %10 : vector<1x2048xf32> to vector<8x2048xf32>
    %29 = arith.addf %27, %28 : vector<8x2048xf32>
    %cst_15 = arith.constant 0.000000e+00 : f32
    %30 = vector.broadcast %cst_15 : f32 to vector<8x2048xf32>
    %31 = arith.maximumf %29, %30 : vector<8x2048xf32>
    %c0_16 = arith.constant 0 : index
    %c0_17 = arith.constant 0 : index
    %32 = vector.load %arg12[%c0_16, %c0_17] : memref<8x128xf32, #tpu.memory_space<vmem>>, vector<8x128xf32>
    %33 = arith.truncf %31 : vector<8x2048xf32> to vector<8x2048xbf16>
    %c0_18 = arith.constant 0 : index
    %c0_19 = arith.constant 0 : index
    %34 = vector.load %arg10[%c0_18, %c0_19] : memref<2048x128xbf16, #tpu.memory_space<vmem>>, vector<2048x128xbf16>
    %cst_20 = arith.constant dense<0.000000e+00> : vector<8x128xf32>
    %35 = tpu.matmul %33, %34, %cst_20 {dimension_numbers = #tpu.dot_dimension_numbers<[1], [0], [0], [1], [0, 0, 1, 1], [], []>} : vector<8x2048xbf16>, vector<2048x128xbf16>, vector<8x128xf32> -> vector<8x128xf32>
    %36 = arith.addf %32, %35 : vector<8x128xf32>
    %c0_21 = arith.constant 0 : index
    %c0_22 = arith.constant 0 : index
    %37 = vector.load %arg12[%c0_21, %c0_22] : memref<8x128xf32, #tpu.memory_space<vmem>>, vector<8x128xf32>
    tpu.vector_store %arg12[%c0_21, %c0_22], %36 {strides = array<i32>} : memref<8x128xf32, #tpu.memory_space<vmem>>, vector<8x128xf32>,
    %c1_i32 = arith.constant 1 : i32
    %38 = arith.cmpi eq, %arg0, %c1_i32 : i32
    %39 = arith.extui %38 : i1 to i32
    %c0_i32_23 = arith.constant 0 : i32
    %40 = arith.cmpi ne, %39, %c0_i32_23 : i32
    scf.if %40 {
      %c0_24 = arith.constant 0 : index
      %c0_25 = arith.constant 0 : index
      %41 = vector.load %arg12[%c0_24, %c0_25] : memref<8x128xf32, #tpu.memory_space<vmem>>, vector<8x128xf32>
      %c0_26 = arith.constant 0 : index
      %c0_27 = arith.constant 0 : index
      %42 = vector.load %arg11[%c0_26, %c0_27] : memref<1x128xf32, #tpu.memory_space<vmem>>, vector<1x128xf32>
      %43 = vector.broadcast %42 : vector<1x128xf32> to vector<8x128xf32>
      %44 = arith.addf %41, %43 : vector<8x128xf32>
      %cst_28 = arith.constant 0.000000e+00 : f32
      %45 = vector.broadcast %cst_28 : f32 to vector<8x128xf32>
      %46 = arith.subf %45, %44 : vector<8x128xf32>
      %47 = math.exp %46 : vector<8x128xf32>
      %cst_29 = arith.constant 1.000000e+00 : f32
      %48 = vector.broadcast %cst_29 : f32 to vector<8x128xf32>
      %49 = arith.addf %48, %47 : vector<8x128xf32>
      %cst_30 = arith.constant 1.000000e+00 : f32
      %50 = vector.broadcast %cst_30 : f32 to vector<8x128xf32>
      %51 = arith.divf %50, %49 : vector<8x128xf32>
      %c0_31 = arith.constant 0 : index
      %c0_32 = arith.constant 0 : index
      %52 = vector.load %arg12[%c0_31, %c0_32] : memref<8x128xf32, #tpu.memory_space<vmem>>, vector<8x128xf32>
      tpu.vector_store %arg12[%c0_31, %c0_32], %51 {strides = array<i32>} : memref<8x128xf32, #tpu.memory_space<vmem>>, vector<8x128xf32>,
    } else {
    }
    return
  }
  func.func @transform_0(%arg0: i32) -> (i32, i32) {
    %c0_i32 = arith.constant 0 : i32
    %c0_i32_0 = arith.constant 0 : i32
    %c0_i32_1 = arith.constant 0 : i32
    return %c0_i32, %c0_i32_0 : i32, i32
  }
  func.func @transform_1(%arg0: i32) -> (i32, i32) {
    %c0_i32 = arith.constant 0 : i32
    %c0_i32_0 = arith.constant 0 : i32
    %c0_i32_1 = arith.constant 0 : i32
    return %c0_i32, %c0_i32_0 : i32, i32
  }
  func.func @transform_2(%arg0: i32) -> (i32, i32) {
    %c0_i32 = arith.constant 0 : i32
    %c0_i32_0 = arith.constant 0 : i32
    %c0_i32_1 = arith.constant 0 : i32
    return %c0_i32, %c0_i32_0 : i32, i32
  }
  func.func @transform_3(%arg0: i32) -> (i32, i32) {
    %c0_i32 = arith.constant 0 : i32
    %c0_i32_0 = arith.constant 0 : i32
    %c0_i32_1 = arith.constant 0 : i32
    return %c0_i32, %c0_i32_0 : i32, i32
  }
  func.func @transform_4(%arg0: i32) -> (i32, i32) {
    %c0_i32 = arith.constant 0 : i32
    %c0_i32_0 = arith.constant 0 : i32
    %c0_i32_1 = arith.constant 0 : i32
    return %c0_i32, %c0_i32_0 : i32, i32
  }
  func.func @transform_5(%arg0: i32) -> (i32, i32) {
    %c0_i32 = arith.constant 0 : i32
    %c0_i32_0 = arith.constant 0 : i32
    return %c0_i32, %arg0 : i32, i32
  }
  func.func @transform_6(%arg0: i32) -> (i32, i32) {
    %c0_i32 = arith.constant 0 : i32
    %c0_i32_0 = arith.constant 0 : i32
    return %c0_i32, %arg0 : i32, i32
  }
  func.func @transform_7(%arg0: i32) -> (i32, i32) {
    %c0_i32 = arith.constant 0 : i32
    %c0_i32_0 = arith.constant 0 : i32
    return %c0_i32, %arg0 : i32, i32
  }
  func.func @transform_8(%arg0: i32) -> (i32, i32) {
    %c0_i32 = arith.constant 0 : i32
    %c0_i32_0 = arith.constant 0 : i32
    return %c0_i32, %arg0 : i32, i32
  }
  func.func @transform_9(%arg0: i32) -> (i32, i32) {
    %c0_i32 = arith.constant 0 : i32
    %c0_i32_0 = arith.constant 0 : i32
    return %arg0, %c0_i32 : i32, i32
  }
  func.func @transform_10(%arg0: i32) -> (i32, i32) {
    %c0_i32 = arith.constant 0 : i32
    %c0_i32_0 = arith.constant 0 : i32
    %c0_i32_1 = arith.constant 0 : i32
    return %c0_i32, %c0_i32_0 : i32, i32
  }
  func.func @transform_11(%arg0: i32) -> (i32, i32) {
    %c0_i32 = arith.constant 0 : i32
    %c0_i32_0 = arith.constant 0 : i32
    %c0_i32_1 = arith.constant 0 : i32
    return %c0_i32, %c0_i32_0 : i32, i32
  }
}

</mosaic_0001>

<llo_original>
// kernel: tpu_custom_call.1
$region0: #{tpu_custom_call.1}
  #allocation0 [shape = 'u32[]', space=smem, size = 0x4, offset = 0x4, fixed_abs, tag = 'smem constant byte address 0x4 - core index']
  #allocation1 [shape = 'u32[72,128]{1,0:T(1,128)}', space=vmem, size = 0x9000, scoped, tag = 'internal scratch']
  #allocation2 [shape = 'bf16[8,512]{1,0:T(8,128)(2,1)}', space=vmem, size = 0x2000, scoped, tag = 'scratch operand']
  %s0 = inlined_call_operand.hbm [shape: f32[8,32], index: 0, kind: input, shape index: {}]
  %s1 = inlined_call_operand.hbm [shape: f32[32,512], index: 1, kind: input, shape index: {}]
  %s2 = inlined_call_operand.hbm [shape: f32[1,512], index: 2, kind: input, shape index: {}]
  %s3 = inlined_call_operand.hbm [shape: f32[1,512], index: 3, kind: input, shape index: {}]
  %s4 = inlined_call_operand.hbm [shape: f32[1,512], index: 4, kind: input, shape index: {}]
  %s5 = inlined_call_operand.hbm [shape: bf16[512,4096], index: 5, kind: input, shape index: {}]
  %s6 = inlined_call_operand.hbm [shape: f32[1,4096], index: 6, kind: input, shape index: {}]
  %s7 = inlined_call_operand.hbm [shape: f32[1,4096], index: 7, kind: input, shape index: {}]
  %s8 = inlined_call_operand.hbm [shape: f32[1,4096], index: 8, kind: input, shape index: {}]
  %s9 = inlined_call_operand.hbm [shape: bf16[4096,128], index: 9, kind: input, shape index: {}]
  %s10 = inlined_call_operand.hbm [shape: f32[1,128], index: 10, kind: input, shape index: {}]
  %s11 = inlined_call_operand.hbm [shape: f32[8,128], index: 11, kind: output, shape index: {}]
  %s12 = sld [smem:[#allocation0]]
  $region129: #{tpu_custom_call.1} parent=0
    _
  %s14 = ssub.s32 1, %s12
  %s15 = scalar_select 0, %s14, %s12
  $region1: #{tpu_custom_call.1} parent=0
    #allocation3 [shape = 'u8[4096]{0}', space=vmem, size = 0x1000, scoped, tag = 'input window, operand 0, single buffered']
    #allocation4 [shape = 's32[2]{0}', space=sflag, size = 0x8, scoped, tag = 'scoped memory for tpu_custom_call.1']
    #allocation5 [shape = 's32[2]{0}', space=sflag, size = 0x8, scoped, tag = 'scoped memory for tpu_custom_call.1']
    #allocation6 [shape = 'u8[65536]{0}', space=vmem, size = 0x10000, scoped, tag = 'input window, operand 1, single buffered']
    #allocation7 [shape = 's32[1]{0}', space=sflag, size = 0x4, scoped, tag = 'scoped memory for tpu_custom_call.1']
    #allocation8 [shape = 'u8[2048]{0}', space=vmem, size = 0x800, scoped, tag = 'input window, operand 2, single buffered']
    #allocation9 [shape = 'u8[2048]{0}', space=vmem, size = 0x800, scoped, tag = 'input window, operand 3, single buffered']
    #allocation10 [shape = 's32[1]{0}', space=sflag, size = 0x4, scoped, tag = 'scoped memory for tpu_custom_call.1']
    #allocation11 [shape = 'u8[2048]{0}', space=vmem, size = 0x800, scoped, tag = 'input window, operand 4, single buffered']
    #allocation12 [shape = 'u8[4194304]{0}', space=vmem, size = 0x400000, scoped, tag = 'input window, operand 5']
    #allocation13 [shape = 's32[2]{0}', space=sflag, size = 0x8, scoped, tag = 'scoped memory for tpu_custom_call.1']
    #allocation14 [shape = 'u8[16384]{0}', space=vmem, size = 0x4000, scoped, tag = 'input window, operand 6']
    #allocation15 [shape = 'u8[16384]{0}', space=vmem, size = 0x4000, scoped, tag = 'input window, operand 7']
    #allocation16 [shape = 's32[2]{0}', space=sflag, size = 0x8, scoped, tag = 'scoped memory for tpu_custom_call.1']
    #allocation17 [shape = 'u8[16384]{0}', space=vmem, size = 0x4000, scoped, tag = 'input window, operand 8']
    #allocation18 [shape = 'u8[1048576]{0}', space=vmem, size = 0x100000, scoped, tag = 'input window, operand 9']
    #allocation19 [shape = 's32[2]{0}', space=sflag, size = 0x8, scoped, tag = 'scoped memory for tpu_custom_call.1']
    #allocation20 [shape = 'u8[512]{0}', space=vmem, size = 0x400, scoped, tag = 'input window, operand 10, single buffered']
    #allocation21 [shape = 'u8[4096]{0}', space=vmem, size = 0x1000, scoped, tag = 'output window, operand 0, single buffered']
    %16 = vsyncpa [#allocation4], 0
    %17 = vsyncpa [#allocation7], 0
    %18 = vsyncpa [#allocation10], 0
    %19 = vsyncpa [#allocation13], 0
    %s20 = scalar_lea.sflag [#allocation13], 1
    %21 = vsyncpa %s20, 0
    %22 = vsyncpa [#allocation16], 0
    %s23 = scalar_lea.sflag [#allocation16], 1
    %24 = vsyncpa %s23, 0
    %25 = vsyncpa [#allocation19], 0
    %s26 = scalar_lea.sflag [#allocation19], 1
    %27 = vsyncpa %s26, 0
    %28 = vsyncpa [#allocation5], 0
    loop: start=0, step=1, limit=4
    $region2: #{tpu_custom_call.1} parent=1 // loop_pre_header
      _
    $region3: #{tpu_custom_call.1} parent=1 // loop_header
      %s30 = sphi 0, %s34
      %p31 = scmp.ge.s32.totalorder %s30, 4
      %s38 = sphi 0, %s38
      %s40 = sphi 0, %s38
      %s41 = sphi 0, %s40
      %s55 = sphi 0, %s41
      %s59 = sphi 0, %s59
      %s61 = sphi 0, %s59
      %s62 = sphi 0, %s61
      %s76 = sphi 0, %s62
      %s80 = sphi 0, %s80
      %s82 = sphi 0, %s80
      %s83 = sphi 0, %s82
      %s97 = sphi 0, %s83
      %s101 = sphi 0, %s101
      %s103 = sphi 0, %s101
      %s104 = sphi 0, %s103
      %s118 = sphi 0, %s104
      %s122 = sphi 0, %s122
      %s124 = sphi 0, %s122
      %s125 = sphi 0, %s124
      %s139 = sphi 0, %s125
      %s145 = sphi 0, %s147
      %s148 = sphi 0, %s145
      %s149 = sphi 0, %s148
      %s165 = sphi 0, %s149
      %s171 = sphi 0, %s173
      %s174 = sphi 0, %s171
      %s175 = sphi 0, %s174
      %s191 = sphi 0, %s175
      %s197 = sphi 0, %s199
      %s200 = sphi 0, %s197
      %s201 = sphi 0, %s200
      %s217 = sphi 0, %s201
      %s223 = sphi 0, %s225
      %s226 = sphi 0, %s223
      %s227 = sphi 0, %s226
      %s243 = sphi 0, %s227
      %s249 = sphi 0, %s251
      %s252 = sphi 0, %s249
      %s253 = sphi 0, %s252
      %s269 = sphi 0, %s253
      %s273 = sphi 0, %s273
      %s275 = sphi 0, %s273
      %s276 = sphi 0, %s275
      %s290 = sphi 0, %s276
      %s294 = sphi 0, %s294
      %s296 = sphi 0, %s294
      %s297 = sphi 0, %s296
      %s311 = sphi 0, %s297
    $region4: #{tpu_custom_call.1} parent=1 // loop_header_branch
      %33 = sbr.rel (%p31) target = $region8
    $region5: #{tpu_custom_call.1} parent=1 // loop_body
      %s35 = ssub.s32 %s30, 1
      %s36 = ssub.s32 %s30, 2
      %s37 = sadd.s32 %s30, 1
      %s39 = sadd.s32 %s38, 1
      %p42 = scmp.eq.s32.totalorder %s30, 1
      %p43 = scmp.ne.s32.totalorder %s38, %s40
      %p44 = scmp.eq.s32.totalorder %s30, 0
      %p45 = por %p43, %p44
      %p46 = scmp.ne.s32.totalorder %s38, %s40
      %p47 = scmp.eq.s32.totalorder %s35, 1
      %p48 = por %p46, %p47
      %p49 = scmp.ne.s32.totalorder %s40, %s41
      %p50 = scmp.eq.s32.totalorder %s35, 0
      %p51 = por %p49, %p50
      %p52 = scmp.ne.s32.totalorder %s40, %s41
      %p53 = scmp.eq.s32.totalorder %s36, 1
      %p54 = por %p52, %p53
      %p56 = scmp.ne.s32.totalorder %s41, %s55
      %p57 = scmp.eq.s32.totalorder %s36, 0
      %p58 = por %p56, %p57
      %s60 = sadd.s32 %s59, 1
      %p63 = scmp.eq.s32.totalorder %s30, 1
      %p64 = scmp.ne.s32.totalorder %s59, %s61
      %p65 = scmp.eq.s32.totalorder %s30, 0
      %p66 = por %p64, %p65
      %p67 = scmp.ne.s32.totalorder %s59, %s61
      %p68 = scmp.eq.s32.totalorder %s35, 1
      %p69 = por %p67, %p68
      %p70 = scmp.ne.s32.totalorder %s61, %s62
      %p71 = scmp.eq.s32.totalorder %s35, 0
      %p72 = por %p70, %p71
      %p73 = scmp.ne.s32.totalorder %s61, %s62
      %p74 = scmp.eq.s32.totalorder %s36, 1
      %p75 = por %p73, %p74
      %p77 = scmp.ne.s32.totalorder %s62, %s76
      %p78 = scmp.eq.s32.totalorder %s36, 0
      %p79 = por %p77, %p78
      %s81 = sadd.s32 %s80, 1
      %p84 = scmp.eq.s32.totalorder %s30, 1
      %p85 = scmp.ne.s32.totalorder %s80, %s82
      %p86 = scmp.eq.s32.totalorder %s30, 0
      %p87 = por %p85, %p86
      %p88 = scmp.ne.s32.totalorder %s80, %s82
      %p89 = scmp.eq.s32.totalorder %s35, 1
      %p90 = por %p88, %p89
      %p91 = scmp.ne.s32.totalorder %s82, %s83
      %p92 = scmp.eq.s32.totalorder %s35, 0
      %p93 = por %p91, %p92
      %p94 = scmp.ne.s32.totalorder %s82, %s83
      %p95 = scmp.eq.s32.totalorder %s36, 1
      %p96 = por %p94, %p95
      %p98 = scmp.ne.s32.totalorder %s83, %s97
      %p99 = scmp.eq.s32.totalorder %s36, 0
      %p100 = por %p98, %p99
      %s102 = sadd.s32 %s101, 1
      %p105 = scmp.eq.s32.totalorder %s30, 1
      %p106 = scmp.ne.s32.totalorder %s101, %s103
      %p107 = scmp.eq.s32.totalorder %s30, 0
      %p108 = por %p106, %p107
      %p109 = scmp.ne.s32.totalorder %s101, %s103
      %p110 = scmp.eq.s32.totalorder %s35, 1
      %p111 = por %p109, %p110
      %p112 = scmp.ne.s32.totalorder %s103, %s104
      %p113 = scmp.eq.s32.totalorder %s35, 0
      %p114 = por %p112, %p113
      %p115 = scmp.ne.s32.totalorder %s103, %s104
      %p116 = scmp.eq.s32.totalorder %s36, 1
      %p117 = por %p115, %p116
      %p119 = scmp.ne.s32.totalorder %s104, %s118
      %p120 = scmp.eq.s32.totalorder %s36, 0
      %p121 = por %p119, %p120
      %s123 = sadd.s32 %s122, 1
      %p126 = scmp.eq.s32.totalorder %s30, 1
      %p127 = scmp.ne.s32.totalorder %s122, %s124
      %p128 = scmp.eq.s32.totalorder %s30, 0
      %p129 = por %p127, %p128
      %p130 = scmp.ne.s32.totalorder %s122, %s124
      %p131 = scmp.eq.s32.totalorder %s35, 1
      %p132 = por %p130, %p131
      %p133 = scmp.ne.s32.totalorder %s124, %s125
      %p134 = scmp.eq.s32.totalorder %s35, 0
      %p135 = por %p133, %p134
      %p136 = scmp.ne.s32.totalorder %s124, %s125
      %p137 = scmp.eq.s32.totalorder %s36, 1
      %p138 = por %p136, %p137
      %p140 = scmp.ne.s32.totalorder %s125, %s139
      %p141 = scmp.eq.s32.totalorder %s36, 0
      %p142 = por %p140, %p141
      %s143 = ssub.s32 %s30, %s37
      %p144 = scmp.eq.s32.totalorder %s143, 0
      %s146 = sadd.s32 %s145, 1
      %s147 = scalar_select %p144, %s145, %s146
      %p150 = pneg %p144
      %p151 = scmp.eq.s32.totalorder %s30, 1
      %p152 = por %p150, %p151
      %p153 = scmp.ne.s32.totalorder %s145, %s148
      %p154 = scmp.eq.s32.totalorder %s30, 0
      %p155 = por %p153, %p154
      %p156 = scmp.ne.s32.totalorder %s145, %s148
      %p157 = scmp.eq.s32.totalorder %s35, 1
      %p158 = por %p156, %p157
      %p159 = scmp.ne.s32.totalorder %s148, %s149
      %p160 = scmp.eq.s32.totalorder %s35, 0
      %p161 = por %p159, %p160
      %p162 = scmp.ne.s32.totalorder %s148, %s149
      %p163 = scmp.eq.s32.totalorder %s36, 1
      %p164 = por %p162, %p163
      %p166 = scmp.ne.s32.totalorder %s149, %s165
      %p167 = scmp.eq.s32.totalorder %s36, 0
      %p168 = por %p166, %p167
      %s169 = ssub.s32 %s30, %s37
      %p170 = scmp.eq.s32.totalorder %s169, 0
      %s172 = sadd.s32 %s171, 1
      %s173 = scalar_select %p170, %s171, %s172
      %p176 = pneg %p170
      %p177 = scmp.eq.s32.totalorder %s30, 1
      %p178 = por %p176, %p177
      %p179 = scmp.ne.s32.totalorder %s171, %s174
      %p180 = scmp.eq.s32.totalorder %s30, 0
      %p181 = por %p179, %p180
      %p182 = scmp.ne.s32.totalorder %s171, %s174
      %p183 = scmp.eq.s32.totalorder %s35, 1
      %p184 = por %p182, %p183
      %p185 = scmp.ne.s32.totalorder %s174, %s175
      %p186 = scmp.eq.s32.totalorder %s35, 0
      %p187 = por %p185, %p186
      %p188 = scmp.ne.s32.totalorder %s174, %s175
      %p189 = scmp.eq.s32.totalorder %s36, 1
      %p190 = por %p188, %p189
      %p192 = scmp.ne.s32.totalorder %s175, %s191
      %p193 = scmp.eq.s32.totalorder %s36, 0
      %p194 = por %p192, %p193
      %s195 = ssub.s32 %s30, %s37
      %p196 = scmp.eq.s32.totalorder %s195, 0
      %s198 = sadd.s32 %s197, 1
      %s199 = scalar_select %p196, %s197, %s198
      %p202 = pneg %p196
      %p203 = scmp.eq.s32.totalorder %s30, 1
      %p204 = por %p202, %p203
      %p205 = scmp.ne.s32.totalorder %s197, %s200
      %p206 = scmp.eq.s32.totalorder %s30, 0
      %p207 = por %p205, %p206
      %p208 = scmp.ne.s32.totalorder %s197, %s200
      %p209 = scmp.eq.s32.totalorder %s35, 1
      %p210 = por %p208, %p209
      %p211 = scmp.ne.s32.totalorder %s200, %s201
      %p212 = scmp.eq.s32.totalorder %s35, 0
      %p213 = por %p211, %p212
      %p214 = scmp.ne.s32.totalorder %s200, %s201
      %p215 = scmp.eq.s32.totalorder %s36, 1
      %p216 = por %p214, %p215
      %p218 = scmp.ne.s32.totalorder %s201, %s217
      %p219 = scmp.eq.s32.totalorder %s36, 0
      %p220 = por %p218, %p219
      %s221 = ssub.s32 %s30, %s37
      %p222 = scmp.eq.s32.totalorder %s221, 0
      %s224 = sadd.s32 %s223, 1
      %s225 = scalar_select %p222, %s223, %s224
      %p228 = pneg %p222
      %p229 = scmp.eq.s32.totalorder %s30, 1
      %p230 = por %p228, %p229
      %p231 = scmp.ne.s32.totalorder %s223, %s226
      %p232 = scmp.eq.s32.totalorder %s30, 0
      %p233 = por %p231, %p232
      %p234 = scmp.ne.s32.totalorder %s223, %s226
      %p235 = scmp.eq.s32.totalorder %s35, 1
      %p236 = por %p234, %p235
      %p237 = scmp.ne.s32.totalorder %s226, %s227
      %p238 = scmp.eq.s32.totalorder %s35, 0
      %p239 = por %p237, %p238
      %p240 = scmp.ne.s32.totalorder %s226, %s227
      %p241 = scmp.eq.s32.totalorder %s36, 1
      %p242 = por %p240, %p241
      %p244 = scmp.ne.s32.totalorder %s227, %s243
      %p245 = scmp.eq.s32.totalorder %s36, 0
      %p246 = por %p244, %p245
      %s247 = ssub.s32 %s30, %s37
      %p248 = scmp.eq.s32.totalorder %s247, 0
      %s250 = sadd.s32 %s249, 1
      %s251 = scalar_select %p248, %s249, %s250
      %p254 = pneg %p248
      %p255 = scmp.eq.s32.totalorder %s30, 1
      %p256 = por %p254, %p255
      %p257 = scmp.ne.s32.totalorder %s249, %s252
      %p258 = scmp.eq.s32.totalorder %s30, 0
      %p259 = por %p257, %p258
      %p260 = scmp.ne.s32.totalorder %s249, %s252
      %p261 = scmp.eq.s32.totalorder %s35, 1
      %p262 = por %p260, %p261
      %p263 = scmp.ne.s32.totalorder %s252, %s253
      %p264 = scmp.eq.s32.totalorder %s35, 0
      %p265 = por %p263, %p264
      %p266 = scmp.ne.s32.totalorder %s252, %s253
      %p267 = scmp.eq.s32.totalorder %s36, 1
      %p268 = por %p266, %p267
      %p270 = scmp.ne.s32.totalorder %s253, %s269
      %p271 = scmp.eq.s32.totalorder %s36, 0
      %p272 = por %p270, %p271
      %s274 = sadd.s32 %s273, 1
      %p277 = scmp.eq.s32.totalorder %s30, 1
      %p278 = scmp.ne.s32.totalorder %s273, %s275
      %p279 = scmp.eq.s32.totalorder %s30, 0
      %p280 = por %p278, %p279
      %p281 = scmp.ne.s32.totalorder %s273, %s275
      %p282 = scmp.eq.s32.totalorder %s35, 1
      %p283 = por %p281, %p282
      %p284 = scmp.ne.s32.totalorder %s275, %s276
      %p285 = scmp.eq.s32.totalorder %s35, 0
      %p286 = por %p284, %p285
      %p287 = scmp.ne.s32.totalorder %s275, %s276
      %p288 = scmp.eq.s32.totalorder %s36, 1
      %p289 = por %p287, %p288
      %p291 = scmp.ne.s32.totalorder %s276, %s290
      %p292 = scmp.eq.s32.totalorder %s36, 0
      %p293 = por %p291, %p292
      %s295 = sadd.s32 %s294, 1
      %p298 = scmp.eq.s32.totalorder %s30, 1
      %p299 = scmp.ne.s32.totalorder %s294, %s296
      %p300 = scmp.eq.s32.totalorder %s30, 0
      %p301 = por %p299, %p300
      %p302 = scmp.ne.s32.totalorder %s294, %s296
      %p303 = scmp.eq.s32.totalorder %s35, 1
      %p304 = por %p302, %p303
      %p305 = scmp.ne.s32.totalorder %s296, %s297
      %p306 = scmp.eq.s32.totalorder %s35, 0
      %p307 = por %p305, %p306
      %p308 = scmp.ne.s32.totalorder %s296, %s297
      %p309 = scmp.eq.s32.totalorder %s36, 1
      %p310 = por %p308, %p309
      %p312 = scmp.ne.s32.totalorder %s297, %s311
      %p313 = scmp.eq.s32.totalorder %s36, 0
      %p314 = por %p312, %p313
      %p315 = scmp.le.s32.totalorder 1, %s30
      %p316 = scmp.lt.s32.totalorder %s30, 3
      %p317 = pnand %p315, %p316
      %p318 = pneg %p317
      // Predicated region
      $region9: #{tpu_custom_call.1} parent=5 // pred_check
        _
      $region10: #{tpu_custom_call.1} parent=5 // pred_check_branch
        %320 = sbr.rel (%p317) target = $region12
      $region11: #{tpu_custom_call.1} parent=5 // pred_region
        %s321 = ssub.s32 %s30, 1
        // Predicated region
        $region13: #{tpu_custom_call.1} parent=11 // pred_check
          %p322 = pneg %p51
        $region14: #{tpu_custom_call.1} parent=11 // pred_check_branch
          %324 = sbr.rel (%p322) target = $region16
        $region15: #{tpu_custom_call.1} parent=11 // pred_region
          %326 = vsyncadd [#allocation4], 0
          %s328 = sshll.u32 %s0, 4
          %s329 = int_to_ptr.hbm [resolvable:$true] %s328
          %s330 = sshll.u32 [#allocation3], 4
          %s331 = int_to_ptr.vmem [resolvable:$true] %s330
          %333 = dma.hbm_to_vmem [thread:$0]  %s329, 128, %s331, [#allocation4]
        $region16: #{tpu_custom_call.1} parent=11 // pred_fallthru
          _
        // Predicated region
        $region17: #{tpu_custom_call.1} parent=11 // pred_check
          %p334 = pneg %p72
        $region18: #{tpu_custom_call.1} parent=11 // pred_check_branch
          %336 = sbr.rel (%p334) target = $region20
        $region19: #{tpu_custom_call.1} parent=11 // pred_region
          %338 = vsyncadd [#allocation7], 0
          %s339 = sshll.u32 %s1, 4
          %s340 = int_to_ptr.hbm [resolvable:$true] %s339
          %s341 = sshll.u32 [#allocation6], 4
          %s342 = int_to_ptr.vmem [resolvable:$true] %s341
          %347 = dma.hbm_to_vmem [thread:$0]  %s340, 2048, %s342, [#allocation7], 512, 512, 32
        $region20: #{tpu_custom_call.1} parent=11 // pred_fallthru
          _
        // Predicated region
        $region21: #{tpu_custom_call.1} parent=11 // pred_check
          %p348 = pneg %p93
        $region22: #{tpu_custom_call.1} parent=11 // pred_check_branch
          %350 = sbr.rel (%p348) target = $region24
        $region23: #{tpu_custom_call.1} parent=11 // pred_region
          %352 = vsyncadd [#allocation7], 0
          %s354 = sshll.u32 %s2, 4
          %s355 = int_to_ptr.hbm [resolvable:$true] %s354
          %s356 = sshll.u32 [#allocation8], 4
          %s357 = int_to_ptr.vmem [resolvable:$true] %s356
          %359 = dma.hbm_to_vmem [thread:$0]  %s355, 64, %s357, [#allocation7]
        $region24: #{tpu_custom_call.1} parent=11 // pred_fallthru
          _
        // Predicated region
        $region25: #{tpu_custom_call.1} parent=11 // pred_check
          %p360 = pneg %p114
        $region26: #{tpu_custom_call.1} parent=11 // pred_check_branch
          %362 = sbr.rel (%p360) target = $region28
        $region27: #{tpu_custom_call.1} parent=11 // pred_region
          %364 = vsyncadd [#allocation10], 0
          %s366 = sshll.u32 %s3, 4
          %s367 = int_to_ptr.hbm [resolvable:$true] %s366
          %s368 = sshll.u32 [#allocation9], 4
          %s369 = int_to_ptr.vmem [resolvable:$true] %s368
          %371 = dma.hbm_to_vmem [thread:$0]  %s367, 64, %s369, [#allocation10]
        $region28: #{tpu_custom_call.1} parent=11 // pred_fallthru
          _
        // Predicated region
        $region29: #{tpu_custom_call.1} parent=11 // pred_check
          %p372 = pneg %p135
        $region30: #{tpu_custom_call.1} parent=11 // pred_check_branch
          %374 = sbr.rel (%p372) target = $region32
        $region31: #{tpu_custom_call.1} parent=11 // pred_region
          %376 = vsyncadd [#allocation10], 0
          %s378 = sshll.u32 %s4, 4
          %s379 = int_to_ptr.hbm [resolvable:$true] %s378
          %s380 = sshll.u32 [#allocation11], 4
          %s381 = int_to_ptr.vmem [resolvable:$true] %s380
          %383 = dma.hbm_to_vmem [thread:$0]  %s379, 64, %s381, [#allocation10]
        $region32: #{tpu_custom_call.1} parent=11 // pred_fallthru
          _
        // Predicated region
        $region33: #{tpu_custom_call.1} parent=11 // pred_check
          %p384 = pneg %p286
        $region34: #{tpu_custom_call.1} parent=11 // pred_check_branch
          %386 = sbr.rel (%p384) target = $region36
        $region35: #{tpu_custom_call.1} parent=11 // pred_region
          %388 = vsyncadd [#allocation19], 0
          %s390 = sshll.u32 %s10, 4
          %s391 = int_to_ptr.hbm [resolvable:$true] %s390
          %s392 = sshll.u32 [#allocation20], 4
          %s393 = int_to_ptr.vmem [resolvable:$true] %s392
          %395 = dma.hbm_to_vmem [thread:$0]  %s391, 16, %s393, [#allocation19]
        $region36: #{tpu_custom_call.1} parent=11 // pred_fallthru
          _
      $region12: #{tpu_custom_call.1} parent=5 // pred_fallthru
        _
      %p396 = scmp.lt.s32.totalorder %s30, 2
      // Predicated region
      $region37: #{tpu_custom_call.1} parent=5 // pred_check
        %p397 = pneg %p396
      $region38: #{tpu_custom_call.1} parent=5 // pred_check_branch
        %399 = sbr.rel (%p397) target = $region40
      $region39: #{tpu_custom_call.1} parent=5 // pred_region
        // Predicated region
        $region41: #{tpu_custom_call.1} parent=39 // pred_check
          %p400 = pneg %p155
        $region42: #{tpu_custom_call.1} parent=39 // pred_check_branch
          %402 = sbr.rel (%p400) target = $region44
        $region43: #{tpu_custom_call.1} parent=39 // pred_region
          %s403 = sand.u32 %s30, 1
          %s404 = scalar_lea.sflag [#allocation13], %s403
          %s405 = sand.u32 %s145, 1
          %s406 = smul.addr %s405, 4096
          %s407 = scalar_lea.vmem [#allocation12], %s406
          %s408 = smul.u32 16, %s30
          %410 = vsyncadd %s404, 0
          %s411 = smul.addr %s408, 4
          %s412 = scalar_lea.hbm %s5, %s411
          %s413 = sshll.u32 %s412, 4
          %s414 = int_to_ptr.hbm [resolvable:$true] %s413
          %s415 = sshll.u32 %s407, 4
          %s416 = int_to_ptr.vmem [resolvable:$true] %s415
          %421 = dma.hbm_to_vmem [thread:$0]  %s414, 65536, %s416, %s404, 2048, 1024, 64
        $region44: #{tpu_custom_call.1} parent=39 // pred_fallthru
          _
        // Predicated region
        $region45: #{tpu_custom_call.1} parent=39 // pred_check
          %p422 = pneg %p181
        $region46: #{tpu_custom_call.1} parent=39 // pred_check_branch
          %424 = sbr.rel (%p422) target = $region48
        $region47: #{tpu_custom_call.1} parent=39 // pred_region
          %s425 = sand.u32 %s30, 1
          %s426 = scalar_lea.sflag [#allocation13], %s425
          %s427 = sand.u32 %s171, 1
          %s428 = smul.addr %s427, 16
          %s429 = scalar_lea.vmem [#allocation14], %s428
          %s430 = smul.u32 16, %s30
          %432 = vsyncadd %s426, 0
          %s433 = scalar_lea.hbm %s6, %s430
          %s435 = sshll.u32 %s433, 4
          %s436 = int_to_ptr.hbm [resolvable:$true] %s435
          %s437 = sshll.u32 %s429, 4
          %s438 = int_to_ptr.vmem [resolvable:$true] %s437
          %440 = dma.hbm_to_vmem [thread:$0]  %s436, 256, %s438, %s426
        $region48: #{tpu_custom_call.1} parent=39 // pred_fallthru
          _
        // Predicated region
        $region49: #{tpu_custom_call.1} parent=39 // pred_check
          %p441 = pneg %p207
        $region50: #{tpu_custom_call.1} parent=39 // pred_check_branch
          %443 = sbr.rel (%p441) target = $region52
        $region51: #{tpu_custom_call.1} parent=39 // pred_region
          %s444 = sand.u32 %s30, 1
          %s445 = scalar_lea.sflag [#allocation16], %s444
          %s446 = sand.u32 %s197, 1
          %s447 = smul.addr %s446, 16
          %s448 = scalar_lea.vmem [#allocation15], %s447
          %s449 = smul.u32 16, %s30
          %451 = vsyncadd %s445, 0
          %s452 = scalar_lea.hbm %s7, %s449
          %s454 = sshll.u32 %s452, 4
          %s455 = int_to_ptr.hbm [resolvable:$true] %s454
          %s456 = sshll.u32 %s448, 4
          %s457 = int_to_ptr.vmem [resolvable:$true] %s456
          %459 = dma.hbm_to_vmem [thread:$0]  %s455, 256, %s457, %s445
        $region52: #{tpu_custom_call.1} parent=39 // pred_fallthru
          _
        // Predicated region
        $region53: #{tpu_custom_call.1} parent=39 // pred_check
          %p460 = pneg %p233
        $region54: #{tpu_custom_call.1} parent=39 // pred_check_branch
          %462 = sbr.rel (%p460) target = $region56
        $region55: #{tpu_custom_call.1} parent=39 // pred_region
          %s463 = sand.u32 %s30, 1
          %s464 = scalar_lea.sflag [#allocation16], %s463
          %s465 = sand.u32 %s223, 1
          %s466 = smul.addr %s465, 16
          %s467 = scalar_lea.vmem [#allocation17], %s466
          %s468 = smul.u32 16, %s30
          %470 = vsyncadd %s464, 0
          %s471 = scalar_lea.hbm %s8, %s468
          %s473 = sshll.u32 %s471, 4
          %s474 = int_to_ptr.hbm [resolvable:$true] %s473
          %s475 = sshll.u32 %s467, 4
          %s476 = int_to_ptr.vmem [resolvable:$true] %s475
          %478 = dma.hbm_to_vmem [thread:$0]  %s474, 256, %s476, %s464
        $region56: #{tpu_custom_call.1} parent=39 // pred_fallthru
          _
        // Predicated region
        $region57: #{tpu_custom_call.1} parent=39 // pred_check
          %p479 = pneg %p259
        $region58: #{tpu_custom_call.1} parent=39 // pred_check_branch
          %481 = sbr.rel (%p479) target = $region60
        $region59: #{tpu_custom_call.1} parent=39 // pred_region
          %s482 = sand.u32 %s30, 1
          %s483 = scalar_lea.sflag [#allocation19], %s482
          %s484 = sand.u32 %s249, 1
          %s485 = smul.addr %s484, 1024
          %s486 = scalar_lea.vmem [#allocation18], %s485
          %s487 = smul.u32 256, %s30
          %489 = vsyncadd %s483, 0
          %s490 = smul.addr %s487, 4
          %s491 = scalar_lea.hbm %s9, %s490
          %s492 = sshll.u32 %s491, 4
          %s493 = int_to_ptr.hbm [resolvable:$true] %s492
          %s494 = sshll.u32 %s486, 4
          %s495 = int_to_ptr.vmem [resolvable:$true] %s494
          %500 = dma.hbm_to_vmem [thread:$0]  %s493, 16384, %s495, %s483, 64, 64, 4
        $region60: #{tpu_custom_call.1} parent=39 // pred_fallthru
          _
      $region40: #{tpu_custom_call.1} parent=5 // pred_fallthru
        _
      %p501 = scmp.le.s32.totalorder 1, %s30
      %p502 = scmp.lt.s32.totalorder %s30, 3
      %p503 = pnand %p501, %p502
      %p504 = pneg %p503
      // Predicated region
      $region61: #{tpu_custom_call.1} parent=5 // pred_check
        _
      $region62: #{tpu_custom_call.1} parent=5 // pred_check_branch
        %506 = sbr.rel (%p503) target = $region64
      $region63: #{tpu_custom_call.1} parent=5 // pred_region
        %s507 = ssub.s32 %s30, 1
        // Predicated region
        $region65: #{tpu_custom_call.1} parent=63 // pred_check
          %p508 = pneg %p51
        $region66: #{tpu_custom_call.1} parent=63 // pred_check_branch
          %510 = sbr.rel (%p508) target = $region68
        $region67: #{tpu_custom_call.1} parent=63 // pred_region
          %512 = dma.done [#allocation4], 128
        $region68: #{tpu_custom_call.1} parent=63 // pred_fallthru
          _
        // Predicated region
        $region69: #{tpu_custom_call.1} parent=63 // pred_check
          %p513 = pneg %p72
        $region70: #{tpu_custom_call.1} parent=63 // pred_check_branch
          %515 = sbr.rel (%p513) target = $region72
        $region71: #{tpu_custom_call.1} parent=63 // pred_region
          %517 = dma.done [#allocation7], 2048
        $region72: #{tpu_custom_call.1} parent=63 // pred_fallthru
          _
        // Predicated region
        $region73: #{tpu_custom_call.1} parent=63 // pred_check
          %p518 = pneg %p93
        $region74: #{tpu_custom_call.1} parent=63 // pred_check_branch
          %520 = sbr.rel (%p518) target = $region76
        $region75: #{tpu_custom_call.1} parent=63 // pred_region
          %522 = dma.done [#allocation7], 64
        $region76: #{tpu_custom_call.1} parent=63 // pred_fallthru
          _
        // Predicated region
        $region77: #{tpu_custom_call.1} parent=63 // pred_check
          %p523 = pneg %p114
        $region78: #{tpu_custom_call.1} parent=63 // pred_check_branch
          %525 = sbr.rel (%p523) target = $region80
        $region79: #{tpu_custom_call.1} parent=63 // pred_region
          %527 = dma.done [#allocation10], 64
        $region80: #{tpu_custom_call.1} parent=63 // pred_fallthru
          _
        // Predicated region
        $region81: #{tpu_custom_call.1} parent=63 // pred_check
          %p528 = pneg %p135
        $region82: #{tpu_custom_call.1} parent=63 // pred_check_branch
          %530 = sbr.rel (%p528) target = $region84
        $region83: #{tpu_custom_call.1} parent=63 // pred_region
          %532 = dma.done [#allocation10], 64
        $region84: #{tpu_custom_call.1} parent=63 // pred_fallthru
          _
        %s533 = sand.u32 %s35, 1
        %s534 = scalar_lea.sflag [#allocation13], %s533
        %s535 = sand.u32 %s148, 1
        %s536 = smul.addr %s535, 4096
        %s537 = scalar_lea.vmem [#allocation12], %s536
        // Predicated region
        $region85: #{tpu_custom_call.1} parent=63 // pred_check
          %p538 = pneg %p161
        $region86: #{tpu_custom_call.1} parent=63 // pred_check_branch
          %540 = sbr.rel (%p538) target = $region88
        $region87: #{tpu_custom_call.1} parent=63 // pred_region
          %542 = dma.done %s534, 65536
        $region88: #{tpu_custom_call.1} parent=63 // pred_fallthru
          _
        %s543 = sand.u32 %s35, 1
        %s544 = scalar_lea.sflag [#allocation13], %s543
        %s545 = sand.u32 %s174, 1
        %s546 = smul.addr %s545, 16
        %s547 = scalar_lea.vmem [#allocation14], %s546
        // Predicated region
        $region89: #{tpu_custom_call.1} parent=63 // pred_check
          %p548 = pneg %p187
        $region90: #{tpu_custom_call.1} parent=63 // pred_check_branch
          %550 = sbr.rel (%p548) target = $region92
        $region91: #{tpu_custom_call.1} parent=63 // pred_region
          %552 = dma.done %s544, 256
        $region92: #{tpu_custom_call.1} parent=63 // pred_fallthru
          _
        %s553 = sand.u32 %s35, 1
        %s554 = scalar_lea.sflag [#allocation16], %s553
        %s555 = sand.u32 %s200, 1
        %s556 = smul.addr %s555, 16
        %s557 = scalar_lea.vmem [#allocation15], %s556
        // Predicated region
        $region93: #{tpu_custom_call.1} parent=63 // pred_check
          %p558 = pneg %p213
        $region94: #{tpu_custom_call.1} parent=63 // pred_check_branch
          %560 = sbr.rel (%p558) target = $region96
        $region95: #{tpu_custom_call.1} parent=63 // pred_region
          %562 = dma.done %s554, 256
        $region96: #{tpu_custom_call.1} parent=63 // pred_fallthru
          _
        %s563 = sand.u32 %s35, 1
        %s564 = scalar_lea.sflag [#allocation16], %s563
        %s565 = sand.u32 %s226, 1
        %s566 = smul.addr %s565, 16
        %s567 = scalar_lea.vmem [#allocation17], %s566
        // Predicated region
        $region97: #{tpu_custom_call.1} parent=63 // pred_check
          %p568 = pneg %p239
        $region98: #{tpu_custom_call.1} parent=63 // pred_check_branch
          %570 = sbr.rel (%p568) target = $region100
        $region99: #{tpu_custom_call.1} parent=63 // pred_region
          %572 = dma.done %s564, 256
        $region100: #{tpu_custom_call.1} parent=63 // pred_fallthru
          _
        %s573 = sand.u32 %s35, 1
        %s574 = scalar_lea.sflag [#allocation19], %s573
        %s575 = sand.u32 %s252, 1
        %s576 = smul.addr %s575, 1024
        %s577 = scalar_lea.vmem [#allocation18], %s576
        // Predicated region
        $region101: #{tpu_custom_call.1} parent=63 // pred_check
          %p578 = pneg %p265
        $region102: #{tpu_custom_call.1} parent=63 // pred_check_branch
          %580 = sbr.rel (%p578) target = $region104
        $region103: #{tpu_custom_call.1} parent=63 // pred_region
          %582 = dma.done %s574, 16384
        $region104: #{tpu_custom_call.1} parent=63 // pred_fallthru
          _
        // Predicated region
        $region105: #{tpu_custom_call.1} parent=63 // pred_check
          %p583 = pneg %p286
        $region106: #{tpu_custom_call.1} parent=63 // pred_check_branch
          %585 = sbr.rel (%p583) target = $region108
        $region107: #{tpu_custom_call.1} parent=63 // pred_region
          %587 = dma.done [#allocation19], 16
        $region108: #{tpu_custom_call.1} parent=63 // pred_fallthru
          _
        %p588 = pneg %p51
        %p589 = pneg %p48
        %p590 = pneg %p72
        %p591 = pneg %p69
        %p592 = pneg %p93
        %p593 = pneg %p90
        %p594 = pneg %p114
        %p595 = pneg %p111
        %p596 = pneg %p135
        %p597 = pneg %p132
        %s598 = sand.u32 %s35, 1
        %s599 = scalar_lea.sflag [#allocation13], %s598
        %s600 = sand.u32 %s148, 1
        %s601 = smul.addr %s600, 4096
        %s602 = scalar_lea.vmem [#allocation12], %s601
        %p603 = pneg %p161
        %p604 = pneg %p158
        %s605 = sand.u32 %s35, 1
        %s606 = scalar_lea.sflag [#allocation13], %s605
        %s607 = sand.u32 %s174, 1
        %s608 = smul.addr %s607, 16
        %s609 = scalar_lea.vmem [#allocation14], %s608
        %p610 = pneg %p187
        %p611 = pneg %p184
        %s612 = sand.u32 %s35, 1
        %s613 = scalar_lea.sflag [#allocation16], %s612
        %s614 = sand.u32 %s200, 1
        %s615 = smul.addr %s614, 16
        %s616 = scalar_lea.vmem [#allocation15], %s615
        %p617 = pneg %p213
        %p618 = pneg %p210
        %s619 = sand.u32 %s35, 1
        %s620 = scalar_lea.sflag [#allocation16], %s619
        %s621 = sand.u32 %s226, 1
        %s622 = smul.addr %s621, 16
        %s623 = scalar_lea.vmem [#allocation17], %s622
        %p624 = pneg %p239
        %p625 = pneg %p236
        %s626 = sand.u32 %s35, 1
        %s627 = scalar_lea.sflag [#allocation19], %s626
        %s628 = sand.u32 %s252, 1
        %s629 = smul.addr %s628, 1024
        %s630 = scalar_lea.vmem [#allocation18], %s629
        %p631 = pneg %p265
        %p632 = pneg %p262
        %p633 = pneg %p286
        %p634 = pneg %p283
        %p635 = pneg %p307
        %p636 = pneg %p304
        %s637 = smul.u32 16, %s35
        %s638 = smul.u32 16, %s35
        %s639 = smul.u32 16, %s35
        %s640 = smul.u32 16, %s35
        %s641 = smul.u32 256, %s35
        %p642 = scmp.eq.s32.totalorder %s35, 0
        // Predicated region
        $region109: #{tpu_custom_call.1} parent=63 // pred_check
          %p643 = pneg %p642
        $region110: #{tpu_custom_call.1} parent=63 // pred_check_branch
          %645 = sbr.rel (%p643) target = $region112
        $region111: #{tpu_custom_call.1} parent=63 // pred_region
          %v646 = vld [vmem:[#allocation3] sm:$0xff]
          %v647 = vld [vmem:[#allocation6] sm:$0xff]
          %v648 = vld [vmem:[#allocation6 + $0x8] sm:$0xff]
          %v649 = vld [vmem:[#allocation6 + $0x10] sm:$0xff]
          %v650 = vld [vmem:[#allocation6 + $0x18] sm:$0xff]
          %v651 = vld [vmem:[#allocation6 + $0x20] sm:$0xff]
          %v652 = vld [vmem:[#allocation6 + $0x28] sm:$0xff]
          %v653 = vld [vmem:[#allocation6 + $0x30] sm:$0xff]
          %v654 = vld [vmem:[#allocation6 + $0x38] sm:$0xff]
          %v655 = vld [vmem:[#allocation6 + $0x40] sm:$0xff]
          %v656 = vld [vmem:[#allocation6 + $0x48] sm:$0xff]
          %v657 = vld [vmem:[#allocation6 + $0x50] sm:$0xff]
          %v658 = vld [vmem:[#allocation6 + $0x58] sm:$0xff]
          %v659 = vld [vmem:[#allocation6 + $0x60] sm:$0xff]
          %v660 = vld [vmem:[#allocation6 + $0x68] sm:$0xff]
          %v661 = vld [vmem:[#allocation6 + $0x70] sm:$0xff]
          %v662 = vld [vmem:[#allocation6 + $0x78] sm:$0xff]
          %v663 = vld [vmem:[#allocation8] sm:$0xf]
          %v665 = vperm.slane %v663, 0
          %v666 = vperm.slane %v663, 1
          %v667 = vperm.slane %v663, 2
          %v668 = vperm.slane %v663, 3
          %vm673 = vcmask 261120
          %v675 = vsel %vm673, %v646, 0
          %677 = vmatpush.msra.mxu0 0.0
          %678 = vmatpush.msra.mxu0 0.0
          %679 = vmatpush.msra.mxu0 0.0
          %680 = vmatpush.msra.mxu0 0.0
          %681 = vmatpush.msra.mxu0 0.0
          %682 = vmatpush.msra.mxu0 0.0
          %683 = vmatpush.msra.mxu0 0.0
          %684 = vmatpush.msra.mxu0 0.0
          %685 = vmatpush.msra.mxu0 0.0
          %686 = vmatpush.msra.mxu0 0.0
          %687 = vmatpush.msra.mxu0 0.0
          %688 = vmatpush.msra.mxu0 0.0
          %689 = vmatpush.msra.mxu0 %v659
          %690 = vmatpush.msra.mxu0 %v655
          %691 = vmatpush.msra.mxu0 %v651
          %692 = vmatpush.msra.mxu0 %v647
          %693 = vmatmul.f32.gmra.mxu0 %v675
          %v694 = vpop.f32.mrf.mxu0
          %v695 = vadd.f32 %v665, %v694
          %696 = vdwg.mxu0
          %697 = vmatpush.msra.mxu0 0.0
          %698 = vmatpush.msra.mxu0 0.0
          %699 = vmatpush.msra.mxu0 0.0
          %700 = vmatpush.msra.mxu0 0.0
          %701 = vmatpush.msra.mxu0 0.0
          %702 = vmatpush.msra.mxu0 0.0
          %703 = vmatpush.msra.mxu0 0.0
          %704 = vmatpush.msra.mxu0 0.0
          %705 = vmatpush.msra.mxu0 0.0
          %706 = vmatpush.msra.mxu0 0.0
          %707 = vmatpush.msra.mxu0 0.0
          %708 = vmatpush.msra.mxu0 0.0
          %709 = vmatpush.msra.mxu0 %v660
          %710 = vmatpush.msra.mxu0 %v656
          %711 = vmatpush.msra.mxu0 %v652
          %712 = vmatpush.msra.mxu0 %v648
          %713 = vmatmul.f32.gmra.mxu0 %v675
          %v714 = vpop.f32.mrf.mxu0
          %v715 = vadd.f32 %v666, %v714
          %716 = vdwg.mxu0
          %717 = vmatpush.msra.mxu0 0.0
          %718 = vmatpush.msra.mxu0 0.0
          %719 = vmatpush.msra.mxu0 0.0
          %720 = vmatpush.msra.mxu0 0.0
          %721 = vmatpush.msra.mxu0 0.0
          %722 = vmatpush.msra.mxu0 0.0
          %723 = vmatpush.msra.mxu0 0.0
          %724 = vmatpush.msra.mxu0 0.0
          %725 = vmatpush.msra.mxu0 0.0
          %726 = vmatpush.msra.mxu0 0.0
          %727 = vmatpush.msra.mxu0 0.0
          %728 = vmatpush.msra.mxu0 0.0
          %729 = vmatpush.msra.mxu0 %v661
          %730 = vmatpush.msra.mxu0 %v657
          %731 = vmatpush.msra.mxu0 %v653
          %732 = vmatpush.msra.mxu0 %v649
          %733 = vmatmul.f32.gmra.mxu0 %v675
          %v734 = vpop.f32.mrf.mxu0
          %v735 = vadd.f32 %v667, %v734
          %736 = vdwg.mxu0
          %737 = vmatpush.msra.mxu0 0.0
          %738 = vmatpush.msra.mxu0 0.0
          %739 = vmatpush.msra.mxu0 0.0
          %740 = vmatpush.msra.mxu0 0.0
          %741 = vmatpush.msra.mxu0 0.0
          %742 = vmatpush.msra.mxu0 0.0
          %743 = vmatpush.msra.mxu0 0.0
          %744 = vmatpush.msra.mxu0 0.0
          %745 = vmatpush.msra.mxu0 0.0
          %746 = vmatpush.msra.mxu0 0.0
          %747 = vmatpush.msra.mxu0 0.0
          %748 = vmatpush.msra.mxu0 0.0
          %749 = vmatpush.msra.mxu0 %v662
          %750 = vmatpush.msra.mxu0 %v658
          %751 = vmatpush.msra.mxu0 %v654
          %752 = vmatpush.msra.mxu0 %v650
          %753 = vmatmul.f32.gmra.mxu0 %v675
          %v754 = vpop.f32.mrf.mxu0
          %v755 = vadd.f32 %v668, %v754
          %756 = vdwg.mxu0
          %v757 = vld [vmem:[#allocation9] sm:$0xf]
          %v758 = vld [vmem:[#allocation11] sm:$0xf]
          %v759 = vrot.slane %v695, 4
          %v760 = vadd.f32 %v695, %v759
          %v761 = vrot.slane %v760, 2
          %v762 = vadd.f32 %v760, %v761
          %v763 = vrot.slane %v762, 1
          %v764 = vadd.f32 %v762, %v763
          %v765 = vrot.slane %v715, 4
          %v766 = vadd.f32 %v715, %v765
          %v767 = vrot.slane %v766, 2
          %v768 = vadd.f32 %v766, %v767
          %v769 = vrot.slane %v768, 1
          %v770 = vadd.f32 %v768, %v769
          %v771 = vrot.slane %v735, 4
          %v772 = vadd.f32 %v735, %v771
          %v773 = vrot.slane %v772, 2
          %v774 = vadd.f32 %v772, %v773
          %v775 = vrot.slane %v774, 1
          %v776 = vadd.f32 %v774, %v775
          %v777 = vrot.slane %v755, 4
          %v778 = vadd.f32 %v755, %v777
          %v779 = vrot.slane %v778, 2
          %v780 = vadd.f32 %v778, %v779
          %v781 = vrot.slane %v780, 1
          %v782 = vadd.f32 %v780, %v781
          %v783 = vrcp.pop 8.0
          %v784 = vmul.f32 8.0, %v783
          %v785 = vsub.f32 1.0, %v784
          %v786 = vmul.f32 %v783, %v785
          %v787 = vadd.f32 %v783, %v786
          %vm788 = vweird.f32 %v783
          %v789 = vsel %vm788, %v783, %v787
          %v790 = vmul.f32 %v764, %v789
          %v791 = vmul.f32 %v770, %v789
          %v792 = vmul.f32 %v776, %v789
          %v793 = vmul.f32 %v782, %v789
          %v794 = vsub.f32 %v695, %v790
          %v795 = vsub.f32 %v715, %v791
          %v796 = vsub.f32 %v735, %v792
          %v797 = vsub.f32 %v755, %v793
          %v798 = vmul.f32 %v794, %v794
          %v799 = vmul.f32 %v795, %v795
          %v800 = vmul.f32 %v796, %v796
          %v801 = vmul.f32 %v797, %v797
          %v802 = vrot.slane %v798, 4
          %v803 = vadd.f32 %v798, %v802
          %v804 = vrot.slane %v803, 2
          %v805 = vadd.f32 %v803, %v804
          %v806 = vrot.slane %v805, 1
          %v807 = vadd.f32 %v805, %v806
          %v808 = vrot.slane %v799, 4
          %v809 = vadd.f32 %v799, %v808
          %v810 = vrot.slane %v809, 2
          %v811 = vadd.f32 %v809, %v810
          %v812 = vrot.slane %v811, 1
          %v813 = vadd.f32 %v811, %v812
          %v814 = vrot.slane %v800, 4
          %v815 = vadd.f32 %v800, %v814
          %v816 = vrot.slane %v815, 2
          %v817 = vadd.f32 %v815, %v816
          %v818 = vrot.slane %v817, 1
          %v819 = vadd.f32 %v817, %v818
          %v820 = vrot.slane %v801, 4
          %v821 = vadd.f32 %v801, %v820
          %v822 = vrot.slane %v821, 2
          %v823 = vadd.f32 %v821, %v822
          %v824 = vrot.slane %v823, 1
          %v825 = vadd.f32 %v823, %v824
          %v826 = vmul.f32 %v807, %v789
          %v827 = vmul.f32 %v813, %v789
          %v828 = vmul.f32 %v819, %v789
          %v829 = vmul.f32 %v825, %v789
          %v830 = vadd.f32 %v826, 1e-05
          %v831 = vadd.f32 %v827, 1e-05
          %v832 = vadd.f32 %v828, 1e-05
          %v833 = vadd.f32 %v829, 1e-05
          %v834 = vrsqrt.pop %v830
          %v835 = vmul.f32 %v834, %v830
          %v836 = vmul.f32 %v835, %v834
          %v837 = vmul.f32 0.5, %v836
          %v838 = vsub.f32 1.5, %v837
          %v839 = vmul.f32 %v834, %v838
          %vm840 = vweird.f32 %v830
          %vm841 = vweird.f32 %v834
          %vm842 = vmor %vm840, %vm841
          %v843 = vsel %vm842, %v834, %v839
          %v844 = vrsqrt.pop %v831
          %v845 = vmul.f32 %v844, %v831
          %v846 = vmul.f32 %v845, %v844
          %v847 = vmul.f32 0.5, %v846
          %v848 = vsub.f32 1.5, %v847
          %v849 = vmul.f32 %v844, %v848
          %vm850 = vweird.f32 %v831
          %vm851 = vweird.f32 %v844
          %vm852 = vmor %vm850, %vm851
          %v853 = vsel %vm852, %v844, %v849
          %v854 = vrsqrt.pop %v832
          %v855 = vmul.f32 %v854, %v832
          %v856 = vmul.f32 %v855, %v854
          %v857 = vmul.f32 0.5, %v856
          %v858 = vsub.f32 1.5, %v857
          %v859 = vmul.f32 %v854, %v858
          %vm860 = vweird.f32 %v832
          %vm861 = vweird.f32 %v854
          %vm862 = vmor %vm860, %vm861
          %v863 = vsel %vm862, %v854, %v859
          %v864 = vrsqrt.pop %v833
          %v865 = vmul.f32 %v864, %v833
          %v866 = vmul.f32 %v865, %v864
          %v867 = vmul.f32 0.5, %v866
          %v868 = vsub.f32 1.5, %v867
          %v869 = vmul.f32 %v864, %v868
          %vm870 = vweird.f32 %v833
          %vm871 = vweird.f32 %v864
          %vm872 = vmor %vm870, %vm871
          %v873 = vsel %vm872, %v864, %v869
          %v878 = vrot.slane %v853, 7
          %v879 = vrot.slane %v863, 6
          %v880 = vrot.slane %v873, 5
          %vm881 = vcmask 1040384
          %v882 = vsel %vm881, %v843, %v878
          %vm883 = vcmask 1042434
          %v884 = vsel %vm883, %v879, %v880
          %vm885 = vcmask 1041408
          %v886 = vsel %vm885, %v882, %v884
          %v888 = vmul.f32 %v757, %v886
          %v890 = vperm.slane %v888, 0
          %v891 = vperm.slane %v888, 1
          %v892 = vperm.slane %v888, 2
          %v893 = vperm.slane %v888, 3
          %v898 = vmul.f32 %v794, %v890
          %v899 = vmul.f32 %v795, %v891
          %v900 = vmul.f32 %v796, %v892
          %v901 = vmul.f32 %v797, %v893
          %v903 = vperm.slane %v758, 0
          %v904 = vperm.slane %v758, 1
          %v905 = vperm.slane %v758, 2
          %v906 = vperm.slane %v758, 3
          %v911 = vadd.f32 %v898, %v903
          %v912 = vadd.f32 %v899, %v904
          %v913 = vadd.f32 %v900, %v905
          %v914 = vadd.f32 %v901, %v906
          %v915 = vmax.f32 %v911, 0.0
          %v916 = vmax.f32 %v912, 0.0
          %v917 = vmax.f32 %v913, 0.0
          %v918 = vmax.f32 %v914, 0.0
          %v919 = vpack.c.bf16 %v916, %v915
          %v920 = vpack.c.bf16 %v918, %v917
          %921 = vst [vmem:[#allocation2] sm:$0xff] %v919
          %922 = vst [vmem:[#allocation2 + $0x8] sm:$0xff] %v920
          %923 = vst [vmem:[#allocation21] sm:$0xff] 0.0
        $region112: #{tpu_custom_call.1} parent=63 // pred_fallthru
          _
        %v924 = vld [vmem:[#allocation2] sm:$0xff]
        %v925 = vld [vmem:[#allocation2 + $0x8] sm:$0xff]
        %v926 = vld [vmem:[%s537] sm:$0xff]
        %v927 = vld [vmem:[%s537 + $0x8] sm:$0xff]
        %v928 = vld [vmem:[%s537 + $0x10] sm:$0xff]
        %v929 = vld [vmem:[%s537 + $0x18] sm:$0xff]
        %v930 = vld [vmem:[%s537 + $0x20] sm:$0xff]
        %v931 = vld [vmem:[%s537 + $0x28] sm:$0xff]
        %v932 = vld [vmem:[%s537 + $0x30] sm:$0xff]
        %v933 = vld [vmem:[%s537 + $0x38] sm:$0xff]
        %v934 = vld [vmem:[%s537 + $0x40] sm:$0xff]
        %v935 = vld [vmem:[%s537 + $0x48] sm:$0xff]
        %v936 = vld [vmem:[%s537 + $0x50] sm:$0xff]
        %v937 = vld [vmem:[%s537 + $0x58] sm:$0xff]
        %v938 = vld [vmem:[%s537 + $0x60] sm:$0xff]
        %v939 = vld [vmem:[%s537 + $0x68] sm:$0xff]
        %v940 = vld [vmem:[%s537 + $0x70] sm:$0xff]
        %v941 = vld [vmem:[%s537 + $0x78] sm:$0xff]
        %v942 = vld [vmem:[%s537 + $0x80] sm:$0xff]
        %v943 = vld [vmem:[%s537 + $0x88] sm:$0xff]
        %v944 = vld [vmem:[%s537 + $0x90] sm:$0xff]
        %v945 = vld [vmem:[%s537 + $0x98] sm:$0xff]
        %v946 = vld [vmem:[%s537 + $0xa0] sm:$0xff]
        %v947 = vld [vmem:[%s537 + $0xa8] sm:$0xff]
        %v948 = vld [vmem:[%s537 + $0xb0] sm:$0xff]
        %v949 = vld [vmem:[%s537 + $0xb8] sm:$0xff]
        %v950 = vld [vmem:[%s537 + $0xc0] sm:$0xff]
        %v951 = vld [vmem:[%s537 + $0xc8] sm:$0xff]
        %v952 = vld [vmem:[%s537 + $0xd0] sm:$0xff]
        %v953 = vld [vmem:[%s537 + $0xd8] sm:$0xff]
        %v954 = vld [vmem:[%s537 + $0xe0] sm:$0xff]
        %v955 = vld [vmem:[%s537 + $0xe8] sm:$0xff]
        %v956 = vld [vmem:[%s537 + $0xf0] sm:$0xff]
        %v957 = vld [vmem:[%s537 + $0xf8] sm:$0xff]
        %v958 = vld [vmem:[%s537 + $0x100] sm:$0xff]
        %v959 = vld [vmem:[%s537 + $0x108] sm:$0xff]
        %v960 = vld [vmem:[%s537 + $0x110] sm:$0xff]
        %v961 = vld [vmem:[%s537 + $0x118] sm:$0xff]
        %v962 = vld [vmem:[%s537 + $0x120] sm:$0xff]
        %v963 = vld [vmem:[%s537 + $0x128] sm:$0xff]
        %v964 = vld [vmem:[%s537 + $0x130] sm:$0xff]
        %v965 = vld [vmem:[%s537 + $0x138] sm:$0xff]
        %v966 = vld [vmem:[%s537 + $0x140] sm:$0xff]
        %v967 = vld [vmem:[%s537 + $0x148] sm:$0xff]
        %v968 = vld [vmem:[%s537 + $0x150] sm:$0xff]
        %v969 = vld [vmem:[%s537 + $0x158] sm:$0xff]
        %v970 = vld [vmem:[%s537 + $0x160] sm:$0xff]
        %v971 = vld [vmem:[%s537 + $0x168] sm:$0xff]
        %v972 = vld [vmem:[%s537 + $0x170] sm:$0xff]
        %v973 = vld [vmem:[%s537 + $0x178] sm:$0xff]
        %v974 = vld [vmem:[%s537 + $0x180] sm:$0xff]
        %v975 = vld [vmem:[%s537 + $0x188] sm:$0xff]
        %v976 = vld [vmem:[%s537 + $0x190] sm:$0xff]
        %v977 = vld [vmem:[%s537 + $0x198] sm:$0xff]
        %v978 = vld [vmem:[%s537 + $0x1a0] sm:$0xff]
        %v979 = vld [vmem:[%s537 + $0x1a8] sm:$0xff]
        %v980 = vld [vmem:[%s537 + $0x1b0] sm:$0xff]
        %v981 = vld [vmem:[%s537 + $0x1b8] sm:$0xff]
        %v982 = vld [vmem:[%s537 + $0x1c0] sm:$0xff]
        %v983 = vld [vmem:[%s537 + $0x1c8] sm:$0xff]
        %v984 = vld [vmem:[%s537 + $0x1d0] sm:$0xff]
        %v985 = vld [vmem:[%s537 + $0x1d8] sm:$0xff]
        %v986 = vld [vmem:[%s537 + $0x1e0] sm:$0xff]
        %v987 = vld [vmem:[%s537 + $0x1e8] sm:$0xff]
        %v988 = vld [vmem:[%s537 + $0x1f0] sm:$0xff]
        %v989 = vld [vmem:[%s537 + $0x1f8] sm:$0xff]
        %v990 = vld [vmem:[%s537 + $0x200] sm:$0xff]
        %v991 = vld [vmem:[%s537 + $0x208] sm:$0xff]
        %v992 = vld [vmem:[%s537 + $0x210] sm:$0xff]
        %v993 = vld [vmem:[%s537 + $0x218] sm:$0xff]
        %v994 = vld [vmem:[%s537 + $0x220] sm:$0xff]
        %v995 = vld [vmem:[%s537 + $0x228] sm:$0xff]
        %v996 = vld [vmem:[%s537 + $0x230] sm:$0xff]
        %v997 = vld [vmem:[%s537 + $0x238] sm:$0xff]
        %v998 = vld [vmem:[%s537 + $0x240] sm:$0xff]
        %v999 = vld [vmem:[%s537 + $0x248] sm:$0xff]
        %v1000 = vld [vmem:[%s537 + $0x250] sm:$0xff]
        %v1001 = vld [vmem:[%s537 + $0x258] sm:$0xff]
        %v1002 = vld [vmem:[%s537 + $0x260] sm:$0xff]
        %v1003 = vld [vmem:[%s537 + $0x268] sm:$0xff]
        %v1004 = vld [vmem:[%s537 + $0x270] sm:$0xff]
        %v1005 = vld [vmem:[%s537 + $0x278] sm:$0xff]
        %v1006 = vld [vmem:[%s537 + $0x280] sm:$0xff]
        %v1007 = vld [vmem:[%s537 + $0x288] sm:$0xff]
        %v1008 = vld [vmem:[%s537 + $0x290] sm:$0xff]
        %v1009 = vld [vmem:[%s537 + $0x298] sm:$0xff]
        %v1010 = vld [vmem:[%s537 + $0x2a0] sm:$0xff]
        %v1011 = vld [vmem:[%s537 + $0x2a8] sm:$0xff]
        %v1012 = vld [vmem:[%s537 + $0x2b0] sm:$0xff]
        %v1013 = vld [vmem:[%s537 + $0x2b8] sm:$0xff]
        %v1014 = vld [vmem:[%s537 + $0x2c0] sm:$0xff]
        %v1015 = vld [vmem:[%s537 + $0x2c8] sm:$0xff]
        %v1016 = vld [vmem:[%s537 + $0x2d0] sm:$0xff]
        %v1017 = vld [vmem:[%s537 + $0x2d8] sm:$0xff]
        %v1018 = vld [vmem:[%s537 + $0x2e0] sm:$0xff]
        %v1019 = vld [vmem:[%s537 + $0x2e8] sm:$0xff]
        %v1020 = vld [vmem:[%s537 + $0x2f0] sm:$0xff]
        %v1021 = vld [vmem:[%s537 + $0x2f8] sm:$0xff]
        %v1022 = vld [vmem:[%s537 + $0x300] sm:$0xff]
        %v1023 = vld [vmem:[%s537 + $0x308] sm:$0xff]
        %v1024 = vld [vmem:[%s537 + $0x310] sm:$0xff]
        %v1025 = vld [vmem:[%s537 + $0x318] sm:$0xff]
        %v1026 = vld [vmem:[%s537 + $0x320] sm:$0xff]
        %v1027 = vld [vmem:[%s537 + $0x328] sm:$0xff]
        %v1028 = vld [vmem:[%s537 + $0x330] sm:$0xff]
        %v1029 = vld [vmem:[%s537 + $0x338] sm:$0xff]
        %v1030 = vld [vmem:[%s537 + $0x340] sm:$0xff]
        %v1031 = vld [vmem:[%s537 + $0x348] sm:$0xff]
        %v1032 = vld [vmem:[%s537 + $0x350] sm:$0xff]
        %v1033 = vld [vmem:[%s537 + $0x358] sm:$0xff]
        %v1034 = vld [vmem:[%s537 + $0x360] sm:$0xff]
        %v1035 = vld [vmem:[%s537 + $0x368] sm:$0xff]
        %v1036 = vld [vmem:[%s537 + $0x370] sm:$0xff]
        %v1037 = vld [vmem:[%s537 + $0x378] sm:$0xff]
        %v1038 = vld [vmem:[%s537 + $0x380] sm:$0xff]
        %v1039 = vld [vmem:[%s537 + $0x388] sm:$0xff]
        %v1040 = vld [vmem:[%s537 + $0x390] sm:$0xff]
        %v1041 = vld [vmem:[%s537 + $0x398] sm:$0xff]
        %v1042 = vld [vmem:[%s537 + $0x3a0] sm:$0xff]
        %v1043 = vld [vmem:[%s537 + $0x3a8] sm:$0xff]
        %v1044 = vld [vmem:[%s537 + $0x3b0] sm:$0xff]
        %v1045 = vld [vmem:[%s537 + $0x3b8] sm:$0xff]
        %v1046 = vld [vmem:[%s537 + $0x3c0] sm:$0xff]
        %v1047 = vld [vmem:[%s537 + $0x3c8] sm:$0xff]
        %v1048 = vld [vmem:[%s537 + $0x3d0] sm:$0xff]
        %v1049 = vld [vmem:[%s537 + $0x3d8] sm:$0xff]
        %v1050 = vld [vmem:[%s537 + $0x3e0] sm:$0xff]
        %v1051 = vld [vmem:[%s537 + $0x3e8] sm:$0xff]
        %v1052 = vld [vmem:[%s537 + $0x3f0] sm:$0xff]
        %v1053 = vld [vmem:[%s537 + $0x3f8] sm:$0xff]
        %v1054 = vld [vmem:[%s537 + $0x400] sm:$0xff]
        %v1055 = vld [vmem:[%s537 + $0x408] sm:$0xff]
        %v1056 = vld [vmem:[%s537 + $0x410] sm:$0xff]
        %v1057 = vld [vmem:[%s537 + $0x418] sm:$0xff]
        %v1058 = vld [vmem:[%s537 + $0x420] sm:$0xff]
        %v1059 = vld [vmem:[%s537 + $0x428] sm:$0xff]
        %v1060 = vld [vmem:[%s537 + $0x430] sm:$0xff]
        %v1061 = vld [vmem:[%s537 + $0x438] sm:$0xff]
        %v1062 = vld [vmem:[%s537 + $0x440] sm:$0xff]
        %v1063 = vld [vmem:[%s537 + $0x448] sm:$0xff]
        %v1064 = vld [vmem:[%s537 + $0x450] sm:$0xff]
        %v1065 = vld [vmem:[%s537 + $0x458] sm:$0xff]
        %v1066 = vld [vmem:[%s537 + $0x460] sm:$0xff]
        %v1067 = vld [vmem:[%s537 + $0x468] sm:$0xff]
        %v1068 = vld [vmem:[%s537 + $0x470] sm:$0xff]
        %v1069 = vld [vmem:[%s537 + $0x478] sm:$0xff]
        %v1070 = vld [vmem:[%s537 + $0x480] sm:$0xff]
        %v1071 = vld [vmem:[%s537 + $0x488] sm:$0xff]
        %v1072 = vld [vmem:[%s537 + $0x490] sm:$0xff]
        %v1073 = vld [vmem:[%s537 + $0x498] sm:$0xff]
        %v1074 = vld [vmem:[%s537 + $0x4a0] sm:$0xff]
        %v1075 = vld [vmem:[%s537 + $0x4a8] sm:$0xff]
        %v1076 = vld [vmem:[%s537 + $0x4b0] sm:$0xff]
        %v1077 = vld [vmem:[%s537 + $0x4b8] sm:$0xff]
        %v1078 = vld [vmem:[%s537 + $0x4c0] sm:$0xff]
        %v1079 = vld [vmem:[%s537 + $0x4c8] sm:$0xff]
        %v1080 = vld [vmem:[%s537 + $0x4d0] sm:$0xff]
        %v1081 = vld [vmem:[%s537 + $0x4d8] sm:$0xff]
        %v1082 = vld [vmem:[%s537 + $0x4e0] sm:$0xff]
        %v1083 = vld [vmem:[%s537 + $0x4e8] sm:$0xff]
        %v1084 = vld [vmem:[%s537 + $0x4f0] sm:$0xff]
        %v1085 = vld [vmem:[%s537 + $0x4f8] sm:$0xff]
        %v1086 = vld [vmem:[%s537 + $0x500] sm:$0xff]
        %v1087 = vld [vmem:[%s537 + $0x508] sm:$0xff]
        %v1088 = vld [vmem:[%s537 + $0x510] sm:$0xff]
        %v1089 = vld [vmem:[%s537 + $0x518] sm:$0xff]
        %v1090 = vld [vmem:[%s537 + $0x520] sm:$0xff]
        %v1091 = vld [vmem:[%s537 + $0x528] sm:$0xff]
        %v1092 = vld [vmem:[%s537 + $0x530] sm:$0xff]
        %v1093 = vld [vmem:[%s537 + $0x538] sm:$0xff]
        %v1094 = vld [vmem:[%s537 + $0x540] sm:$0xff]
        %v1095 = vld [vmem:[%s537 + $0x548] sm:$0xff]
        %v1096 = vld [vmem:[%s537 + $0x550] sm:$0xff]
        %v1097 = vld [vmem:[%s537 + $0x558] sm:$0xff]
        %v1098 = vld [vmem:[%s537 + $0x560] sm:$0xff]
        %v1099 = vld [vmem:[%s537 + $0x568] sm:$0xff]
        %v1100 = vld [vmem:[%s537 + $0x570] sm:$0xff]
        %v1101 = vld [vmem:[%s537 + $0x578] sm:$0xff]
        %v1102 = vld [vmem:[%s537 + $0x580] sm:$0xff]
        %v1103 = vld [vmem:[%s537 + $0x588] sm:$0xff]
        %v1104 = vld [vmem:[%s537 + $0x590] sm:$0xff]
        %v1105 = vld [vmem:[%s537 + $0x598] sm:$0xff]
        %v1106 = vld [vmem:[%s537 + $0x5a0] sm:$0xff]
        %v1107 = vld [vmem:[%s537 + $0x5a8] sm:$0xff]
        %v1108 = vld [vmem:[%s537 + $0x5b0] sm:$0xff]
        %v1109 = vld [vmem:[%s537 + $0x5b8] sm:$0xff]
        %v1110 = vld [vmem:[%s537 + $0x5c0] sm:$0xff]
        %v1111 = vld [vmem:[%s537 + $0x5c8] sm:$0xff]
        %v1112 = vld [vmem:[%s537 + $0x5d0] sm:$0xff]
        %v1113 = vld [vmem:[%s537 + $0x5d8] sm:$0xff]
        %v1114 = vld [vmem:[%s537 + $0x5e0] sm:$0xff]
        %v1115 = vld [vmem:[%s537 + $0x5e8] sm:$0xff]
        %v1116 = vld [vmem:[%s537 + $0x5f0] sm:$0xff]
        %v1117 = vld [vmem:[%s537 + $0x5f8] sm:$0xff]
        %v1118 = vld [vmem:[%s537 + $0x600] sm:$0xff]
        %v1119 = vld [vmem:[%s537 + $0x608] sm:$0xff]
        %v1120 = vld [vmem:[%s537 + $0x610] sm:$0xff]
        %v1121 = vld [vmem:[%s537 + $0x618] sm:$0xff]
        %v1122 = vld [vmem:[%s537 + $0x620] sm:$0xff]
        %v1123 = vld [vmem:[%s537 + $0x628] sm:$0xff]
        %v1124 = vld [vmem:[%s537 + $0x630] sm:$0xff]
        %v1125 = vld [vmem:[%s537 + $0x638] sm:$0xff]
        %v1126 = vld [vmem:[%s537 + $0x640] sm:$0xff]
        %v1127 = vld [vmem:[%s537 + $0x648] sm:$0xff]
        %v1128 = vld [vmem:[%s537 + $0x650] sm:$0xff]
        %v1129 = vld [vmem:[%s537 + $0x658] sm:$0xff]
        %v1130 = vld [vmem:[%s537 + $0x660] sm:$0xff]
        %v1131 = vld [vmem:[%s537 + $0x668] sm:$0xff]
        %v1132 = vld [vmem:[%s537 + $0x670] sm:$0xff]
        %v1133 = vld [vmem:[%s537 + $0x678] sm:$0xff]
        %v1134 = vld [vmem:[%s537 + $0x680] sm:$0xff]
        %v1135 = vld [vmem:[%s537 + $0x688] sm:$0xff]
        %v1136 = vld [vmem:[%s537 + $0x690] sm:$0xff]
        %v1137 = vld [vmem:[%s537 + $0x698] sm:$0xff]
        %v1138 = vld [vmem:[%s537 + $0x6a0] sm:$0xff]
        %v1139 = vld [vmem:[%s537 + $0x6a8] sm:$0xff]
        %v1140 = vld [vmem:[%s537 + $0x6b0] sm:$0xff]
        %v1141 = vld [vmem:[%s537 + $0x6b8] sm:$0xff]
        %v1142 = vld [vmem:[%s537 + $0x6c0] sm:$0xff]
        %v1143 = vld [vmem:[%s537 + $0x6c8] sm:$0xff]
        %v1144 = vld [vmem:[%s537 + $0x6d0] sm:$0xff]
        %v1145 = vld [vmem:[%s537 + $0x6d8] sm:$0xff]
        %v1146 = vld [vmem:[%s537 + $0x6e0] sm:$0xff]
        %v1147 = vld [vmem:[%s537 + $0x6e8] sm:$0xff]
        %v1148 = vld [vmem:[%s537 + $0x6f0] sm:$0xff]
        %v1149 = vld [vmem:[%s537 + $0x6f8] sm:$0xff]
        %v1150 = vld [vmem:[%s537 + $0x700] sm:$0xff]
        %v1151 = vld [vmem:[%s537 + $0x708] sm:$0xff]
        %v1152 = vld [vmem:[%s537 + $0x710] sm:$0xff]
        %v1153 = vld [vmem:[%s537 + $0x718] sm:$0xff]
        %v1154 = vld [vmem:[%s537 + $0x720] sm:$0xff]
        %v1155 = vld [vmem:[%s537 + $0x728] sm:$0xff]
        %v1156 = vld [vmem:[%s537 + $0x730] sm:$0xff]
        %v1157 = vld [vmem:[%s537 + $0x738] sm:$0xff]
        %v1158 = vld [vmem:[%s537 + $0x740] sm:$0xff]
        %v1159 = vld [vmem:[%s537 + $0x748] sm:$0xff]
        %v1160 = vld [vmem:[%s537 + $0x750] sm:$0xff]
        %v1161 = vld [vmem:[%s537 + $0x758] sm:$0xff]
        %v1162 = vld [vmem:[%s537 + $0x760] sm:$0xff]
        %v1163 = vld [vmem:[%s537 + $0x768] sm:$0xff]
        %v1164 = vld [vmem:[%s537 + $0x770] sm:$0xff]
        %v1165 = vld [vmem:[%s537 + $0x778] sm:$0xff]
        %v1166 = vld [vmem:[%s537 + $0x780] sm:$0xff]
        %v1167 = vld [vmem:[%s537 + $0x788] sm:$0xff]
        %v1168 = vld [vmem:[%s537 + $0x790] sm:$0xff]
        %v1169 = vld [vmem:[%s537 + $0x798] sm:$0xff]
        %v1170 = vld [vmem:[%s537 + $0x7a0] sm:$0xff]
        %v1171 = vld [vmem:[%s537 + $0x7a8] sm:$0xff]
        %v1172 = vld [vmem:[%s537 + $0x7b0] sm:$0xff]
        %v1173 = vld [vmem:[%s537 + $0x7b8] sm:$0xff]
        %v1174 = vld [vmem:[%s537 + $0x7c0] sm:$0xff]
        %v1175 = vld [vmem:[%s537 + $0x7c8] sm:$0xff]
        %v1176 = vld [vmem:[%s537 + $0x7d0] sm:$0xff]
        %v1177 = vld [vmem:[%s537 + $0x7d8] sm:$0xff]
        %v1178 = vld [vmem:[%s537 + $0x7e0] sm:$0xff]
        %v1179 = vld [vmem:[%s537 + $0x7e8] sm:$0xff]
        %v1180 = vld [vmem:[%s537 + $0x7f0] sm:$0xff]
        %v1181 = vld [vmem:[%s537 + $0x7f8] sm:$0xff]
        %v1182 = vld [vmem:[%s537 + $0x800] sm:$0xff]
        %v1183 = vld [vmem:[%s537 + $0x808] sm:$0xff]
        %v1184 = vld [vmem:[%s537 + $0x810] sm:$0xff]
        %v1185 = vld [vmem:[%s537 + $0x818] sm:$0xff]
        %v1186 = vld [vmem:[%s537 + $0x820] sm:$0xff]
        %v1187 = vld [vmem:[%s537 + $0x828] sm:$0xff]
        %v1188 = vld [vmem:[%s537 + $0x830] sm:$0xff]
        %v1189 = vld [vmem:[%s537 + $0x838] sm:$0xff]
        %v1190 = vld [vmem:[%s537 + $0x840] sm:$0xff]
        %v1191 = vld [vmem:[%s537 + $0x848] sm:$0xff]
        %v1192 = vld [vmem:[%s537 + $0x850] sm:$0xff]
        %v1193 = vld [vmem:[%s537 + $0x858] sm:$0xff]
        %v1194 = vld [vmem:[%s537 + $0x860] sm:$0xff]
        %v1195 = vld [vmem:[%s537 + $0x868] sm:$0xff]
        %v1196 = vld [vmem:[%s537 + $0x870] sm:$0xff]
        %v1197 = vld [vmem:[%s537 + $0x878] sm:$0xff]
        %v1198 = vld [vmem:[%s537 + $0x880] sm:$0xff]
        %v1199 = vld [vmem:[%s537 + $0x888] sm:$0xff]
        %v1200 = vld [vmem:[%s537 + $0x890] sm:$0xff]
        %v1201 = vld [vmem:[%s537 + $0x898] sm:$0xff]
        %v1202 = vld [vmem:[%s537 + $0x8a0] sm:$0xff]
        %v1203 = vld [vmem:[%s537 + $0x8a8] sm:$0xff]
        %v1204 = vld [vmem:[%s537 + $0x8b0] sm:$0xff]
        %v1205 = vld [vmem:[%s537 + $0x8b8] sm:$0xff]
        %v1206 = vld [vmem:[%s537 + $0x8c0] sm:$0xff]
        %v1207 = vld [vmem:[%s537 + $0x8c8] sm:$0xff]
        %v1208 = vld [vmem:[%s537 + $0x8d0] sm:$0xff]
        %v1209 = vld [vmem:[%s537 + $0x8d8] sm:$0xff]
        %v1210 = vld [vmem:[%s537 + $0x8e0] sm:$0xff]
        %v1211 = vld [vmem:[%s537 + $0x8e8] sm:$0xff]
        %v1212 = vld [vmem:[%s537 + $0x8f0] sm:$0xff]
        %v1213 = vld [vmem:[%s537 + $0x8f8] sm:$0xff]
        %v1214 = vld [vmem:[%s537 + $0x900] sm:$0xff]
        %v1215 = vld [vmem:[%s537 + $0x908] sm:$0xff]
        %v1216 = vld [vmem:[%s537 + $0x910] sm:$0xff]
        %v1217 = vld [vmem:[%s537 + $0x918] sm:$0xff]
        %v1218 = vld [vmem:[%s537 + $0x920] sm:$0xff]
        %v1219 = vld [vmem:[%s537 + $0x928] sm:$0xff]
        %v1220 = vld [vmem:[%s537 + $0x930] sm:$0xff]
        %v1221 = vld [vmem:[%s537 + $0x938] sm:$0xff]
        %v1222 = vld [vmem:[%s537 + $0x940] sm:$0xff]
        %v1223 = vld [vmem:[%s537 + $0x948] sm:$0xff]
        %v1224 = vld [vmem:[%s537 + $0x950] sm:$0xff]
        %v1225 = vld [vmem:[%s537 + $0x958] sm:$0xff]
        %v1226 = vld [vmem:[%s537 + $0x960] sm:$0xff]
        %v1227 = vld [vmem:[%s537 + $0x968] sm:$0xff]
        %v1228 = vld [vmem:[%s537 + $0x970] sm:$0xff]
        %v1229 = vld [vmem:[%s537 + $0x978] sm:$0xff]
        %v1230 = vld [vmem:[%s537 + $0x980] sm:$0xff]
        %v1231 = vld [vmem:[%s537 + $0x988] sm:$0xff]
        %v1232 = vld [vmem:[%s537 + $0x990] sm:$0xff]
        %v1233 = vld [vmem:[%s537 + $0x998] sm:$0xff]
        %v1234 = vld [vmem:[%s537 + $0x9a0] sm:$0xff]
        %v1235 = vld [vmem:[%s537 + $0x9a8] sm:$0xff]
        %v1236 = vld [vmem:[%s537 + $0x9b0] sm:$0xff]
        %v1237 = vld [vmem:[%s537 + $0x9b8] sm:$0xff]
        %v1238 = vld [vmem:[%s537 + $0x9c0] sm:$0xff]
        %v1239 = vld [vmem:[%s537 + $0x9c8] sm:$0xff]
        %v1240 = vld [vmem:[%s537 + $0x9d0] sm:$0xff]
        %v1241 = vld [vmem:[%s537 + $0x9d8] sm:$0xff]
        %v1242 = vld [vmem:[%s537 + $0x9e0] sm:$0xff]
        %v1243 = vld [vmem:[%s537 + $0x9e8] sm:$0xff]
        %v1244 = vld [vmem:[%s537 + $0x9f0] sm:$0xff]
        %v1245 = vld [vmem:[%s537 + $0x9f8] sm:$0xff]
        %v1246 = vld [vmem:[%s537 + $0xa00] sm:$0xff]
        %v1247 = vld [vmem:[%s537 + $0xa08] sm:$0xff]
        %v1248 = vld [vmem:[%s537 + $0xa10] sm:$0xff]
        %v1249 = vld [vmem:[%s537 + $0xa18] sm:$0xff]
        %v1250 = vld [vmem:[%s537 + $0xa20] sm:$0xff]
        %v1251 = vld [vmem:[%s537 + $0xa28] sm:$0xff]
        %v1252 = vld [vmem:[%s537 + $0xa30] sm:$0xff]
        %v1253 = vld [vmem:[%s537 + $0xa38] sm:$0xff]
        %v1254 = vld [vmem:[%s537 + $0xa40] sm:$0xff]
        %v1255 = vld [vmem:[%s537 + $0xa48] sm:$0xff]
        %v1256 = vld [vmem:[%s537 + $0xa50] sm:$0xff]
        %v1257 = vld [vmem:[%s537 + $0xa58] sm:$0xff]
        %v1258 = vld [vmem:[%s537 + $0xa60] sm:$0xff]
        %v1259 = vld [vmem:[%s537 + $0xa68] sm:$0xff]
        %v1260 = vld [vmem:[%s537 + $0xa70] sm:$0xff]
        %v1261 = vld [vmem:[%s537 + $0xa78] sm:$0xff]
        %v1262 = vld [vmem:[%s537 + $0xa80] sm:$0xff]
        %v1263 = vld [vmem:[%s537 + $0xa88] sm:$0xff]
        %v1264 = vld [vmem:[%s537 + $0xa90] sm:$0xff]
        %v1265 = vld [vmem:[%s537 + $0xa98] sm:$0xff]
        %v1266 = vld [vmem:[%s537 + $0xaa0] sm:$0xff]
        %v1267 = vld [vmem:[%s537 + $0xaa8] sm:$0xff]
        %v1268 = vld [vmem:[%s537 + $0xab0] sm:$0xff]
        %v1269 = vld [vmem:[%s537 + $0xab8] sm:$0xff]
        %v1270 = vld [vmem:[%s537 + $0xac0] sm:$0xff]
        %v1271 = vld [vmem:[%s537 + $0xac8] sm:$0xff]
        %v1272 = vld [vmem:[%s537 + $0xad0] sm:$0xff]
        %v1273 = vld [vmem:[%s537 + $0xad8] sm:$0xff]
        %v1274 = vld [vmem:[%s537 + $0xae0] sm:$0xff]
        %v1275 = vld [vmem:[%s537 + $0xae8] sm:$0xff]
        %v1276 = vld [vmem:[%s537 + $0xaf0] sm:$0xff]
        %v1277 = vld [vmem:[%s537 + $0xaf8] sm:$0xff]
        %v1278 = vld [vmem:[%s537 + $0xb00] sm:$0xff]
        %v1279 = vld [vmem:[%s537 + $0xb08] sm:$0xff]
        %v1280 = vld [vmem:[%s537 + $0xb10] sm:$0xff]
        %v1281 = vld [vmem:[%s537 + $0xb18] sm:$0xff]
        %v1282 = vld [vmem:[%s537 + $0xb20] sm:$0xff]
        %v1283 = vld [vmem:[%s537 + $0xb28] sm:$0xff]
        %v1284 = vld [vmem:[%s537 + $0xb30] sm:$0xff]
        %v1285 = vld [vmem:[%s537 + $0xb38] sm:$0xff]
        %v1286 = vld [vmem:[%s537 + $0xb40] sm:$0xff]
        %v1287 = vld [vmem:[%s537 + $0xb48] sm:$0xff]
        %v1288 = vld [vmem:[%s537 + $0xb50] sm:$0xff]
        %v1289 = vld [vmem:[%s537 + $0xb58] sm:$0xff]
        %v1290 = vld [vmem:[%s537 + $0xb60] sm:$0xff]
        %v1291 = vld [vmem:[%s537 + $0xb68] sm:$0xff]
        %v1292 = vld [vmem:[%s537 + $0xb70] sm:$0xff]
        %v1293 = vld [vmem:[%s537 + $0xb78] sm:$0xff]
        %v1294 = vld [vmem:[%s537 + $0xb80] sm:$0xff]
        %v1295 = vld [vmem:[%s537 + $0xb88] sm:$0xff]
        %v1296 = vld [vmem:[%s537 + $0xb90] sm:$0xff]
        %v1297 = vld [vmem:[%s537 + $0xb98] sm:$0xff]
        %v1298 = vld [vmem:[%s537 + $0xba0] sm:$0xff]
        %v1299 = vld [vmem:[%s537 + $0xba8] sm:$0xff]
        %v1300 = vld [vmem:[%s537 + $0xbb0] sm:$0xff]
        %v1301 = vld [vmem:[%s537 + $0xbb8] sm:$0xff]
        %v1302 = vld [vmem:[%s537 + $0xbc0] sm:$0xff]
        %v1303 = vld [vmem:[%s537 + $0xbc8] sm:$0xff]
        %v1304 = vld [vmem:[%s537 + $0xbd0] sm:$0xff]
        %v1305 = vld [vmem:[%s537 + $0xbd8] sm:$0xff]
        %v1306 = vld [vmem:[%s537 + $0xbe0] sm:$0xff]
        %v1307 = vld [vmem:[%s537 + $0xbe8] sm:$0xff]
        %v1308 = vld [vmem:[%s537 + $0xbf0] sm:$0xff]
        %v1309 = vld [vmem:[%s537 + $0xbf8] sm:$0xff]
        %v1310 = vld [vmem:[%s537 + $0xc00] sm:$0xff]
        %v1311 = vld [vmem:[%s537 + $0xc08] sm:$0xff]
        %v1312 = vld [vmem:[%s537 + $0xc10] sm:$0xff]
        %v1313 = vld [vmem:[%s537 + $0xc18] sm:$0xff]
        %v1314 = vld [vmem:[%s537 + $0xc20] sm:$0xff]
        %v1315 = vld [vmem:[%s537 + $0xc28] sm:$0xff]
        %v1316 = vld [vmem:[%s537 + $0xc30] sm:$0xff]
        %v1317 = vld [vmem:[%s537 + $0xc38] sm:$0xff]
        %v1318 = vld [vmem:[%s537 + $0xc40] sm:$0xff]
        %v1319 = vld [vmem:[%s537 + $0xc48] sm:$0xff]
        %v1320 = vld [vmem:[%s537 + $0xc50] sm:$0xff]
        %v1321 = vld [vmem:[%s537 + $0xc58] sm:$0xff]
        %v1322 = vld [vmem:[%s537 + $0xc60] sm:$0xff]
        %v1323 = vld [vmem:[%s537 + $0xc68] sm:$0xff]
        %v1324 = vld [vmem:[%s537 + $0xc70] sm:$0xff]
        %v1325 = vld [vmem:[%s537 + $0xc78] sm:$0xff]
        %v1326 = vld [vmem:[%s537 + $0xc80] sm:$0xff]
        %v1327 = vld [vmem:[%s537 + $0xc88] sm:$0xff]
        %v1328 = vld [vmem:[%s537 + $0xc90] sm:$0xff]
        %v1329 = vld [vmem:[%s537 + $0xc98] sm:$0xff]
        %v1330 = vld [vmem:[%s537 + $0xca0] sm:$0xff]
        %v1331 = vld [vmem:[%s537 + $0xca8] sm:$0xff]
        %v1332 = vld [vmem:[%s537 + $0xcb0] sm:$0xff]
        %v1333 = vld [vmem:[%s537 + $0xcb8] sm:$0xff]
        %v1334 = vld [vmem:[%s537 + $0xcc0] sm:$0xff]
        %v1335 = vld [vmem:[%s537 + $0xcc8] sm:$0xff]
        %v1336 = vld [vmem:[%s537 + $0xcd0] sm:$0xff]
        %v1337 = vld [vmem:[%s537 + $0xcd8] sm:$0xff]
        %v1338 = vld [vmem:[%s537 + $0xce0] sm:$0xff]
        %v1339 = vld [vmem:[%s537 + $0xce8] sm:$0xff]
        %v1340 = vld [vmem:[%s537 + $0xcf0] sm:$0xff]
        %v1341 = vld [vmem:[%s537 + $0xcf8] sm:$0xff]
        %v1342 = vld [vmem:[%s537 + $0xd00] sm:$0xff]
        %v1343 = vld [vmem:[%s537 + $0xd08] sm:$0xff]
        %v1344 = vld [vmem:[%s537 + $0xd10] sm:$0xff]
        %v1345 = vld [vmem:[%s537 + $0xd18] sm:$0xff]
        %v1346 = vld [vmem:[%s537 + $0xd20] sm:$0xff]
        %v1347 = vld [vmem:[%s537 + $0xd28] sm:$0xff]
        %v1348 = vld [vmem:[%s537 + $0xd30] sm:$0xff]
        %v1349 = vld [vmem:[%s537 + $0xd38] sm:$0xff]
        %v1350 = vld [vmem:[%s537 + $0xd40] sm:$0xff]
        %v1351 = vld [vmem:[%s537 + $0xd48] sm:$0xff]
        %v1352 = vld [vmem:[%s537 + $0xd50] sm:$0xff]
        %v1353 = vld [vmem:[%s537 + $0xd58] sm:$0xff]
        %v1354 = vld [vmem:[%s537 + $0xd60] sm:$0xff]
        %v1355 = vld [vmem:[%s537 + $0xd68] sm:$0xff]
        %v1356 = vld [vmem:[%s537 + $0xd70] sm:$0xff]
        %v1357 = vld [vmem:[%s537 + $0xd78] sm:$0xff]
        %v1358 = vld [vmem:[%s537 + $0xd80] sm:$0xff]
        %v1359 = vld [vmem:[%s537 + $0xd88] sm:$0xff]
        %v1360 = vld [vmem:[%s537 + $0xd90] sm:$0xff]
        %v1361 = vld [vmem:[%s537 + $0xd98] sm:$0xff]
        %v1362 = vld [vmem:[%s537 + $0xda0] sm:$0xff]
        %v1363 = vld [vmem:[%s537 + $0xda8] sm:$0xff]
        %v1364 = vld [vmem:[%s537 + $0xdb0] sm:$0xff]
        %v1365 = vld [vmem:[%s537 + $0xdb8] sm:$0xff]
        %v1366 = vld [vmem:[%s537 + $0xdc0] sm:$0xff]
        %v1367 = vld [vmem:[%s537 + $0xdc8] sm:$0xff]
        %v1368 = vld [vmem:[%s537 + $0xdd0] sm:$0xff]
        %v1369 = vld [vmem:[%s537 + $0xdd8] sm:$0xff]
        %v1370 = vld [vmem:[%s537 + $0xde0] sm:$0xff]
        %v1371 = vld [vmem:[%s537 + $0xde8] sm:$0xff]
        %v1372 = vld [vmem:[%s537 + $0xdf0] sm:$0xff]
        %v1373 = vld [vmem:[%s537 + $0xdf8] sm:$0xff]
        %v1374 = vld [vmem:[%s537 + $0xe00] sm:$0xff]
        %v1375 = vld [vmem:[%s537 + $0xe08] sm:$0xff]
        %v1376 = vld [vmem:[%s537 + $0xe10] sm:$0xff]
        %v1377 = vld [vmem:[%s537 + $0xe18] sm:$0xff]
        %v1378 = vld [vmem:[%s537 + $0xe20] sm:$0xff]
        %v1379 = vld [vmem:[%s537 + $0xe28] sm:$0xff]
        %v1380 = vld [vmem:[%s537 + $0xe30] sm:$0xff]
        %v1381 = vld [vmem:[%s537 + $0xe38] sm:$0xff]
        %v1382 = vld [vmem:[%s537 + $0xe40] sm:$0xff]
        %v1383 = vld [vmem:[%s537 + $0xe48] sm:$0xff]
        %v1384 = vld [vmem:[%s537 + $0xe50] sm:$0xff]
        %v1385 = vld [vmem:[%s537 + $0xe58] sm:$0xff]
        %v1386 = vld [vmem:[%s537 + $0xe60] sm:$0xff]
        %v1387 = vld [vmem:[%s537 + $0xe68] sm:$0xff]
        %v1388 = vld [vmem:[%s537 + $0xe70] sm:$0xff]
        %v1389 = vld [vmem:[%s537 + $0xe78] sm:$0xff]
        %v1390 = vld [vmem:[%s537 + $0xe80] sm:$0xff]
        %v1391 = vld [vmem:[%s537 + $0xe88] sm:$0xff]
        %v1392 = vld [vmem:[%s537 + $0xe90] sm:$0xff]
        %v1393 = vld [vmem:[%s537 + $0xe98] sm:$0xff]
        %v1394 = vld [vmem:[%s537 + $0xea0] sm:$0xff]
        %v1395 = vld [vmem:[%s537 + $0xea8] sm:$0xff]
        %v1396 = vld [vmem:[%s537 + $0xeb0] sm:$0xff]
        %v1397 = vld [vmem:[%s537 + $0xeb8] sm:$0xff]
        %v1398 = vld [vmem:[%s537 + $0xec0] sm:$0xff]
        %v1399 = vld [vmem:[%s537 + $0xec8] sm:$0xff]
        %v1400 = vld [vmem:[%s537 + $0xed0] sm:$0xff]
        %v1401 = vld [vmem:[%s537 + $0xed8] sm:$0xff]
        %v1402 = vld [vmem:[%s537 + $0xee0] sm:$0xff]
        %v1403 = vld [vmem:[%s537 + $0xee8] sm:$0xff]
        %v1404 = vld [vmem:[%s537 + $0xef0] sm:$0xff]
        %v1405 = vld [vmem:[%s537 + $0xef8] sm:$0xff]
        %v1406 = vld [vmem:[%s537 + $0xf00] sm:$0xff]
        %v1407 = vld [vmem:[%s537 + $0xf08] sm:$0xff]
        %v1408 = vld [vmem:[%s537 + $0xf10] sm:$0xff]
        %v1409 = vld [vmem:[%s537 + $0xf18] sm:$0xff]
        %v1410 = vld [vmem:[%s537 + $0xf20] sm:$0xff]
        %v1411 = vld [vmem:[%s537 + $0xf28] sm:$0xff]
        %v1412 = vld [vmem:[%s537 + $0xf30] sm:$0xff]
        %v1413 = vld [vmem:[%s537 + $0xf38] sm:$0xff]
        %v1414 = vld [vmem:[%s537 + $0xf40] sm:$0xff]
        %v1415 = vld [vmem:[%s537 + $0xf48] sm:$0xff]
        %v1416 = vld [vmem:[%s537 + $0xf50] sm:$0xff]
        %v1417 = vld [vmem:[%s537 + $0xf58] sm:$0xff]
        %v1418 = vld [vmem:[%s537 + $0xf60] sm:$0xff]
        %v1419 = vld [vmem:[%s537 + $0xf68] sm:$0xff]
        %v1420 = vld [vmem:[%s537 + $0xf70] sm:$0xff]
        %v1421 = vld [vmem:[%s537 + $0xf78] sm:$0xff]
        %v1422 = vld [vmem:[%s537 + $0xf80] sm:$0xff]
        %v1423 = vld [vmem:[%s537 + $0xf88] sm:$0xff]
        %v1424 = vld [vmem:[%s537 + $0xf90] sm:$0xff]
        %v1425 = vld [vmem:[%s537 + $0xf98] sm:$0xff]
        %v1426 = vld [vmem:[%s537 + $0xfa0] sm:$0xff]
        %v1427 = vld [vmem:[%s537 + $0xfa8] sm:$0xff]
        %v1428 = vld [vmem:[%s537 + $0xfb0] sm:$0xff]
        %v1429 = vld [vmem:[%s537 + $0xfb8] sm:$0xff]
        %v1430 = vld [vmem:[%s537 + $0xfc0] sm:$0xff]
        %v1431 = vld [vmem:[%s537 + $0xfc8] sm:$0xff]
        %v1432 = vld [vmem:[%s537 + $0xfd0] sm:$0xff]
        %v1433 = vld [vmem:[%s537 + $0xfd8] sm:$0xff]
        %v1434 = vld [vmem:[%s537 + $0xfe0] sm:$0xff]
        %v1435 = vld [vmem:[%s537 + $0xfe8] sm:$0xff]
        %v1436 = vld [vmem:[%s537 + $0xff0] sm:$0xff]
        %v1437 = vld [vmem:[%s537 + $0xff8] sm:$0xff]
        %v1438 = vld [vmem:[%s547] sm:$0xff]
        %v1439 = vld [vmem:[%s547 + $0x8] sm:$0xff]
        %v1442 = vperm.slane %v1438, 0
        %v1443 = vperm.slane %v1438, 1
        %v1444 = vperm.slane %v1438, 2
        %v1445 = vperm.slane %v1438, 3
        %v1446 = vperm.slane %v1438, 4
        %v1447 = vperm.slane %v1438, 5
        %v1448 = vperm.slane %v1438, 6
        %v1449 = vperm.slane %v1438, 7
        %v1450 = vperm.slane %v1439, 0
        %v1451 = vperm.slane %v1439, 1
        %v1452 = vperm.slane %v1439, 2
        %v1453 = vperm.slane %v1439, 3
        %v1454 = vperm.slane %v1439, 4
        %v1455 = vperm.slane %v1439, 5
        %v1456 = vperm.slane %v1439, 6
        %v1457 = vperm.slane %v1439, 7
        %v1476 = vunpack.c.l.b16 %v924
        %v1477 = vunpack.c.h.b16 %v924
        %v1478 = vunpack.c.l.b16 %v925
        %v1479 = vunpack.c.h.b16 %v925
        %v1480 = vpack.c.b16 %v1476, %v1476
        %v1481 = vpack.c.b16 %v1477, %v1477
        %v1482 = vpack.c.b16 %v1478, %v1478
        %v1483 = vpack.c.b16 %v1479, %v1479
        %v2000 = vunpack.c.l.b16 %v926
        %v2001 = vunpack.c.h.b16 %v926
        %v2002 = vunpack.c.l.b16 %v927
        %v2003 = vunpack.c.h.b16 %v927
        %v2004 = vunpack.c.l.b16 %v928
        %v2005 = vunpack.c.h.b16 %v928
        %v2006 = vunpack.c.l.b16 %v929
        %v2007 = vunpack.c.h.b16 %v929
        %v2008 = vunpack.c.l.b16 %v930
        %v2009 = vunpack.c.h.b16 %v930
        %v2010 = vunpack.c.l.b16 %v931
        %v2011 = vunpack.c.h.b16 %v931
        %v2012 = vunpack.c.l.b16 %v932
        %v2013 = vunpack.c.h.b16 %v932
        %v2014 = vunpack.c.l.b16 %v933
        %v2015 = vunpack.c.h.b16 %v933
        %v2016 = vunpack.c.l.b16 %v934
        %v2017 = vunpack.c.h.b16 %v934
        %v2018 = vunpack.c.l.b16 %v935
        %v2019 = vunpack.c.h.b16 %v935
        %v2020 = vunpack.c.l.b16 %v936
        %v2021 = vunpack.c.h.b16 %v936
        %v2022 = vunpack.c.l.b16 %v937
        %v2023 = vunpack.c.h.b16 %v937
        %v2024 = vunpack.c.l.b16 %v938
        %v2025 = vunpack.c.h.b16 %v938
        %v2026 = vunpack.c.l.b16 %v939
        %v2027 = vunpack.c.h.b16 %v939
        %v2028 = vunpack.c.l.b16 %v940
        %v2029 = vunpack.c.h.b16 %v940
        %v2030 = vunpack.c.l.b16 %v941
        %v2031 = vunpack.c.h.b16 %v941
        %v2032 = vunpack.c.l.b16 %v942
        %v2033 = vunpack.c.h.b16 %v942
        %v2034 = vunpack.c.l.b16 %v943
        %v2035 = vunpack.c.h.b16 %v943
        %v2036 = vunpack.c.l.b16 %v944
        %v2037 = vunpack.c.h.b16 %v944
        %v2038 = vunpack.c.l.b16 %v945
        %v2039 = vunpack.c.h.b16 %v945
        %v2040 = vunpack.c.l.b16 %v946
        %v2041 = vunpack.c.h.b16 %v946
        %v2042 = vunpack.c.l.b16 %v947
        %v2043 = vunpack.c.h.b16 %v947
        %v2044 = vunpack.c.l.b16 %v948
        %v2045 = vunpack.c.h.b16 %v948
        %v2046 = vunpack.c.l.b16 %v949
        %v2047 = vunpack.c.h.b16 %v949
        %v2048 = vunpack.c.l.b16 %v950
        %v2049 = vunpack.c.h.b16 %v950
        %v2050 = vunpack.c.l.b16 %v951
        %v2051 = vunpack.c.h.b16 %v951
        %v2052 = vunpack.c.l.b16 %v952
        %v2053 = vunpack.c.h.b16 %v952
        %v2054 = vunpack.c.l.b16 %v953
        %v2055 = vunpack.c.h.b16 %v953
        %v2056 = vunpack.c.l.b16 %v954
        %v2057 = vunpack.c.h.b16 %v954
        %v2058 = vunpack.c.l.b16 %v955
        %v2059 = vunpack.c.h.b16 %v955
        %v2060 = vunpack.c.l.b16 %v956
        %v2061 = vunpack.c.h.b16 %v956
        %v2062 = vunpack.c.l.b16 %v957
        %v2063 = vunpack.c.h.b16 %v957
        %v2064 = vunpack.c.l.b16 %v958
        %v2065 = vunpack.c.h.b16 %v958
        %v2066 = vunpack.c.l.b16 %v959
        %v2067 = vunpack.c.h.b16 %v959
        %v2068 = vunpack.c.l.b16 %v960
        %v2069 = vunpack.c.h.b16 %v960
        %v2070 = vunpack.c.l.b16 %v961
        %v2071 = vunpack.c.h.b16 %v961
        %v2072 = vunpack.c.l.b16 %v962
        %v2073 = vunpack.c.h.b16 %v962
        %v2074 = vunpack.c.l.b16 %v963
        %v2075 = vunpack.c.h.b16 %v963
        %v2076 = vunpack.c.l.b16 %v964
        %v2077 = vunpack.c.h.b16 %v964
        %v2078 = vunpack.c.l.b16 %v965
        %v2079 = vunpack.c.h.b16 %v965
        %v2080 = vunpack.c.l.b16 %v966
        %v2081 = vunpack.c.h.b16 %v966
        %v2082 = vunpack.c.l.b16 %v967
        %v2083 = vunpack.c.h.b16 %v967
        %v2084 = vunpack.c.l.b16 %v968
        %v2085 = vunpack.c.h.b16 %v968
        %v2086 = vunpack.c.l.b16 %v969
        %v2087 = vunpack.c.h.b16 %v969
        %v2088 = vunpack.c.l.b16 %v970
        %v2089 = vunpack.c.h.b16 %v970
        %v2090 = vunpack.c.l.b16 %v971
        %v2091 = vunpack.c.h.b16 %v971
        %v2092 = vunpack.c.l.b16 %v972
        %v2093 = vunpack.c.h.b16 %v972
        %v2094 = vunpack.c.l.b16 %v973
        %v2095 = vunpack.c.h.b16 %v973
        %v2096 = vunpack.c.l.b16 %v974
        %v2097 = vunpack.c.h.b16 %v974
        %v2098 = vunpack.c.l.b16 %v975
        %v2099 = vunpack.c.h.b16 %v975
        %v2100 = vunpack.c.l.b16 %v976
        %v2101 = vunpack.c.h.b16 %v976
        %v2102 = vunpack.c.l.b16 %v977
        %v2103 = vunpack.c.h.b16 %v977
        %v2104 = vunpack.c.l.b16 %v978
        %v2105 = vunpack.c.h.b16 %v978
        %v2106 = vunpack.c.l.b16 %v979
        %v2107 = vunpack.c.h.b16 %v979
        %v2108 = vunpack.c.l.b16 %v980
        %v2109 = vunpack.c.h.b16 %v980
        %v2110 = vunpack.c.l.b16 %v981
        %v2111 = vunpack.c.h.b16 %v981
        %v2112 = vunpack.c.l.b16 %v982
        %v2113 = vunpack.c.h.b16 %v982
        %v2114 = vunpack.c.l.b16 %v983
        %v2115 = vunpack.c.h.b16 %v983
        %v2116 = vunpack.c.l.b16 %v984
        %v2117 = vunpack.c.h.b16 %v984
        %v2118 = vunpack.c.l.b16 %v985
        %v2119 = vunpack.c.h.b16 %v985
        %v2120 = vunpack.c.l.b16 %v986
        %v2121 = vunpack.c.h.b16 %v986
        %v2122 = vunpack.c.l.b16 %v987
        %v2123 = vunpack.c.h.b16 %v987
        %v2124 = vunpack.c.l.b16 %v988
        %v2125 = vunpack.c.h.b16 %v988
        %v2126 = vunpack.c.l.b16 %v989
        %v2127 = vunpack.c.h.b16 %v989
        %v2128 = vunpack.c.l.b16 %v990
        %v2129 = vunpack.c.h.b16 %v990
        %v2130 = vunpack.c.l.b16 %v991
        %v2131 = vunpack.c.h.b16 %v991
        %v2132 = vunpack.c.l.b16 %v992
        %v2133 = vunpack.c.h.b16 %v992
        %v2134 = vunpack.c.l.b16 %v993
        %v2135 = vunpack.c.h.b16 %v993
        %v2136 = vunpack.c.l.b16 %v994
        %v2137 = vunpack.c.h.b16 %v994
        %v2138 = vunpack.c.l.b16 %v995
        %v2139 = vunpack.c.h.b16 %v995
        %v2140 = vunpack.c.l.b16 %v996
        %v2141 = vunpack.c.h.b16 %v996
        %v2142 = vunpack.c.l.b16 %v997
        %v2143 = vunpack.c.h.b16 %v997
        %v2144 = vunpack.c.l.b16 %v998
        %v2145 = vunpack.c.h.b16 %v998
        %v2146 = vunpack.c.l.b16 %v999
        %v2147 = vunpack.c.h.b16 %v999
        %v2148 = vunpack.c.l.b16 %v1000
        %v2149 = vunpack.c.h.b16 %v1000
        %v2150 = vunpack.c.l.b16 %v1001
        %v2151 = vunpack.c.h.b16 %v1001
        %v2152 = vunpack.c.l.b16 %v1002
        %v2153 = vunpack.c.h.b16 %v1002
        %v2154 = vunpack.c.l.b16 %v1003
        %v2155 = vunpack.c.h.b16 %v1003
        %v2156 = vunpack.c.l.b16 %v1004
        %v2157 = vunpack.c.h.b16 %v1004
        %v2158 = vunpack.c.l.b16 %v1005
        %v2159 = vunpack.c.h.b16 %v1005
        %v2160 = vunpack.c.l.b16 %v1006
        %v2161 = vunpack.c.h.b16 %v1006
        %v2162 = vunpack.c.l.b16 %v1007
        %v2163 = vunpack.c.h.b16 %v1007
        %v2164 = vunpack.c.l.b16 %v1008
        %v2165 = vunpack.c.h.b16 %v1008
        %v2166 = vunpack.c.l.b16 %v1009
        %v2167 = vunpack.c.h.b16 %v1009
        %v2168 = vunpack.c.l.b16 %v1010
        %v2169 = vunpack.c.h.b16 %v1010
        %v2170 = vunpack.c.l.b16 %v1011
        %v2171 = vunpack.c.h.b16 %v1011
        %v2172 = vunpack.c.l.b16 %v1012
        %v2173 = vunpack.c.h.b16 %v1012
        %v2174 = vunpack.c.l.b16 %v1013
        %v2175 = vunpack.c.h.b16 %v1013
        %v2176 = vunpack.c.l.b16 %v1014
        %v2177 = vunpack.c.h.b16 %v1014
        %v2178 = vunpack.c.l.b16 %v1015
        %v2179 = vunpack.c.h.b16 %v1015
        %v2180 = vunpack.c.l.b16 %v1016
        %v2181 = vunpack.c.h.b16 %v1016
        %v2182 = vunpack.c.l.b16 %v1017
        %v2183 = vunpack.c.h.b16 %v1017
        %v2184 = vunpack.c.l.b16 %v1018
        %v2185 = vunpack.c.h.b16 %v1018
        %v2186 = vunpack.c.l.b16 %v1019
        %v2187 = vunpack.c.h.b16 %v1019
        %v2188 = vunpack.c.l.b16 %v1020
        %v2189 = vunpack.c.h.b16 %v1020
        %v2190 = vunpack.c.l.b16 %v1021
        %v2191 = vunpack.c.h.b16 %v1021
        %v2192 = vunpack.c.l.b16 %v1022
        %v2193 = vunpack.c.h.b16 %v1022
        %v2194 = vunpack.c.l.b16 %v1023
        %v2195 = vunpack.c.h.b16 %v1023
        %v2196 = vunpack.c.l.b16 %v1024
        %v2197 = vunpack.c.h.b16 %v1024
        %v2198 = vunpack.c.l.b16 %v1025
        %v2199 = vunpack.c.h.b16 %v1025
        %v2200 = vunpack.c.l.b16 %v1026
        %v2201 = vunpack.c.h.b16 %v1026
        %v2202 = vunpack.c.l.b16 %v1027
        %v2203 = vunpack.c.h.b16 %v1027
        %v2204 = vunpack.c.l.b16 %v1028
        %v2205 = vunpack.c.h.b16 %v1028
        %v2206 = vunpack.c.l.b16 %v1029
        %v2207 = vunpack.c.h.b16 %v1029
        %v2208 = vunpack.c.l.b16 %v1030
        %v2209 = vunpack.c.h.b16 %v1030
        %v2210 = vunpack.c.l.b16 %v1031
        %v2211 = vunpack.c.h.b16 %v1031
        %v2212 = vunpack.c.l.b16 %v1032
        %v2213 = vunpack.c.h.b16 %v1032
        %v2214 = vunpack.c.l.b16 %v1033
        %v2215 = vunpack.c.h.b16 %v1033
        %v2216 = vunpack.c.l.b16 %v1034
        %v2217 = vunpack.c.h.b16 %v1034
        %v2218 = vunpack.c.l.b16 %v1035
        %v2219 = vunpack.c.h.b16 %v1035
        %v2220 = vunpack.c.l.b16 %v1036
        %v2221 = vunpack.c.h.b16 %v1036
        %v2222 = vunpack.c.l.b16 %v1037
        %v2223 = vunpack.c.h.b16 %v1037
        %v2224 = vunpack.c.l.b16 %v1038
        %v2225 = vunpack.c.h.b16 %v1038
        %v2226 = vunpack.c.l.b16 %v1039
        %v2227 = vunpack.c.h.b16 %v1039
        %v2228 = vunpack.c.l.b16 %v1040
        %v2229 = vunpack.c.h.b16 %v1040
        %v2230 = vunpack.c.l.b16 %v1041
        %v2231 = vunpack.c.h.b16 %v1041
        %v2232 = vunpack.c.l.b16 %v1042
        %v2233 = vunpack.c.h.b16 %v1042
        %v2234 = vunpack.c.l.b16 %v1043
        %v2235 = vunpack.c.h.b16 %v1043
        %v2236 = vunpack.c.l.b16 %v1044
        %v2237 = vunpack.c.h.b16 %v1044
        %v2238 = vunpack.c.l.b16 %v1045
        %v2239 = vunpack.c.h.b16 %v1045
        %v2240 = vunpack.c.l.b16 %v1046
        %v2241 = vunpack.c.h.b16 %v1046
        %v2242 = vunpack.c.l.b16 %v1047
        %v2243 = vunpack.c.h.b16 %v1047
        %v2244 = vunpack.c.l.b16 %v1048
        %v2245 = vunpack.c.h.b16 %v1048
        %v2246 = vunpack.c.l.b16 %v1049
        %v2247 = vunpack.c.h.b16 %v1049
        %v2248 = vunpack.c.l.b16 %v1050
        %v2249 = vunpack.c.h.b16 %v1050
        %v2250 = vunpack.c.l.b16 %v1051
        %v2251 = vunpack.c.h.b16 %v1051
        %v2252 = vunpack.c.l.b16 %v1052
        %v2253 = vunpack.c.h.b16 %v1052
        %v2254 = vunpack.c.l.b16 %v1053
        %v2255 = vunpack.c.h.b16 %v1053
        %v2256 = vunpack.c.l.b16 %v1054
        %v2257 = vunpack.c.h.b16 %v1054
        %v2258 = vunpack.c.l.b16 %v1055
        %v2259 = vunpack.c.h.b16 %v1055
        %v2260 = vunpack.c.l.b16 %v1056
        %v2261 = vunpack.c.h.b16 %v1056
        %v2262 = vunpack.c.l.b16 %v1057
        %v2263 = vunpack.c.h.b16 %v1057
        %v2264 = vunpack.c.l.b16 %v1058
        %v2265 = vunpack.c.h.b16 %v1058
        %v2266 = vunpack.c.l.b16 %v1059
        %v2267 = vunpack.c.h.b16 %v1059
        %v2268 = vunpack.c.l.b16 %v1060
        %v2269 = vunpack.c.h.b16 %v1060
        %v2270 = vunpack.c.l.b16 %v1061
        %v2271 = vunpack.c.h.b16 %v1061
        %v2272 = vunpack.c.l.b16 %v1062
        %v2273 = vunpack.c.h.b16 %v1062
        %v2274 = vunpack.c.l.b16 %v1063
        %v2275 = vunpack.c.h.b16 %v1063
        %v2276 = vunpack.c.l.b16 %v1064
        %v2277 = vunpack.c.h.b16 %v1064
        %v2278 = vunpack.c.l.b16 %v1065
        %v2279 = vunpack.c.h.b16 %v1065
        %v2280 = vunpack.c.l.b16 %v1066
        %v2281 = vunpack.c.h.b16 %v1066
        %v2282 = vunpack.c.l.b16 %v1067
        %v2283 = vunpack.c.h.b16 %v1067
        %v2284 = vunpack.c.l.b16 %v1068
        %v2285 = vunpack.c.h.b16 %v1068
        %v2286 = vunpack.c.l.b16 %v1069
        %v2287 = vunpack.c.h.b16 %v1069
        %v2288 = vunpack.c.l.b16 %v1070
        %v2289 = vunpack.c.h.b16 %v1070
        %v2290 = vunpack.c.l.b16 %v1071
        %v2291 = vunpack.c.h.b16 %v1071
        %v2292 = vunpack.c.l.b16 %v1072
        %v2293 = vunpack.c.h.b16 %v1072
        %v2294 = vunpack.c.l.b16 %v1073
        %v2295 = vunpack.c.h.b16 %v1073
        %v2296 = vunpack.c.l.b16 %v1074
        %v2297 = vunpack.c.h.b16 %v1074
        %v2298 = vunpack.c.l.b16 %v1075
        %v2299 = vunpack.c.h.b16 %v1075
        %v2300 = vunpack.c.l.b16 %v1076
        %v2301 = vunpack.c.h.b16 %v1076
        %v2302 = vunpack.c.l.b16 %v1077
        %v2303 = vunpack.c.h.b16 %v1077
        %v2304 = vunpack.c.l.b16 %v1078
        %v2305 = vunpack.c.h.b16 %v1078
        %v2306 = vunpack.c.l.b16 %v1079
        %v2307 = vunpack.c.h.b16 %v1079
        %v2308 = vunpack.c.l.b16 %v1080
        %v2309 = vunpack.c.h.b16 %v1080
        %v2310 = vunpack.c.l.b16 %v1081
        %v2311 = vunpack.c.h.b16 %v1081
        %v2312 = vunpack.c.l.b16 %v1082
        %v2313 = vunpack.c.h.b16 %v1082
        %v2314 = vunpack.c.l.b16 %v1083
        %v2315 = vunpack.c.h.b16 %v1083
        %v2316 = vunpack.c.l.b16 %v1084
        %v2317 = vunpack.c.h.b16 %v1084
        %v2318 = vunpack.c.l.b16 %v1085
        %v2319 = vunpack.c.h.b16 %v1085
        %v2320 = vunpack.c.l.b16 %v1086
        %v2321 = vunpack.c.h.b16 %v1086
        %v2322 = vunpack.c.l.b16 %v1087
        %v2323 = vunpack.c.h.b16 %v1087
        %v2324 = vunpack.c.l.b16 %v1088
        %v2325 = vunpack.c.h.b16 %v1088
        %v2326 = vunpack.c.l.b16 %v1089
        %v2327 = vunpack.c.h.b16 %v1089
        %v2328 = vunpack.c.l.b16 %v1090
        %v2329 = vunpack.c.h.b16 %v1090
        %v2330 = vunpack.c.l.b16 %v1091
        %v2331 = vunpack.c.h.b16 %v1091
        %v2332 = vunpack.c.l.b16 %v1092
        %v2333 = vunpack.c.h.b16 %v1092
        %v2334 = vunpack.c.l.b16 %v1093
        %v2335 = vunpack.c.h.b16 %v1093
        %v2336 = vunpack.c.l.b16 %v1094
        %v2337 = vunpack.c.h.b16 %v1094
        %v2338 = vunpack.c.l.b16 %v1095
        %v2339 = vunpack.c.h.b16 %v1095
        %v2340 = vunpack.c.l.b16 %v1096
        %v2341 = vunpack.c.h.b16 %v1096
        %v2342 = vunpack.c.l.b16 %v1097
        %v2343 = vunpack.c.h.b16 %v1097
        %v2344 = vunpack.c.l.b16 %v1098
        %v2345 = vunpack.c.h.b16 %v1098
        %v2346 = vunpack.c.l.b16 %v1099
        %v2347 = vunpack.c.h.b16 %v1099
        %v2348 = vunpack.c.l.b16 %v1100
        %v2349 = vunpack.c.h.b16 %v1100
        %v2350 = vunpack.c.l.b16 %v1101
        %v2351 = vunpack.c.h.b16 %v1101
        %v2352 = vunpack.c.l.b16 %v1102
        %v2353 = vunpack.c.h.b16 %v1102
        %v2354 = vunpack.c.l.b16 %v1103
        %v2355 = vunpack.c.h.b16 %v1103
        %v2356 = vunpack.c.l.b16 %v1104
        %v2357 = vunpack.c.h.b16 %v1104
        %v2358 = vunpack.c.l.b16 %v1105
        %v2359 = vunpack.c.h.b16 %v1105
        %v2360 = vunpack.c.l.b16 %v1106
        %v2361 = vunpack.c.h.b16 %v1106
        %v2362 = vunpack.c.l.b16 %v1107
        %v2363 = vunpack.c.h.b16 %v1107
        %v2364 = vunpack.c.l.b16 %v1108
        %v2365 = vunpack.c.h.b16 %v1108
        %v2366 = vunpack.c.l.b16 %v1109
        %v2367 = vunpack.c.h.b16 %v1109
        %v2368 = vunpack.c.l.b16 %v1110
        %v2369 = vunpack.c.h.b16 %v1110
        %v2370 = vunpack.c.l.b16 %v1111
        %v2371 = vunpack.c.h.b16 %v1111
        %v2372 = vunpack.c.l.b16 %v1112
        %v2373 = vunpack.c.h.b16 %v1112
        %v2374 = vunpack.c.l.b16 %v1113
        %v2375 = vunpack.c.h.b16 %v1113
        %v2376 = vunpack.c.l.b16 %v1114
        %v2377 = vunpack.c.h.b16 %v1114
        %v2378 = vunpack.c.l.b16 %v1115
        %v2379 = vunpack.c.h.b16 %v1115
        %v2380 = vunpack.c.l.b16 %v1116
        %v2381 = vunpack.c.h.b16 %v1116
        %v2382 = vunpack.c.l.b16 %v1117
        %v2383 = vunpack.c.h.b16 %v1117
        %v2384 = vunpack.c.l.b16 %v1118
        %v2385 = vunpack.c.h.b16 %v1118
        %v2386 = vunpack.c.l.b16 %v1119
        %v2387 = vunpack.c.h.b16 %v1119
        %v2388 = vunpack.c.l.b16 %v1120
        %v2389 = vunpack.c.h.b16 %v1120
        %v2390 = vunpack.c.l.b16 %v1121
        %v2391 = vunpack.c.h.b16 %v1121
        %v2392 = vunpack.c.l.b16 %v1122
        %v2393 = vunpack.c.h.b16 %v1122
        %v2394 = vunpack.c.l.b16 %v1123
        %v2395 = vunpack.c.h.b16 %v1123
        %v2396 = vunpack.c.l.b16 %v1124
        %v2397 = vunpack.c.h.b16 %v1124
        %v2398 = vunpack.c.l.b16 %v1125
        %v2399 = vunpack.c.h.b16 %v1125
        %v2400 = vunpack.c.l.b16 %v1126
        %v2401 = vunpack.c.h.b16 %v1126
        %v2402 = vunpack.c.l.b16 %v1127
        %v2403 = vunpack.c.h.b16 %v1127
        %v2404 = vunpack.c.l.b16 %v1128
        %v2405 = vunpack.c.h.b16 %v1128
        %v2406 = vunpack.c.l.b16 %v1129
        %v2407 = vunpack.c.h.b16 %v1129
        %v2408 = vunpack.c.l.b16 %v1130
        %v2409 = vunpack.c.h.b16 %v1130
        %v2410 = vunpack.c.l.b16 %v1131
        %v2411 = vunpack.c.h.b16 %v1131
        %v2412 = vunpack.c.l.b16 %v1132
        %v2413 = vunpack.c.h.b16 %v1132
        %v2414 = vunpack.c.l.b16 %v1133
        %v2415 = vunpack.c.h.b16 %v1133
        %v2416 = vunpack.c.l.b16 %v1134
        %v2417 = vunpack.c.h.b16 %v1134
        %v2418 = vunpack.c.l.b16 %v1135
        %v2419 = vunpack.c.h.b16 %v1135
        %v2420 = vunpack.c.l.b16 %v1136
        %v2421 = vunpack.c.h.b16 %v1136
        %v2422 = vunpack.c.l.b16 %v1137
        %v2423 = vunpack.c.h.b16 %v1137
        %v2424 = vunpack.c.l.b16 %v1138
        %v2425 = vunpack.c.h.b16 %v1138
        %v2426 = vunpack.c.l.b16 %v1139
        %v2427 = vunpack.c.h.b16 %v1139
        %v2428 = vunpack.c.l.b16 %v1140
        %v2429 = vunpack.c.h.b16 %v1140
        %v2430 = vunpack.c.l.b16 %v1141
        %v2431 = vunpack.c.h.b16 %v1141
        %v2432 = vunpack.c.l.b16 %v1142
        %v2433 = vunpack.c.h.b16 %v1142
        %v2434 = vunpack.c.l.b16 %v1143
        %v2435 = vunpack.c.h.b16 %v1143
        %v2436 = vunpack.c.l.b16 %v1144
        %v2437 = vunpack.c.h.b16 %v1144
        %v2438 = vunpack.c.l.b16 %v1145
        %v2439 = vunpack.c.h.b16 %v1145
        %v2440 = vunpack.c.l.b16 %v1146
        %v2441 = vunpack.c.h.b16 %v1146
        %v2442 = vunpack.c.l.b16 %v1147
        %v2443 = vunpack.c.h.b16 %v1147
        %v2444 = vunpack.c.l.b16 %v1148
        %v2445 = vunpack.c.h.b16 %v1148
        %v2446 = vunpack.c.l.b16 %v1149
        %v2447 = vunpack.c.h.b16 %v1149
        %v2448 = vunpack.c.l.b16 %v1150
        %v2449 = vunpack.c.h.b16 %v1150
        %v2450 = vunpack.c.l.b16 %v1151
        %v2451 = vunpack.c.h.b16 %v1151
        %v2452 = vunpack.c.l.b16 %v1152
        %v2453 = vunpack.c.h.b16 %v1152
        %v2454 = vunpack.c.l.b16 %v1153
        %v2455 = vunpack.c.h.b16 %v1153
        %v2456 = vunpack.c.l.b16 %v1154
        %v2457 = vunpack.c.h.b16 %v1154
        %v2458 = vunpack.c.l.b16 %v1155
        %v2459 = vunpack.c.h.b16 %v1155
        %v2460 = vunpack.c.l.b16 %v1156
        %v2461 = vunpack.c.h.b16 %v1156
        %v2462 = vunpack.c.l.b16 %v1157
        %v2463 = vunpack.c.h.b16 %v1157
        %v2464 = vunpack.c.l.b16 %v1158
        %v2465 = vunpack.c.h.b16 %v1158
        %v2466 = vunpack.c.l.b16 %v1159
        %v2467 = vunpack.c.h.b16 %v1159
        %v2468 = vunpack.c.l.b16 %v1160
        %v2469 = vunpack.c.h.b16 %v1160
        %v2470 = vunpack.c.l.b16 %v1161
        %v2471 = vunpack.c.h.b16 %v1161
        %v2472 = vunpack.c.l.b16 %v1162
        %v2473 = vunpack.c.h.b16 %v1162
        %v2474 = vunpack.c.l.b16 %v1163
        %v2475 = vunpack.c.h.b16 %v1163
        %v2476 = vunpack.c.l.b16 %v1164
        %v2477 = vunpack.c.h.b16 %v1164
        %v2478 = vunpack.c.l.b16 %v1165
        %v2479 = vunpack.c.h.b16 %v1165
        %v2480 = vunpack.c.l.b16 %v1166
        %v2481 = vunpack.c.h.b16 %v1166
        %v2482 = vunpack.c.l.b16 %v1167
        %v2483 = vunpack.c.h.b16 %v1167
        %v2484 = vunpack.c.l.b16 %v1168
        %v2485 = vunpack.c.h.b16 %v1168
        %v2486 = vunpack.c.l.b16 %v1169
        %v2487 = vunpack.c.h.b16 %v1169
        %v2488 = vunpack.c.l.b16 %v1170
        %v2489 = vunpack.c.h.b16 %v1170
        %v2490 = vunpack.c.l.b16 %v1171
        %v2491 = vunpack.c.h.b16 %v1171
        %v2492 = vunpack.c.l.b16 %v1172
        %v2493 = vunpack.c.h.b16 %v1172
        %v2494 = vunpack.c.l.b16 %v1173
        %v2495 = vunpack.c.h.b16 %v1173
        %v2496 = vunpack.c.l.b16 %v1174
        %v2497 = vunpack.c.h.b16 %v1174
        %v2498 = vunpack.c.l.b16 %v1175
        %v2499 = vunpack.c.h.b16 %v1175
        %v2500 = vunpack.c.l.b16 %v1176
        %v2501 = vunpack.c.h.b16 %v1176
        %v2502 = vunpack.c.l.b16 %v1177
        %v2503 = vunpack.c.h.b16 %v1177
        %v2504 = vunpack.c.l.b16 %v1178
        %v2505 = vunpack.c.h.b16 %v1178
        %v2506 = vunpack.c.l.b16 %v1179
        %v2507 = vunpack.c.h.b16 %v1179
        %v2508 = vunpack.c.l.b16 %v1180
        %v2509 = vunpack.c.h.b16 %v1180
        %v2510 = vunpack.c.l.b16 %v1181
        %v2511 = vunpack.c.h.b16 %v1181
        %v2512 = vunpack.c.l.b16 %v1182
        %v2513 = vunpack.c.h.b16 %v1182
        %v2514 = vunpack.c.l.b16 %v1183
        %v2515 = vunpack.c.h.b16 %v1183
        %v2516 = vunpack.c.l.b16 %v1184
        %v2517 = vunpack.c.h.b16 %v1184
        %v2518 = vunpack.c.l.b16 %v1185
        %v2519 = vunpack.c.h.b16 %v1185
        %v2520 = vunpack.c.l.b16 %v1186
        %v2521 = vunpack.c.h.b16 %v1186
        %v2522 = vunpack.c.l.b16 %v1187
        %v2523 = vunpack.c.h.b16 %v1187
        %v2524 = vunpack.c.l.b16 %v1188
        %v2525 = vunpack.c.h.b16 %v1188
        %v2526 = vunpack.c.l.b16 %v1189
        %v2527 = vunpack.c.h.b16 %v1189
        %v2528 = vunpack.c.l.b16 %v1190
        %v2529 = vunpack.c.h.b16 %v1190
        %v2530 = vunpack.c.l.b16 %v1191
        %v2531 = vunpack.c.h.b16 %v1191
        %v2532 = vunpack.c.l.b16 %v1192
        %v2533 = vunpack.c.h.b16 %v1192
        %v2534 = vunpack.c.l.b16 %v1193
        %v2535 = vunpack.c.h.b16 %v1193
        %v2536 = vunpack.c.l.b16 %v1194
        %v2537 = vunpack.c.h.b16 %v1194
        %v2538 = vunpack.c.l.b16 %v1195
        %v2539 = vunpack.c.h.b16 %v1195
        %v2540 = vunpack.c.l.b16 %v1196
        %v2541 = vunpack.c.h.b16 %v1196
        %v2542 = vunpack.c.l.b16 %v1197
        %v2543 = vunpack.c.h.b16 %v1197
        %v2544 = vunpack.c.l.b16 %v1198
        %v2545 = vunpack.c.h.b16 %v1198
        %v2546 = vunpack.c.l.b16 %v1199
        %v2547 = vunpack.c.h.b16 %v1199
        %v2548 = vunpack.c.l.b16 %v1200
        %v2549 = vunpack.c.h.b16 %v1200
        %v2550 = vunpack.c.l.b16 %v1201
        %v2551 = vunpack.c.h.b16 %v1201
        %v2552 = vunpack.c.l.b16 %v1202
        %v2553 = vunpack.c.h.b16 %v1202
        %v2554 = vunpack.c.l.b16 %v1203
        %v2555 = vunpack.c.h.b16 %v1203
        %v2556 = vunpack.c.l.b16 %v1204
        %v2557 = vunpack.c.h.b16 %v1204
        %v2558 = vunpack.c.l.b16 %v1205
        %v2559 = vunpack.c.h.b16 %v1205
        %v2560 = vunpack.c.l.b16 %v1206
        %v2561 = vunpack.c.h.b16 %v1206
        %v2562 = vunpack.c.l.b16 %v1207
        %v2563 = vunpack.c.h.b16 %v1207
        %v2564 = vunpack.c.l.b16 %v1208
        %v2565 = vunpack.c.h.b16 %v1208
        %v2566 = vunpack.c.l.b16 %v1209
        %v2567 = vunpack.c.h.b16 %v1209
        %v2568 = vunpack.c.l.b16 %v1210
        %v2569 = vunpack.c.h.b16 %v1210
        %v2570 = vunpack.c.l.b16 %v1211
        %v2571 = vunpack.c.h.b16 %v1211
        %v2572 = vunpack.c.l.b16 %v1212
        %v2573 = vunpack.c.h.b16 %v1212
        %v2574 = vunpack.c.l.b16 %v1213
        %v2575 = vunpack.c.h.b16 %v1213
        %v2576 = vunpack.c.l.b16 %v1214
        %v2577 = vunpack.c.h.b16 %v1214
        %v2578 = vunpack.c.l.b16 %v1215
        %v2579 = vunpack.c.h.b16 %v1215
        %v2580 = vunpack.c.l.b16 %v1216
        %v2581 = vunpack.c.h.b16 %v1216
        %v2582 = vunpack.c.l.b16 %v1217
        %v2583 = vunpack.c.h.b16 %v1217
        %v2584 = vunpack.c.l.b16 %v1218
        %v2585 = vunpack.c.h.b16 %v1218
        %v2586 = vunpack.c.l.b16 %v1219
        %v2587 = vunpack.c.h.b16 %v1219
        %v2588 = vunpack.c.l.b16 %v1220
        %v2589 = vunpack.c.h.b16 %v1220
        %v2590 = vunpack.c.l.b16 %v1221
        %v2591 = vunpack.c.h.b16 %v1221
        %v2592 = vunpack.c.l.b16 %v1222
        %v2593 = vunpack.c.h.b16 %v1222
        %v2594 = vunpack.c.l.b16 %v1223
        %v2595 = vunpack.c.h.b16 %v1223
        %v2596 = vunpack.c.l.b16 %v1224
        %v2597 = vunpack.c.h.b16 %v1224
        %v2598 = vunpack.c.l.b16 %v1225
        %v2599 = vunpack.c.h.b16 %v1225
        %v2600 = vunpack.c.l.b16 %v1226
        %v2601 = vunpack.c.h.b16 %v1226
        %v2602 = vunpack.c.l.b16 %v1227
        %v2603 = vunpack.c.h.b16 %v1227
        %v2604 = vunpack.c.l.b16 %v1228
        %v2605 = vunpack.c.h.b16 %v1228
        %v2606 = vunpack.c.l.b16 %v1229
        %v2607 = vunpack.c.h.b16 %v1229
        %v2608 = vunpack.c.l.b16 %v1230
        %v2609 = vunpack.c.h.b16 %v1230
        %v2610 = vunpack.c.l.b16 %v1231
        %v2611 = vunpack.c.h.b16 %v1231
        %v2612 = vunpack.c.l.b16 %v1232
        %v2613 = vunpack.c.h.b16 %v1232
        %v2614 = vunpack.c.l.b16 %v1233
        %v2615 = vunpack.c.h.b16 %v1233
        %v2616 = vunpack.c.l.b16 %v1234
        %v2617 = vunpack.c.h.b16 %v1234
        %v2618 = vunpack.c.l.b16 %v1235
        %v2619 = vunpack.c.h.b16 %v1235
        %v2620 = vunpack.c.l.b16 %v1236
        %v2621 = vunpack.c.h.b16 %v1236
        %v2622 = vunpack.c.l.b16 %v1237
        %v2623 = vunpack.c.h.b16 %v1237
        %v2624 = vunpack.c.l.b16 %v1238
        %v2625 = vunpack.c.h.b16 %v1238
        %v2626 = vunpack.c.l.b16 %v1239
        %v2627 = vunpack.c.h.b16 %v1239
        %v2628 = vunpack.c.l.b16 %v1240
        %v2629 = vunpack.c.h.b16 %v1240
        %v2630 = vunpack.c.l.b16 %v1241
        %v2631 = vunpack.c.h.b16 %v1241
        %v2632 = vunpack.c.l.b16 %v1242
        %v2633 = vunpack.c.h.b16 %v1242
        %v2634 = vunpack.c.l.b16 %v1243
        %v2635 = vunpack.c.h.b16 %v1243
        %v2636 = vunpack.c.l.b16 %v1244
        %v2637 = vunpack.c.h.b16 %v1244
        %v2638 = vunpack.c.l.b16 %v1245
        %v2639 = vunpack.c.h.b16 %v1245
        %v2640 = vunpack.c.l.b16 %v1246
        %v2641 = vunpack.c.h.b16 %v1246
        %v2642 = vunpack.c.l.b16 %v1247
        %v2643 = vunpack.c.h.b16 %v1247
        %v2644 = vunpack.c.l.b16 %v1248
        %v2645 = vunpack.c.h.b16 %v1248
        %v2646 = vunpack.c.l.b16 %v1249
        %v2647 = vunpack.c.h.b16 %v1249
        %v2648 = vunpack.c.l.b16 %v1250
        %v2649 = vunpack.c.h.b16 %v1250
        %v2650 = vunpack.c.l.b16 %v1251
        %v2651 = vunpack.c.h.b16 %v1251
        %v2652 = vunpack.c.l.b16 %v1252
        %v2653 = vunpack.c.h.b16 %v1252
        %v2654 = vunpack.c.l.b16 %v1253
        %v2655 = vunpack.c.h.b16 %v1253
        %v2656 = vunpack.c.l.b16 %v1254
        %v2657 = vunpack.c.h.b16 %v1254
        %v2658 = vunpack.c.l.b16 %v1255
        %v2659 = vunpack.c.h.b16 %v1255
        %v2660 = vunpack.c.l.b16 %v1256
        %v2661 = vunpack.c.h.b16 %v1256
        %v2662 = vunpack.c.l.b16 %v1257
        %v2663 = vunpack.c.h.b16 %v1257
        %v2664 = vunpack.c.l.b16 %v1258
        %v2665 = vunpack.c.h.b16 %v1258
        %v2666 = vunpack.c.l.b16 %v1259
        %v2667 = vunpack.c.h.b16 %v1259
        %v2668 = vunpack.c.l.b16 %v1260
        %v2669 = vunpack.c.h.b16 %v1260
        %v2670 = vunpack.c.l.b16 %v1261
        %v2671 = vunpack.c.h.b16 %v1261
        %v2672 = vunpack.c.l.b16 %v1262
        %v2673 = vunpack.c.h.b16 %v1262
        %v2674 = vunpack.c.l.b16 %v1263
        %v2675 = vunpack.c.h.b16 %v1263
        %v2676 = vunpack.c.l.b16 %v1264
        %v2677 = vunpack.c.h.b16 %v1264
        %v2678 = vunpack.c.l.b16 %v1265
        %v2679 = vunpack.c.h.b16 %v1265
        %v2680 = vunpack.c.l.b16 %v1266
        %v2681 = vunpack.c.h.b16 %v1266
        %v2682 = vunpack.c.l.b16 %v1267
        %v2683 = vunpack.c.h.b16 %v1267
        %v2684 = vunpack.c.l.b16 %v1268
        %v2685 = vunpack.c.h.b16 %v1268
        %v2686 = vunpack.c.l.b16 %v1269
        %v2687 = vunpack.c.h.b16 %v1269
        %v2688 = vunpack.c.l.b16 %v1270
        %v2689 = vunpack.c.h.b16 %v1270
        %v2690 = vunpack.c.l.b16 %v1271
        %v2691 = vunpack.c.h.b16 %v1271
        %v2692 = vunpack.c.l.b16 %v1272
        %v2693 = vunpack.c.h.b16 %v1272
        %v2694 = vunpack.c.l.b16 %v1273
        %v2695 = vunpack.c.h.b16 %v1273
        %v2696 = vunpack.c.l.b16 %v1274
        %v2697 = vunpack.c.h.b16 %v1274
        %v2698 = vunpack.c.l.b16 %v1275
        %v2699 = vunpack.c.h.b16 %v1275
        %v2700 = vunpack.c.l.b16 %v1276
        %v2701 = vunpack.c.h.b16 %v1276
        %v2702 = vunpack.c.l.b16 %v1277
        %v2703 = vunpack.c.h.b16 %v1277
        %v2704 = vunpack.c.l.b16 %v1278
        %v2705 = vunpack.c.h.b16 %v1278
        %v2706 = vunpack.c.l.b16 %v1279
        %v2707 = vunpack.c.h.b16 %v1279
        %v2708 = vunpack.c.l.b16 %v1280
        %v2709 = vunpack.c.h.b16 %v1280
        %v2710 = vunpack.c.l.b16 %v1281
        %v2711 = vunpack.c.h.b16 %v1281
        %v2712 = vunpack.c.l.b16 %v1282
        %v2713 = vunpack.c.h.b16 %v1282
        %v2714 = vunpack.c.l.b16 %v1283
        %v2715 = vunpack.c.h.b16 %v1283
        %v2716 = vunpack.c.l.b16 %v1284
        %v2717 = vunpack.c.h.b16 %v1284
        %v2718 = vunpack.c.l.b16 %v1285
        %v2719 = vunpack.c.h.b16 %v1285
        %v2720 = vunpack.c.l.b16 %v1286
        %v2721 = vunpack.c.h.b16 %v1286
        %v2722 = vunpack.c.l.b16 %v1287
        %v2723 = vunpack.c.h.b16 %v1287
        %v2724 = vunpack.c.l.b16 %v1288
        %v2725 = vunpack.c.h.b16 %v1288
        %v2726 = vunpack.c.l.b16 %v1289
        %v2727 = vunpack.c.h.b16 %v1289
        %v2728 = vunpack.c.l.b16 %v1290
        %v2729 = vunpack.c.h.b16 %v1290
        %v2730 = vunpack.c.l.b16 %v1291
        %v2731 = vunpack.c.h.b16 %v1291
        %v2732 = vunpack.c.l.b16 %v1292
        %v2733 = vunpack.c.h.b16 %v1292
        %v2734 = vunpack.c.l.b16 %v1293
        %v2735 = vunpack.c.h.b16 %v1293
        %v2736 = vunpack.c.l.b16 %v1294
        %v2737 = vunpack.c.h.b16 %v1294
        %v2738 = vunpack.c.l.b16 %v1295
        %v2739 = vunpack.c.h.b16 %v1295
        %v2740 = vunpack.c.l.b16 %v1296
        %v2741 = vunpack.c.h.b16 %v1296
        %v2742 = vunpack.c.l.b16 %v1297
        %v2743 = vunpack.c.h.b16 %v1297
        %v2744 = vunpack.c.l.b16 %v1298
        %v2745 = vunpack.c.h.b16 %v1298
        %v2746 = vunpack.c.l.b16 %v1299
        %v2747 = vunpack.c.h.b16 %v1299
        %v2748 = vunpack.c.l.b16 %v1300
        %v2749 = vunpack.c.h.b16 %v1300
        %v2750 = vunpack.c.l.b16 %v1301
        %v2751 = vunpack.c.h.b16 %v1301
        %v2752 = vunpack.c.l.b16 %v1302
        %v2753 = vunpack.c.h.b16 %v1302
        %v2754 = vunpack.c.l.b16 %v1303
        %v2755 = vunpack.c.h.b16 %v1303
        %v2756 = vunpack.c.l.b16 %v1304
        %v2757 = vunpack.c.h.b16 %v1304
        %v2758 = vunpack.c.l.b16 %v1305
        %v2759 = vunpack.c.h.b16 %v1305
        %v2760 = vunpack.c.l.b16 %v1306
        %v2761 = vunpack.c.h.b16 %v1306
        %v2762 = vunpack.c.l.b16 %v1307
        %v2763 = vunpack.c.h.b16 %v1307
        %v2764 = vunpack.c.l.b16 %v1308
        %v2765 = vunpack.c.h.b16 %v1308
        %v2766 = vunpack.c.l.b16 %v1309
        %v2767 = vunpack.c.h.b16 %v1309
        %v2768 = vunpack.c.l.b16 %v1310
        %v2769 = vunpack.c.h.b16 %v1310
        %v2770 = vunpack.c.l.b16 %v1311
        %v2771 = vunpack.c.h.b16 %v1311
        %v2772 = vunpack.c.l.b16 %v1312
        %v2773 = vunpack.c.h.b16 %v1312
        %v2774 = vunpack.c.l.b16 %v1313
        %v2775 = vunpack.c.h.b16 %v1313
        %v2776 = vunpack.c.l.b16 %v1314
        %v2777 = vunpack.c.h.b16 %v1314
        %v2778 = vunpack.c.l.b16 %v1315
        %v2779 = vunpack.c.h.b16 %v1315
        %v2780 = vunpack.c.l.b16 %v1316
        %v2781 = vunpack.c.h.b16 %v1316
        %v2782 = vunpack.c.l.b16 %v1317
        %v2783 = vunpack.c.h.b16 %v1317
        %v2784 = vunpack.c.l.b16 %v1318
        %v2785 = vunpack.c.h.b16 %v1318
        %v2786 = vunpack.c.l.b16 %v1319
        %v2787 = vunpack.c.h.b16 %v1319
        %v2788 = vunpack.c.l.b16 %v1320
        %v2789 = vunpack.c.h.b16 %v1320
        %v2790 = vunpack.c.l.b16 %v1321
        %v2791 = vunpack.c.h.b16 %v1321
        %v2792 = vunpack.c.l.b16 %v1322
        %v2793 = vunpack.c.h.b16 %v1322
        %v2794 = vunpack.c.l.b16 %v1323
        %v2795 = vunpack.c.h.b16 %v1323
        %v2796 = vunpack.c.l.b16 %v1324
        %v2797 = vunpack.c.h.b16 %v1324
        %v2798 = vunpack.c.l.b16 %v1325
        %v2799 = vunpack.c.h.b16 %v1325
        %v2800 = vunpack.c.l.b16 %v1326
        %v2801 = vunpack.c.h.b16 %v1326
        %v2802 = vunpack.c.l.b16 %v1327
        %v2803 = vunpack.c.h.b16 %v1327
        %v2804 = vunpack.c.l.b16 %v1328
        %v2805 = vunpack.c.h.b16 %v1328
        %v2806 = vunpack.c.l.b16 %v1329
        %v2807 = vunpack.c.h.b16 %v1329
        %v2808 = vunpack.c.l.b16 %v1330
        %v2809 = vunpack.c.h.b16 %v1330
        %v2810 = vunpack.c.l.b16 %v1331
        %v2811 = vunpack.c.h.b16 %v1331
        %v2812 = vunpack.c.l.b16 %v1332
        %v2813 = vunpack.c.h.b16 %v1332
        %v2814 = vunpack.c.l.b16 %v1333
        %v2815 = vunpack.c.h.b16 %v1333
        %v2816 = vunpack.c.l.b16 %v1334
        %v2817 = vunpack.c.h.b16 %v1334
        %v2818 = vunpack.c.l.b16 %v1335
        %v2819 = vunpack.c.h.b16 %v1335
        %v2820 = vunpack.c.l.b16 %v1336
        %v2821 = vunpack.c.h.b16 %v1336
        %v2822 = vunpack.c.l.b16 %v1337
        %v2823 = vunpack.c.h.b16 %v1337
        %v2824 = vunpack.c.l.b16 %v1338
        %v2825 = vunpack.c.h.b16 %v1338
        %v2826 = vunpack.c.l.b16 %v1339
        %v2827 = vunpack.c.h.b16 %v1339
        %v2828 = vunpack.c.l.b16 %v1340
        %v2829 = vunpack.c.h.b16 %v1340
        %v2830 = vunpack.c.l.b16 %v1341
        %v2831 = vunpack.c.h.b16 %v1341
        %v2832 = vunpack.c.l.b16 %v1342
        %v2833 = vunpack.c.h.b16 %v1342
        %v2834 = vunpack.c.l.b16 %v1343
        %v2835 = vunpack.c.h.b16 %v1343
        %v2836 = vunpack.c.l.b16 %v1344
        %v2837 = vunpack.c.h.b16 %v1344
        %v2838 = vunpack.c.l.b16 %v1345
        %v2839 = vunpack.c.h.b16 %v1345
        %v2840 = vunpack.c.l.b16 %v1346
        %v2841 = vunpack.c.h.b16 %v1346
        %v2842 = vunpack.c.l.b16 %v1347
        %v2843 = vunpack.c.h.b16 %v1347
        %v2844 = vunpack.c.l.b16 %v1348
        %v2845 = vunpack.c.h.b16 %v1348
        %v2846 = vunpack.c.l.b16 %v1349
        %v2847 = vunpack.c.h.b16 %v1349
        %v2848 = vunpack.c.l.b16 %v1350
        %v2849 = vunpack.c.h.b16 %v1350
        %v2850 = vunpack.c.l.b16 %v1351
        %v2851 = vunpack.c.h.b16 %v1351
        %v2852 = vunpack.c.l.b16 %v1352
        %v2853 = vunpack.c.h.b16 %v1352
        %v2854 = vunpack.c.l.b16 %v1353
        %v2855 = vunpack.c.h.b16 %v1353
        %v2856 = vunpack.c.l.b16 %v1354
        %v2857 = vunpack.c.h.b16 %v1354
        %v2858 = vunpack.c.l.b16 %v1355
        %v2859 = vunpack.c.h.b16 %v1355
        %v2860 = vunpack.c.l.b16 %v1356
        %v2861 = vunpack.c.h.b16 %v1356
        %v2862 = vunpack.c.l.b16 %v1357
        %v2863 = vunpack.c.h.b16 %v1357
        %v2864 = vunpack.c.l.b16 %v1358
        %v2865 = vunpack.c.h.b16 %v1358
        %v2866 = vunpack.c.l.b16 %v1359
        %v2867 = vunpack.c.h.b16 %v1359
        %v2868 = vunpack.c.l.b16 %v1360
        %v2869 = vunpack.c.h.b16 %v1360
        %v2870 = vunpack.c.l.b16 %v1361
        %v2871 = vunpack.c.h.b16 %v1361
        %v2872 = vunpack.c.l.b16 %v1362
        %v2873 = vunpack.c.h.b16 %v1362
        %v2874 = vunpack.c.l.b16 %v1363
        %v2875 = vunpack.c.h.b16 %v1363
        %v2876 = vunpack.c.l.b16 %v1364
        %v2877 = vunpack.c.h.b16 %v1364
        %v2878 = vunpack.c.l.b16 %v1365
        %v2879 = vunpack.c.h.b16 %v1365
        %v2880 = vunpack.c.l.b16 %v1366
        %v2881 = vunpack.c.h.b16 %v1366
        %v2882 = vunpack.c.l.b16 %v1367
        %v2883 = vunpack.c.h.b16 %v1367
        %v2884 = vunpack.c.l.b16 %v1368
        %v2885 = vunpack.c.h.b16 %v1368
        %v2886 = vunpack.c.l.b16 %v1369
        %v2887 = vunpack.c.h.b16 %v1369
        %v2888 = vunpack.c.l.b16 %v1370
        %v2889 = vunpack.c.h.b16 %v1370
        %v2890 = vunpack.c.l.b16 %v1371
        %v2891 = vunpack.c.h.b16 %v1371
        %v2892 = vunpack.c.l.b16 %v1372
        %v2893 = vunpack.c.h.b16 %v1372
        %v2894 = vunpack.c.l.b16 %v1373
        %v2895 = vunpack.c.h.b16 %v1373
        %v2896 = vunpack.c.l.b16 %v1374
        %v2897 = vunpack.c.h.b16 %v1374
        %v2898 = vunpack.c.l.b16 %v1375
        %v2899 = vunpack.c.h.b16 %v1375
        %v2900 = vunpack.c.l.b16 %v1376
        %v2901 = vunpack.c.h.b16 %v1376
        %v2902 = vunpack.c.l.b16 %v1377
        %v2903 = vunpack.c.h.b16 %v1377
        %v2904 = vunpack.c.l.b16 %v1378
        %v2905 = vunpack.c.h.b16 %v1378
        %v2906 = vunpack.c.l.b16 %v1379
        %v2907 = vunpack.c.h.b16 %v1379
        %v2908 = vunpack.c.l.b16 %v1380
        %v2909 = vunpack.c.h.b16 %v1380
        %v2910 = vunpack.c.l.b16 %v1381
        %v2911 = vunpack.c.h.b16 %v1381
        %v2912 = vunpack.c.l.b16 %v1382
        %v2913 = vunpack.c.h.b16 %v1382
        %v2914 = vunpack.c.l.b16 %v1383
        %v2915 = vunpack.c.h.b16 %v1383
        %v2916 = vunpack.c.l.b16 %v1384
        %v2917 = vunpack.c.h.b16 %v1384
        %v2918 = vunpack.c.l.b16 %v1385
        %v2919 = vunpack.c.h.b16 %v1385
        %v2920 = vunpack.c.l.b16 %v1386
        %v2921 = vunpack.c.h.b16 %v1386
        %v2922 = vunpack.c.l.b16 %v1387
        %v2923 = vunpack.c.h.b16 %v1387
        %v2924 = vunpack.c.l.b16 %v1388
        %v2925 = vunpack.c.h.b16 %v1388
        %v2926 = vunpack.c.l.b16 %v1389
        %v2927 = vunpack.c.h.b16 %v1389
        %v2928 = vunpack.c.l.b16 %v1390
        %v2929 = vunpack.c.h.b16 %v1390
        %v2930 = vunpack.c.l.b16 %v1391
        %v2931 = vunpack.c.h.b16 %v1391
        %v2932 = vunpack.c.l.b16 %v1392
        %v2933 = vunpack.c.h.b16 %v1392
        %v2934 = vunpack.c.l.b16 %v1393
        %v2935 = vunpack.c.h.b16 %v1393
        %v2936 = vunpack.c.l.b16 %v1394
        %v2937 = vunpack.c.h.b16 %v1394
        %v2938 = vunpack.c.l.b16 %v1395
        %v2939 = vunpack.c.h.b16 %v1395
        %v2940 = vunpack.c.l.b16 %v1396
        %v2941 = vunpack.c.h.b16 %v1396
        %v2942 = vunpack.c.l.b16 %v1397
        %v2943 = vunpack.c.h.b16 %v1397
        %v2944 = vunpack.c.l.b16 %v1398
        %v2945 = vunpack.c.h.b16 %v1398
        %v2946 = vunpack.c.l.b16 %v1399
        %v2947 = vunpack.c.h.b16 %v1399
        %v2948 = vunpack.c.l.b16 %v1400
        %v2949 = vunpack.c.h.b16 %v1400
        %v2950 = vunpack.c.l.b16 %v1401
        %v2951 = vunpack.c.h.b16 %v1401
        %v2952 = vunpack.c.l.b16 %v1402
        %v2953 = vunpack.c.h.b16 %v1402
        %v2954 = vunpack.c.l.b16 %v1403
        %v2955 = vunpack.c.h.b16 %v1403
        %v2956 = vunpack.c.l.b16 %v1404
        %v2957 = vunpack.c.h.b16 %v1404
        %v2958 = vunpack.c.l.b16 %v1405
        %v2959 = vunpack.c.h.b16 %v1405
        %v2960 = vunpack.c.l.b16 %v1406
        %v2961 = vunpack.c.h.b16 %v1406
        %v2962 = vunpack.c.l.b16 %v1407
        %v2963 = vunpack.c.h.b16 %v1407
        %v2964 = vunpack.c.l.b16 %v1408
        %v2965 = vunpack.c.h.b16 %v1408
        %v2966 = vunpack.c.l.b16 %v1409
        %v2967 = vunpack.c.h.b16 %v1409
        %v2968 = vunpack.c.l.b16 %v1410
        %v2969 = vunpack.c.h.b16 %v1410
        %v2970 = vunpack.c.l.b16 %v1411
        %v2971 = vunpack.c.h.b16 %v1411
        %v2972 = vunpack.c.l.b16 %v1412
        %v2973 = vunpack.c.h.b16 %v1412
        %v2974 = vunpack.c.l.b16 %v1413
        %v2975 = vunpack.c.h.b16 %v1413
        %v2976 = vunpack.c.l.b16 %v1414
        %v2977 = vunpack.c.h.b16 %v1414
        %v2978 = vunpack.c.l.b16 %v1415
        %v2979 = vunpack.c.h.b16 %v1415
        %v2980 = vunpack.c.l.b16 %v1416
        %v2981 = vunpack.c.h.b16 %v1416
        %v2982 = vunpack.c.l.b16 %v1417
        %v2983 = vunpack.c.h.b16 %v1417
        %v2984 = vunpack.c.l.b16 %v1418
        %v2985 = vunpack.c.h.b16 %v1418
        %v2986 = vunpack.c.l.b16 %v1419
        %v2987 = vunpack.c.h.b16 %v1419
        %v2988 = vunpack.c.l.b16 %v1420
        %v2989 = vunpack.c.h.b16 %v1420
        %v2990 = vunpack.c.l.b16 %v1421
        %v2991 = vunpack.c.h.b16 %v1421
        %v2992 = vunpack.c.l.b16 %v1422
        %v2993 = vunpack.c.h.b16 %v1422
        %v2994 = vunpack.c.l.b16 %v1423
        %v2995 = vunpack.c.h.b16 %v1423
        %v2996 = vunpack.c.l.b16 %v1424
        %v2997 = vunpack.c.h.b16 %v1424
        %v2998 = vunpack.c.l.b16 %v1425
        %v2999 = vunpack.c.h.b16 %v1425
        %v3000 = vunpack.c.l.b16 %v1426
        %v3001 = vunpack.c.h.b16 %v1426
        %v3002 = vunpack.c.l.b16 %v1427
        %v3003 = vunpack.c.h.b16 %v1427
        %v3004 = vunpack.c.l.b16 %v1428
        %v3005 = vunpack.c.h.b16 %v1428
        %v3006 = vunpack.c.l.b16 %v1429
        %v3007 = vunpack.c.h.b16 %v1429
        %v3008 = vunpack.c.l.b16 %v1430
        %v3009 = vunpack.c.h.b16 %v1430
        %v3010 = vunpack.c.l.b16 %v1431
        %v3011 = vunpack.c.h.b16 %v1431
        %v3012 = vunpack.c.l.b16 %v1432
        %v3013 = vunpack.c.h.b16 %v1432
        %v3014 = vunpack.c.l.b16 %v1433
        %v3015 = vunpack.c.h.b16 %v1433
        %v3016 = vunpack.c.l.b16 %v1434
        %v3017 = vunpack.c.h.b16 %v1434
        %v3018 = vunpack.c.l.b16 %v1435
        %v3019 = vunpack.c.h.b16 %v1435
        %v3020 = vunpack.c.l.b16 %v1436
        %v3021 = vunpack.c.h.b16 %v1436
        %v3022 = vunpack.c.l.b16 %v1437
        %v3023 = vunpack.c.h.b16 %v1437
        %v3024 = vpack.c.b16 %v2016, %v2000
        %v3025 = vpack.c.b16 %v2017, %v2001
        %v3026 = vpack.c.b16 %v2018, %v2002
        %v3027 = vpack.c.b16 %v2019, %v2003
        %v3028 = vpack.c.b16 %v2020, %v2004
        %v3029 = vpack.c.b16 %v2021, %v2005
        %v3030 = vpack.c.b16 %v2022, %v2006
        %v3031 = vpack.c.b16 %v2023, %v2007
        %v3032 = vpack.c.b16 %v2024, %v2008
        %v3033 = vpack.c.b16 %v2025, %v2009
        %v3034 = vpack.c.b16 %v2026, %v2010
        %v3035 = vpack.c.b16 %v2027, %v2011
        %v3036 = vpack.c.b16 %v2028, %v2012
        %v3037 = vpack.c.b16 %v2029, %v2013
        %v3038 = vpack.c.b16 %v2030, %v2014
        %v3039 = vpack.c.b16 %v2031, %v2015
        %v3040 = vpack.c.b16 %v2048, %v2032
        %v3041 = vpack.c.b16 %v2049, %v2033
        %v3042 = vpack.c.b16 %v2050, %v2034
        %v3043 = vpack.c.b16 %v2051, %v2035
        %v3044 = vpack.c.b16 %v2052, %v2036
        %v3045 = vpack.c.b16 %v2053, %v2037
        %v3046 = vpack.c.b16 %v2054, %v2038
        %v3047 = vpack.c.b16 %v2055, %v2039
        %v3048 = vpack.c.b16 %v2056, %v2040
        %v3049 = vpack.c.b16 %v2057, %v2041
        %v3050 = vpack.c.b16 %v2058, %v2042
        %v3051 = vpack.c.b16 %v2059, %v2043
        %v3052 = vpack.c.b16 %v2060, %v2044
        %v3053 = vpack.c.b16 %v2061, %v2045
        %v3054 = vpack.c.b16 %v2062, %v2046
        %v3055 = vpack.c.b16 %v2063, %v2047
        %v3056 = vpack.c.b16 %v2080, %v2064
        %v3057 = vpack.c.b16 %v2081, %v2065
        %v3058 = vpack.c.b16 %v2082, %v2066
        %v3059 = vpack.c.b16 %v2083, %v2067
        %v3060 = vpack.c.b16 %v2084, %v2068
        %v3061 = vpack.c.b16 %v2085, %v2069
        %v3062 = vpack.c.b16 %v2086, %v2070
        %v3063 = vpack.c.b16 %v2087, %v2071
        %v3064 = vpack.c.b16 %v2088, %v2072
        %v3065 = vpack.c.b16 %v2089, %v2073
        %v3066 = vpack.c.b16 %v2090, %v2074
        %v3067 = vpack.c.b16 %v2091, %v2075
        %v3068 = vpack.c.b16 %v2092, %v2076
        %v3069 = vpack.c.b16 %v2093, %v2077
        %v3070 = vpack.c.b16 %v2094, %v2078
        %v3071 = vpack.c.b16 %v2095, %v2079
        %v3072 = vpack.c.b16 %v2112, %v2096
        %v3073 = vpack.c.b16 %v2113, %v2097
        %v3074 = vpack.c.b16 %v2114, %v2098
        %v3075 = vpack.c.b16 %v2115, %v2099
        %v3076 = vpack.c.b16 %v2116, %v2100
        %v3077 = vpack.c.b16 %v2117, %v2101
        %v3078 = vpack.c.b16 %v2118, %v2102
        %v3079 = vpack.c.b16 %v2119, %v2103
        %v3080 = vpack.c.b16 %v2120, %v2104
        %v3081 = vpack.c.b16 %v2121, %v2105
        %v3082 = vpack.c.b16 %v2122, %v2106
        %v3083 = vpack.c.b16 %v2123, %v2107
        %v3084 = vpack.c.b16 %v2124, %v2108
        %v3085 = vpack.c.b16 %v2125, %v2109
        %v3086 = vpack.c.b16 %v2126, %v2110
        %v3087 = vpack.c.b16 %v2127, %v2111
        %v3088 = vpack.c.b16 %v2144, %v2128
        %v3089 = vpack.c.b16 %v2145, %v2129
        %v3090 = vpack.c.b16 %v2146, %v2130
        %v3091 = vpack.c.b16 %v2147, %v2131
        %v3092 = vpack.c.b16 %v2148, %v2132
        %v3093 = vpack.c.b16 %v2149, %v2133
        %v3094 = vpack.c.b16 %v2150, %v2134
        %v3095 = vpack.c.b16 %v2151, %v2135
        %v3096 = vpack.c.b16 %v2152, %v2136
        %v3097 = vpack.c.b16 %v2153, %v2137
        %v3098 = vpack.c.b16 %v2154, %v2138
        %v3099 = vpack.c.b16 %v2155, %v2139
        %v3100 = vpack.c.b16 %v2156, %v2140
        %v3101 = vpack.c.b16 %v2157, %v2141
        %v3102 = vpack.c.b16 %v2158, %v2142
        %v3103 = vpack.c.b16 %v2159, %v2143
        %v3104 = vpack.c.b16 %v2176, %v2160
        %v3105 = vpack.c.b16 %v2177, %v2161
        %v3106 = vpack.c.b16 %v2178, %v2162
        %v3107 = vpack.c.b16 %v2179, %v2163
        %v3108 = vpack.c.b16 %v2180, %v2164
        %v3109 = vpack.c.b16 %v2181, %v2165
        %v3110 = vpack.c.b16 %v2182, %v2166
        %v3111 = vpack.c.b16 %v2183, %v2167
        %v3112 = vpack.c.b16 %v2184, %v2168
        %v3113 = vpack.c.b16 %v2185, %v2169
        %v3114 = vpack.c.b16 %v2186, %v2170
        %v3115 = vpack.c.b16 %v2187, %v2171
        %v3116 = vpack.c.b16 %v2188, %v2172
        %v3117 = vpack.c.b16 %v2189, %v2173
        %v3118 = vpack.c.b16 %v2190, %v2174
        %v3119 = vpack.c.b16 %v2191, %v2175
        %v3120 = vpack.c.b16 %v2208, %v2192
        %v3121 = vpack.c.b16 %v2209, %v2193
        %v3122 = vpack.c.b16 %v2210, %v2194
        %v3123 = vpack.c.b16 %v2211, %v2195
        %v3124 = vpack.c.b16 %v2212, %v2196
        %v3125 = vpack.c.b16 %v2213, %v2197
        %v3126 = vpack.c.b16 %v2214, %v2198
        %v3127 = vpack.c.b16 %v2215, %v2199
        %v3128 = vpack.c.b16 %v2216, %v2200
        %v3129 = vpack.c.b16 %v2217, %v2201
        %v3130 = vpack.c.b16 %v2218, %v2202
        %v3131 = vpack.c.b16 %v2219, %v2203
        %v3132 = vpack.c.b16 %v2220, %v2204
        %v3133 = vpack.c.b16 %v2221, %v2205
        %v3134 = vpack.c.b16 %v2222, %v2206
        %v3135 = vpack.c.b16 %v2223, %v2207
        %v3136 = vpack.c.b16 %v2240, %v2224
        %v3137 = vpack.c.b16 %v2241, %v2225
        %v3138 = vpack.c.b16 %v2242, %v2226
        %v3139 = vpack.c.b16 %v2243, %v2227
        %v3140 = vpack.c.b16 %v2244, %v2228
        %v3141 = vpack.c.b16 %v2245, %v2229
        %v3142 = vpack.c.b16 %v2246, %v2230
        %v3143 = vpack.c.b16 %v2247, %v2231
        %v3144 = vpack.c.b16 %v2248, %v2232
        %v3145 = vpack.c.b16 %v2249, %v2233
        %v3146 = vpack.c.b16 %v2250, %v2234
        %v3147 = vpack.c.b16 %v2251, %v2235
        %v3148 = vpack.c.b16 %v2252, %v2236
        %v3149 = vpack.c.b16 %v2253, %v2237
        %v3150 = vpack.c.b16 %v2254, %v2238
        %v3151 = vpack.c.b16 %v2255, %v2239
        %v3152 = vpack.c.b16 %v2272, %v2256
        %v3153 = vpack.c.b16 %v2273, %v2257
        %v3154 = vpack.c.b16 %v2274, %v2258
        %v3155 = vpack.c.b16 %v2275, %v2259
        %v3156 = vpack.c.b16 %v2276, %v2260
        %v3157 = vpack.c.b16 %v2277, %v2261
        %v3158 = vpack.c.b16 %v2278, %v2262
        %v3159 = vpack.c.b16 %v2279, %v2263
        %v3160 = vpack.c.b16 %v2280, %v2264
        %v3161 = vpack.c.b16 %v2281, %v2265
        %v3162 = vpack.c.b16 %v2282, %v2266
        %v3163 = vpack.c.b16 %v2283, %v2267
        %v3164 = vpack.c.b16 %v2284, %v2268
        %v3165 = vpack.c.b16 %v2285, %v2269
        %v3166 = vpack.c.b16 %v2286, %v2270
        %v3167 = vpack.c.b16 %v2287, %v2271
        %v3168 = vpack.c.b16 %v2304, %v2288
        %v3169 = vpack.c.b16 %v2305, %v2289
        %v3170 = vpack.c.b16 %v2306, %v2290
        %v3171 = vpack.c.b16 %v2307, %v2291
        %v3172 = vpack.c.b16 %v2308, %v2292
        %v3173 = vpack.c.b16 %v2309, %v2293
        %v3174 = vpack.c.b16 %v2310, %v2294
        %v3175 = vpack.c.b16 %v2311, %v2295
        %v3176 = vpack.c.b16 %v2312, %v2296
        %v3177 = vpack.c.b16 %v2313, %v2297
        %v3178 = vpack.c.b16 %v2314, %v2298
        %v3179 = vpack.c.b16 %v2315, %v2299
        %v3180 = vpack.c.b16 %v2316, %v2300
        %v3181 = vpack.c.b16 %v2317, %v2301
        %v3182 = vpack.c.b16 %v2318, %v2302
        %v3183 = vpack.c.b16 %v2319, %v2303
        %v3184 = vpack.c.b16 %v2336, %v2320
        %v3185 = vpack.c.b16 %v2337, %v2321
        %v3186 = vpack.c.b16 %v2338, %v2322
        %v3187 = vpack.c.b16 %v2339, %v2323
        %v3188 = vpack.c.b16 %v2340, %v2324
        %v3189 = vpack.c.b16 %v2341, %v2325
        %v3190 = vpack.c.b16 %v2342, %v2326
        %v3191 = vpack.c.b16 %v2343, %v2327
        %v3192 = vpack.c.b16 %v2344, %v2328
        %v3193 = vpack.c.b16 %v2345, %v2329
        %v3194 = vpack.c.b16 %v2346, %v2330
        %v3195 = vpack.c.b16 %v2347, %v2331
        %v3196 = vpack.c.b16 %v2348, %v2332
        %v3197 = vpack.c.b16 %v2349, %v2333
        %v3198 = vpack.c.b16 %v2350, %v2334
        %v3199 = vpack.c.b16 %v2351, %v2335
        %v3200 = vpack.c.b16 %v2368, %v2352
        %v3201 = vpack.c.b16 %v2369, %v2353
        %v3202 = vpack.c.b16 %v2370, %v2354
        %v3203 = vpack.c.b16 %v2371, %v2355
        %v3204 = vpack.c.b16 %v2372, %v2356
        %v3205 = vpack.c.b16 %v2373, %v2357
        %v3206 = vpack.c.b16 %v2374, %v2358
        %v3207 = vpack.c.b16 %v2375, %v2359
        %v3208 = vpack.c.b16 %v2376, %v2360
        %v3209 = vpack.c.b16 %v2377, %v2361
        %v3210 = vpack.c.b16 %v2378, %v2362
        %v3211 = vpack.c.b16 %v2379, %v2363
        %v3212 = vpack.c.b16 %v2380, %v2364
        %v3213 = vpack.c.b16 %v2381, %v2365
        %v3214 = vpack.c.b16 %v2382, %v2366
        %v3215 = vpack.c.b16 %v2383, %v2367
        %v3216 = vpack.c.b16 %v2400, %v2384
        %v3217 = vpack.c.b16 %v2401, %v2385
        %v3218 = vpack.c.b16 %v2402, %v2386
        %v3219 = vpack.c.b16 %v2403, %v2387
        %v3220 = vpack.c.b16 %v2404, %v2388
        %v3221 = vpack.c.b16 %v2405, %v2389
        %v3222 = vpack.c.b16 %v2406, %v2390
        %v3223 = vpack.c.b16 %v2407, %v2391
        %v3224 = vpack.c.b16 %v2408, %v2392
        %v3225 = vpack.c.b16 %v2409, %v2393
        %v3226 = vpack.c.b16 %v2410, %v2394
        %v3227 = vpack.c.b16 %v2411, %v2395
        %v3228 = vpack.c.b16 %v2412, %v2396
        %v3229 = vpack.c.b16 %v2413, %v2397
        %v3230 = vpack.c.b16 %v2414, %v2398
        %v3231 = vpack.c.b16 %v2415, %v2399
        %v3232 = vpack.c.b16 %v2432, %v2416
        %v3233 = vpack.c.b16 %v2433, %v2417
        %v3234 = vpack.c.b16 %v2434, %v2418
        %v3235 = vpack.c.b16 %v2435, %v2419
        %v3236 = vpack.c.b16 %v2436, %v2420
        %v3237 = vpack.c.b16 %v2437, %v2421
        %v3238 = vpack.c.b16 %v2438, %v2422
        %v3239 = vpack.c.b16 %v2439, %v2423
        %v3240 = vpack.c.b16 %v2440, %v2424
        %v3241 = vpack.c.b16 %v2441, %v2425
        %v3242 = vpack.c.b16 %v2442, %v2426
        %v3243 = vpack.c.b16 %v2443, %v2427
        %v3244 = vpack.c.b16 %v2444, %v2428
        %v3245 = vpack.c.b16 %v2445, %v2429
        %v3246 = vpack.c.b16 %v2446, %v2430
        %v3247 = vpack.c.b16 %v2447, %v2431
        %v3248 = vpack.c.b16 %v2464, %v2448
        %v3249 = vpack.c.b16 %v2465, %v2449
        %v3250 = vpack.c.b16 %v2466, %v2450
        %v3251 = vpack.c.b16 %v2467, %v2451
        %v3252 = vpack.c.b16 %v2468, %v2452
        %v3253 = vpack.c.b16 %v2469, %v2453
        %v3254 = vpack.c.b16 %v2470, %v2454
        %v3255 = vpack.c.b16 %v2471, %v2455
        %v3256 = vpack.c.b16 %v2472, %v2456
        %v3257 = vpack.c.b16 %v2473, %v2457
        %v3258 = vpack.c.b16 %v2474, %v2458
        %v3259 = vpack.c.b16 %v2475, %v2459
        %v3260 = vpack.c.b16 %v2476, %v2460
        %v3261 = vpack.c.b16 %v2477, %v2461
        %v3262 = vpack.c.b16 %v2478, %v2462
        %v3263 = vpack.c.b16 %v2479, %v2463
        %v3264 = vpack.c.b16 %v2496, %v2480
        %v3265 = vpack.c.b16 %v2497, %v2481
        %v3266 = vpack.c.b16 %v2498, %v2482
        %v3267 = vpack.c.b16 %v2499, %v2483
        %v3268 = vpack.c.b16 %v2500, %v2484
        %v3269 = vpack.c.b16 %v2501, %v2485
        %v3270 = vpack.c.b16 %v2502, %v2486
        %v3271 = vpack.c.b16 %v2503, %v2487
        %v3272 = vpack.c.b16 %v2504, %v2488
        %v3273 = vpack.c.b16 %v2505, %v2489
        %v3274 = vpack.c.b16 %v2506, %v2490
        %v3275 = vpack.c.b16 %v2507, %v2491
        %v3276 = vpack.c.b16 %v2508, %v2492
        %v3277 = vpack.c.b16 %v2509, %v2493
        %v3278 = vpack.c.b16 %v2510, %v2494
        %v3279 = vpack.c.b16 %v2511, %v2495
        %v3280 = vpack.c.b16 %v2528, %v2512
        %v3281 = vpack.c.b16 %v2529, %v2513
        %v3282 = vpack.c.b16 %v2530, %v2514
        %v3283 = vpack.c.b16 %v2531, %v2515
        %v3284 = vpack.c.b16 %v2532, %v2516
        %v3285 = vpack.c.b16 %v2533, %v2517
        %v3286 = vpack.c.b16 %v2534, %v2518
        %v3287 = vpack.c.b16 %v2535, %v2519
        %v3288 = vpack.c.b16 %v2536, %v2520
        %v3289 = vpack.c.b16 %v2537, %v2521
        %v3290 = vpack.c.b16 %v2538, %v2522
        %v3291 = vpack.c.b16 %v2539, %v2523
        %v3292 = vpack.c.b16 %v2540, %v2524
        %v3293 = vpack.c.b16 %v2541, %v2525
        %v3294 = vpack.c.b16 %v2542, %v2526
        %v3295 = vpack.c.b16 %v2543, %v2527
        %v3296 = vpack.c.b16 %v2560, %v2544
        %v3297 = vpack.c.b16 %v2561, %v2545
        %v3298 = vpack.c.b16 %v2562, %v2546
        %v3299 = vpack.c.b16 %v2563, %v2547
        %v3300 = vpack.c.b16 %v2564, %v2548
        %v3301 = vpack.c.b16 %v2565, %v2549
        %v3302 = vpack.c.b16 %v2566, %v2550
        %v3303 = vpack.c.b16 %v2567, %v2551
        %v3304 = vpack.c.b16 %v2568, %v2552
        %v3305 = vpack.c.b16 %v2569, %v2553
        %v3306 = vpack.c.b16 %v2570, %v2554
        %v3307 = vpack.c.b16 %v2571, %v2555
        %v3308 = vpack.c.b16 %v2572, %v2556
        %v3309 = vpack.c.b16 %v2573, %v2557
        %v3310 = vpack.c.b16 %v2574, %v2558
        %v3311 = vpack.c.b16 %v2575, %v2559
        %v3312 = vpack.c.b16 %v2592, %v2576
        %v3313 = vpack.c.b16 %v2593, %v2577
        %v3314 = vpack.c.b16 %v2594, %v2578
        %v3315 = vpack.c.b16 %v2595, %v2579
        %v3316 = vpack.c.b16 %v2596, %v2580
        %v3317 = vpack.c.b16 %v2597, %v2581
        %v3318 = vpack.c.b16 %v2598, %v2582
        %v3319 = vpack.c.b16 %v2599, %v2583
        %v3320 = vpack.c.b16 %v2600, %v2584
        %v3321 = vpack.c.b16 %v2601, %v2585
        %v3322 = vpack.c.b16 %v2602, %v2586
        %v3323 = vpack.c.b16 %v2603, %v2587
        %v3324 = vpack.c.b16 %v2604, %v2588
        %v3325 = vpack.c.b16 %v2605, %v2589
        %v3326 = vpack.c.b16 %v2606, %v2590
        %v3327 = vpack.c.b16 %v2607, %v2591
        %v3328 = vpack.c.b16 %v2624, %v2608
        %v3329 = vpack.c.b16 %v2625, %v2609
        %v3330 = vpack.c.b16 %v2626, %v2610
        %v3331 = vpack.c.b16 %v2627, %v2611
        %v3332 = vpack.c.b16 %v2628, %v2612
        %v3333 = vpack.c.b16 %v2629, %v2613
        %v3334 = vpack.c.b16 %v2630, %v2614
        %v3335 = vpack.c.b16 %v2631, %v2615
        %v3336 = vpack.c.b16 %v2632, %v2616
        %v3337 = vpack.c.b16 %v2633, %v2617
        %v3338 = vpack.c.b16 %v2634, %v2618
        %v3339 = vpack.c.b16 %v2635, %v2619
        %v3340 = vpack.c.b16 %v2636, %v2620
        %v3341 = vpack.c.b16 %v2637, %v2621
        %v3342 = vpack.c.b16 %v2638, %v2622
        %v3343 = vpack.c.b16 %v2639, %v2623
        %v3344 = vpack.c.b16 %v2656, %v2640
        %v3345 = vpack.c.b16 %v2657, %v2641
        %v3346 = vpack.c.b16 %v2658, %v2642
        %v3347 = vpack.c.b16 %v2659, %v2643
        %v3348 = vpack.c.b16 %v2660, %v2644
        %v3349 = vpack.c.b16 %v2661, %v2645
        %v3350 = vpack.c.b16 %v2662, %v2646
        %v3351 = vpack.c.b16 %v2663, %v2647
        %v3352 = vpack.c.b16 %v2664, %v2648
        %v3353 = vpack.c.b16 %v2665, %v2649
        %v3354 = vpack.c.b16 %v2666, %v2650
        %v3355 = vpack.c.b16 %v2667, %v2651
        %v3356 = vpack.c.b16 %v2668, %v2652
        %v3357 = vpack.c.b16 %v2669, %v2653
        %v3358 = vpack.c.b16 %v2670, %v2654
        %v3359 = vpack.c.b16 %v2671, %v2655
        %v3360 = vpack.c.b16 %v2688, %v2672
        %v3361 = vpack.c.b16 %v2689, %v2673
        %v3362 = vpack.c.b16 %v2690, %v2674
        %v3363 = vpack.c.b16 %v2691, %v2675
        %v3364 = vpack.c.b16 %v2692, %v2676
        %v3365 = vpack.c.b16 %v2693, %v2677
        %v3366 = vpack.c.b16 %v2694, %v2678
        %v3367 = vpack.c.b16 %v2695, %v2679
        %v3368 = vpack.c.b16 %v2696, %v2680
        %v3369 = vpack.c.b16 %v2697, %v2681
        %v3370 = vpack.c.b16 %v2698, %v2682
        %v3371 = vpack.c.b16 %v2699, %v2683
        %v3372 = vpack.c.b16 %v2700, %v2684
        %v3373 = vpack.c.b16 %v2701, %v2685
        %v3374 = vpack.c.b16 %v2702, %v2686
        %v3375 = vpack.c.b16 %v2703, %v2687
        %v3376 = vpack.c.b16 %v2720, %v2704
        %v3377 = vpack.c.b16 %v2721, %v2705
        %v3378 = vpack.c.b16 %v2722, %v2706
        %v3379 = vpack.c.b16 %v2723, %v2707
        %v3380 = vpack.c.b16 %v2724, %v2708
        %v3381 = vpack.c.b16 %v2725, %v2709
        %v3382 = vpack.c.b16 %v2726, %v2710
        %v3383 = vpack.c.b16 %v2727, %v2711
        %v3384 = vpack.c.b16 %v2728, %v2712
        %v3385 = vpack.c.b16 %v2729, %v2713
        %v3386 = vpack.c.b16 %v2730, %v2714
        %v3387 = vpack.c.b16 %v2731, %v2715
        %v3388 = vpack.c.b16 %v2732, %v2716
        %v3389 = vpack.c.b16 %v2733, %v2717
        %v3390 = vpack.c.b16 %v2734, %v2718
        %v3391 = vpack.c.b16 %v2735, %v2719
        %v3392 = vpack.c.b16 %v2752, %v2736
        %v3393 = vpack.c.b16 %v2753, %v2737
        %v3394 = vpack.c.b16 %v2754, %v2738
        %v3395 = vpack.c.b16 %v2755, %v2739
        %v3396 = vpack.c.b16 %v2756, %v2740
        %v3397 = vpack.c.b16 %v2757, %v2741
        %v3398 = vpack.c.b16 %v2758, %v2742
        %v3399 = vpack.c.b16 %v2759, %v2743
        %v3400 = vpack.c.b16 %v2760, %v2744
        %v3401 = vpack.c.b16 %v2761, %v2745
        %v3402 = vpack.c.b16 %v2762, %v2746
        %v3403 = vpack.c.b16 %v2763, %v2747
        %v3404 = vpack.c.b16 %v2764, %v2748
        %v3405 = vpack.c.b16 %v2765, %v2749
        %v3406 = vpack.c.b16 %v2766, %v2750
        %v3407 = vpack.c.b16 %v2767, %v2751
        %v3408 = vpack.c.b16 %v2784, %v2768
        %v3409 = vpack.c.b16 %v2785, %v2769
        %v3410 = vpack.c.b16 %v2786, %v2770
        %v3411 = vpack.c.b16 %v2787, %v2771
        %v3412 = vpack.c.b16 %v2788, %v2772
        %v3413 = vpack.c.b16 %v2789, %v2773
        %v3414 = vpack.c.b16 %v2790, %v2774
        %v3415 = vpack.c.b16 %v2791, %v2775
        %v3416 = vpack.c.b16 %v2792, %v2776
        %v3417 = vpack.c.b16 %v2793, %v2777
        %v3418 = vpack.c.b16 %v2794, %v2778
        %v3419 = vpack.c.b16 %v2795, %v2779
        %v3420 = vpack.c.b16 %v2796, %v2780
        %v3421 = vpack.c.b16 %v2797, %v2781
        %v3422 = vpack.c.b16 %v2798, %v2782
        %v3423 = vpack.c.b16 %v2799, %v2783
        %v3424 = vpack.c.b16 %v2816, %v2800
        %v3425 = vpack.c.b16 %v2817, %v2801
        %v3426 = vpack.c.b16 %v2818, %v2802
        %v3427 = vpack.c.b16 %v2819, %v2803
        %v3428 = vpack.c.b16 %v2820, %v2804
        %v3429 = vpack.c.b16 %v2821, %v2805
        %v3430 = vpack.c.b16 %v2822, %v2806
        %v3431 = vpack.c.b16 %v2823, %v2807
        %v3432 = vpack.c.b16 %v2824, %v2808
        %v3433 = vpack.c.b16 %v2825, %v2809
        %v3434 = vpack.c.b16 %v2826, %v2810
        %v3435 = vpack.c.b16 %v2827, %v2811
        %v3436 = vpack.c.b16 %v2828, %v2812
        %v3437 = vpack.c.b16 %v2829, %v2813
        %v3438 = vpack.c.b16 %v2830, %v2814
        %v3439 = vpack.c.b16 %v2831, %v2815
        %v3440 = vpack.c.b16 %v2848, %v2832
        %v3441 = vpack.c.b16 %v2849, %v2833
        %v3442 = vpack.c.b16 %v2850, %v2834
        %v3443 = vpack.c.b16 %v2851, %v2835
        %v3444 = vpack.c.b16 %v2852, %v2836
        %v3445 = vpack.c.b16 %v2853, %v2837
        %v3446 = vpack.c.b16 %v2854, %v2838
        %v3447 = vpack.c.b16 %v2855, %v2839
        %v3448 = vpack.c.b16 %v2856, %v2840
        %v3449 = vpack.c.b16 %v2857, %v2841
        %v3450 = vpack.c.b16 %v2858, %v2842
        %v3451 = vpack.c.b16 %v2859, %v2843
        %v3452 = vpack.c.b16 %v2860, %v2844
        %v3453 = vpack.c.b16 %v2861, %v2845
        %v3454 = vpack.c.b16 %v2862, %v2846
        %v3455 = vpack.c.b16 %v2863, %v2847
        %v3456 = vpack.c.b16 %v2880, %v2864
        %v3457 = vpack.c.b16 %v2881, %v2865
        %v3458 = vpack.c.b16 %v2882, %v2866
        %v3459 = vpack.c.b16 %v2883, %v2867
        %v3460 = vpack.c.b16 %v2884, %v2868
        %v3461 = vpack.c.b16 %v2885, %v2869
        %v3462 = vpack.c.b16 %v2886, %v2870
        %v3463 = vpack.c.b16 %v2887, %v2871
        %v3464 = vpack.c.b16 %v2888, %v2872
        %v3465 = vpack.c.b16 %v2889, %v2873
        %v3466 = vpack.c.b16 %v2890, %v2874
        %v3467 = vpack.c.b16 %v2891, %v2875
        %v3468 = vpack.c.b16 %v2892, %v2876
        %v3469 = vpack.c.b16 %v2893, %v2877
        %v3470 = vpack.c.b16 %v2894, %v2878
        %v3471 = vpack.c.b16 %v2895, %v2879
        %v3472 = vpack.c.b16 %v2912, %v2896
        %v3473 = vpack.c.b16 %v2913, %v2897
        %v3474 = vpack.c.b16 %v2914, %v2898
        %v3475 = vpack.c.b16 %v2915, %v2899
        %v3476 = vpack.c.b16 %v2916, %v2900
        %v3477 = vpack.c.b16 %v2917, %v2901
        %v3478 = vpack.c.b16 %v2918, %v2902
        %v3479 = vpack.c.b16 %v2919, %v2903
        %v3480 = vpack.c.b16 %v2920, %v2904
        %v3481 = vpack.c.b16 %v2921, %v2905
        %v3482 = vpack.c.b16 %v2922, %v2906
        %v3483 = vpack.c.b16 %v2923, %v2907
        %v3484 = vpack.c.b16 %v2924, %v2908
        %v3485 = vpack.c.b16 %v2925, %v2909
        %v3486 = vpack.c.b16 %v2926, %v2910
        %v3487 = vpack.c.b16 %v2927, %v2911
        %v3488 = vpack.c.b16 %v2944, %v2928
        %v3489 = vpack.c.b16 %v2945, %v2929
        %v3490 = vpack.c.b16 %v2946, %v2930
        %v3491 = vpack.c.b16 %v2947, %v2931
        %v3492 = vpack.c.b16 %v2948, %v2932
        %v3493 = vpack.c.b16 %v2949, %v2933
        %v3494 = vpack.c.b16 %v2950, %v2934
        %v3495 = vpack.c.b16 %v2951, %v2935
        %v3496 = vpack.c.b16 %v2952, %v2936
        %v3497 = vpack.c.b16 %v2953, %v2937
        %v3498 = vpack.c.b16 %v2954, %v2938
        %v3499 = vpack.c.b16 %v2955, %v2939
        %v3500 = vpack.c.b16 %v2956, %v2940
        %v3501 = vpack.c.b16 %v2957, %v2941
        %v3502 = vpack.c.b16 %v2958, %v2942
        %v3503 = vpack.c.b16 %v2959, %v2943
        %v3504 = vpack.c.b16 %v2976, %v2960
        %v3505 = vpack.c.b16 %v2977, %v2961
        %v3506 = vpack.c.b16 %v2978, %v2962
        %v3507 = vpack.c.b16 %v2979, %v2963
        %v3508 = vpack.c.b16 %v2980, %v2964
        %v3509 = vpack.c.b16 %v2981, %v2965
        %v3510 = vpack.c.b16 %v2982, %v2966
        %v3511 = vpack.c.b16 %v2983, %v2967
        %v3512 = vpack.c.b16 %v2984, %v2968
        %v3513 = vpack.c.b16 %v2985, %v2969
        %v3514 = vpack.c.b16 %v2986, %v2970
        %v3515 = vpack.c.b16 %v2987, %v2971
        %v3516 = vpack.c.b16 %v2988, %v2972
        %v3517 = vpack.c.b16 %v2989, %v2973
        %v3518 = vpack.c.b16 %v2990, %v2974
        %v3519 = vpack.c.b16 %v2991, %v2975
        %v3520 = vpack.c.b16 %v3008, %v2992
        %v3521 = vpack.c.b16 %v3009, %v2993
        %v3522 = vpack.c.b16 %v3010, %v2994
        %v3523 = vpack.c.b16 %v3011, %v2995
        %v3524 = vpack.c.b16 %v3012, %v2996
        %v3525 = vpack.c.b16 %v3013, %v2997
        %v3526 = vpack.c.b16 %v3014, %v2998
        %v3527 = vpack.c.b16 %v3015, %v2999
        %v3528 = vpack.c.b16 %v3016, %v3000
        %v3529 = vpack.c.b16 %v3017, %v3001
        %v3530 = vpack.c.b16 %v3018, %v3002
        %v3531 = vpack.c.b16 %v3019, %v3003
        %v3532 = vpack.c.b16 %v3020, %v3004
        %v3533 = vpack.c.b16 %v3021, %v3005
        %v3534 = vpack.c.b16 %v3022, %v3006
        %v3535 = vpack.c.b16 %v3023, %v3007
        %4048 = vmatpush.bf16.msra.mxu0 %v3136
        %4049 = vmatpush.bf16.msra.mxu0 %v3120
        %4050 = vmatpush.bf16.msra.mxu0 %v3104
        %4051 = vmatpush.bf16.msra.mxu0 %v3088
        %4052 = vmatpush.bf16.msra.mxu0 %v3072
        %4053 = vmatpush.bf16.msra.mxu0 %v3056
        %4054 = vmatpush.bf16.msra.mxu0 %v3040
        %4055 = vmatpush.bf16.msra.mxu0 %v3024
        %4056 = vmatmul.bf16.gmra.mxu0 %v1480
        %v4057 = vpop.f32.mrf.mxu0
        %v4058 = vadd.f32 %v1442, %v4057
        %v4059 = vpop.f32.mrf.mxu0
        %4060 = vdwg.mxu0
        %4061 = vmatpush.bf16.msra.mxu0 %v3264
        %4062 = vmatpush.bf16.msra.mxu0 %v3248
        %4063 = vmatpush.bf16.msra.mxu0 %v3232
        %4064 = vmatpush.bf16.msra.mxu0 %v3216
        %4065 = vmatpush.bf16.msra.mxu0 %v3200
        %4066 = vmatpush.bf16.msra.mxu0 %v3184
        %4067 = vmatpush.bf16.msra.mxu0 %v3168
        %4068 = vmatpush.bf16.msra.mxu0 %v3152
        %4069 = vmatmul.bf16.gmra.mxu0 %v1481
        %v4070 = vpop.f32.mrf.mxu0
        %v4071 = vadd.f32 %v4058, %v4070
        %v4072 = vpop.f32.mrf.mxu0
        %4073 = vdwg.mxu0
        %4074 = vmatpush.bf16.msra.mxu0 %v3392
        %4075 = vmatpush.bf16.msra.mxu0 %v3376
        %4076 = vmatpush.bf16.msra.mxu0 %v3360
        %4077 = vmatpush.bf16.msra.mxu0 %v3344
        %4078 = vmatpush.bf16.msra.mxu0 %v3328
        %4079 = vmatpush.bf16.msra.mxu0 %v3312
        %4080 = vmatpush.bf16.msra.mxu0 %v3296
        %4081 = vmatpush.bf16.msra.mxu0 %v3280
        %4082 = vmatmul.bf16.gmra.mxu0 %v1482
        %v4083 = vpop.f32.mrf.mxu0
        %v4084 = vadd.f32 %v4071, %v4083
        %v4085 = vpop.f32.mrf.mxu0
        %4086 = vdwg.mxu0
        %4087 = vmatpush.bf16.msra.mxu0 %v3520
        %4088 = vmatpush.bf16.msra.mxu0 %v3504
        %4089 = vmatpush.bf16.msra.mxu0 %v3488
        %4090 = vmatpush.bf16.msra.mxu0 %v3472
        %4091 = vmatpush.bf16.msra.mxu0 %v3456
        %4092 = vmatpush.bf16.msra.mxu0 %v3440
        %4093 = vmatpush.bf16.msra.mxu0 %v3424
        %4094 = vmatpush.bf16.msra.mxu0 %v3408
        %4095 = vmatmul.bf16.gmra.mxu0 %v1483
        %v4096 = vpop.f32.mrf.mxu0
        %v4097 = vadd.f32 %v4084, %v4096
        %v4098 = vpop.f32.mrf.mxu0
        %4099 = vdwg.mxu0
        %4100 = vmatpush.bf16.msra.mxu0 %v3137
        %4101 = vmatpush.bf16.msra.mxu0 %v3121
        %4102 = vmatpush.bf16.msra.mxu0 %v3105
        %4103 = vmatpush.bf16.msra.mxu0 %v3089
        %4104 = vmatpush.bf16.msra.mxu0 %v3073
        %4105 = vmatpush.bf16.msra.mxu0 %v3057
        %4106 = vmatpush.bf16.msra.mxu0 %v3041
        %4107 = vmatpush.bf16.msra.mxu0 %v3025
        %4108 = vmatmul.bf16.gmra.mxu0 %v1480
        %v4109 = vpop.f32.mrf.mxu0
        %v4110 = vadd.f32 %v1443, %v4109
        %v4111 = vpop.f32.mrf.mxu0
        %4112 = vdwg.mxu0
        %4113 = vmatpush.bf16.msra.mxu0 %v3265
        %4114 = vmatpush.bf16.msra.mxu0 %v3249
        %4115 = vmatpush.bf16.msra.mxu0 %v3233
        %4116 = vmatpush.bf16.msra.mxu0 %v3217
        %4117 = vmatpush.bf16.msra.mxu0 %v3201
        %4118 = vmatpush.bf16.msra.mxu0 %v3185
        %4119 = vmatpush.bf16.msra.mxu0 %v3169
        %4120 = vmatpush.bf16.msra.mxu0 %v3153
        %4121 = vmatmul.bf16.gmra.mxu0 %v1481
        %v4122 = vpop.f32.mrf.mxu0
        %v4123 = vadd.f32 %v4110, %v4122
        %v4124 = vpop.f32.mrf.mxu0
        %4125 = vdwg.mxu0
        %4126 = vmatpush.bf16.msra.mxu0 %v3393
        %4127 = vmatpush.bf16.msra.mxu0 %v3377
        %4128 = vmatpush.bf16.msra.mxu0 %v3361
        %4129 = vmatpush.bf16.msra.mxu0 %v3345
        %4130 = vmatpush.bf16.msra.mxu0 %v3329
        %4131 = vmatpush.bf16.msra.mxu0 %v3313
        %4132 = vmatpush.bf16.msra.mxu0 %v3297
        %4133 = vmatpush.bf16.msra.mxu0 %v3281
        %4134 = vmatmul.bf16.gmra.mxu0 %v1482
        %v4135 = vpop.f32.mrf.mxu0
        %v4136 = vadd.f32 %v4123, %v4135
        %v4137 = vpop.f32.mrf.mxu0
        %4138 = vdwg.mxu0
        %4139 = vmatpush.bf16.msra.mxu0 %v3521
        %4140 = vmatpush.bf16.msra.mxu0 %v3505
        %4141 = vmatpush.bf16.msra.mxu0 %v3489
        %4142 = vmatpush.bf16.msra.mxu0 %v3473
        %4143 = vmatpush.bf16.msra.mxu0 %v3457
        %4144 = vmatpush.bf16.msra.mxu0 %v3441
        %4145 = vmatpush.bf16.msra.mxu0 %v3425
        %4146 = vmatpush.bf16.msra.mxu0 %v3409
        %4147 = vmatmul.bf16.gmra.mxu0 %v1483
        %v4148 = vpop.f32.mrf.mxu0
        %v4149 = vadd.f32 %v4136, %v4148
        %v4150 = vpop.f32.mrf.mxu0
        %4151 = vdwg.mxu0
        %4152 = vmatpush.bf16.msra.mxu0 %v3138
        %4153 = vmatpush.bf16.msra.mxu0 %v3122
        %4154 = vmatpush.bf16.msra.mxu0 %v3106
        %4155 = vmatpush.bf16.msra.mxu0 %v3090
        %4156 = vmatpush.bf16.msra.mxu0 %v3074
        %4157 = vmatpush.bf16.msra.mxu0 %v3058
        %4158 = vmatpush.bf16.msra.mxu0 %v3042
        %4159 = vmatpush.bf16.msra.mxu0 %v3026
        %4160 = vmatmul.bf16.gmra.mxu0 %v1480
        %v4161 = vpop.f32.mrf.mxu0
        %v4162 = vadd.f32 %v1444, %v4161
        %v4163 = vpop.f32.mrf.mxu0
        %4164 = vdwg.mxu0
        %4165 = vmatpush.bf16.msra.mxu0 %v3266
        %4166 = vmatpush.bf16.msra.mxu0 %v3250
        %4167 = vmatpush.bf16.msra.mxu0 %v3234
        %4168 = vmatpush.bf16.msra.mxu0 %v3218
        %4169 = vmatpush.bf16.msra.mxu0 %v3202
        %4170 = vmatpush.bf16.msra.mxu0 %v3186
        %4171 = vmatpush.bf16.msra.mxu0 %v3170
        %4172 = vmatpush.bf16.msra.mxu0 %v3154
        %4173 = vmatmul.bf16.gmra.mxu0 %v1481
        %v4174 = vpop.f32.mrf.mxu0
        %v4175 = vadd.f32 %v4162, %v4174
        %v4176 = vpop.f32.mrf.mxu0
        %4177 = vdwg.mxu0
        %4178 = vmatpush.bf16.msra.mxu0 %v3394
        %4179 = vmatpush.bf16.msra.mxu0 %v3378
        %4180 = vmatpush.bf16.msra.mxu0 %v3362
        %4181 = vmatpush.bf16.msra.mxu0 %v3346
        %4182 = vmatpush.bf16.msra.mxu0 %v3330
        %4183 = vmatpush.bf16.msra.mxu0 %v3314
        %4184 = vmatpush.bf16.msra.mxu0 %v3298
        %4185 = vmatpush.bf16.msra.mxu0 %v3282
        %4186 = vmatmul.bf16.gmra.mxu0 %v1482
        %v4187 = vpop.f32.mrf.mxu0
        %v4188 = vadd.f32 %v4175, %v4187
        %v4189 = vpop.f32.mrf.mxu0
        %4190 = vdwg.mxu0
        %4191 = vmatpush.bf16.msra.mxu0 %v3522
        %4192 = vmatpush.bf16.msra.mxu0 %v3506
        %4193 = vmatpush.bf16.msra.mxu0 %v3490
        %4194 = vmatpush.bf16.msra.mxu0 %v3474
        %4195 = vmatpush.bf16.msra.mxu0 %v3458
        %4196 = vmatpush.bf16.msra.mxu0 %v3442
        %4197 = vmatpush.bf16.msra.mxu0 %v3426
        %4198 = vmatpush.bf16.msra.mxu0 %v3410
        %4199 = vmatmul.bf16.gmra.mxu0 %v1483
        %v4200 = vpop.f32.mrf.mxu0
        %v4201 = vadd.f32 %v4188, %v4200
        %v4202 = vpop.f32.mrf.mxu0
        %4203 = vdwg.mxu0
        %4204 = vmatpush.bf16.msra.mxu0 %v3139
        %4205 = vmatpush.bf16.msra.mxu0 %v3123
        %4206 = vmatpush.bf16.msra.mxu0 %v3107
        %4207 = vmatpush.bf16.msra.mxu0 %v3091
        %4208 = vmatpush.bf16.msra.mxu0 %v3075
        %4209 = vmatpush.bf16.msra.mxu0 %v3059
        %4210 = vmatpush.bf16.msra.mxu0 %v3043
        %4211 = vmatpush.bf16.msra.mxu0 %v3027
        %4212 = vmatmul.bf16.gmra.mxu0 %v1480
        %v4213 = vpop.f32.mrf.mxu0
        %v4214 = vadd.f32 %v1445, %v4213
        %v4215 = vpop.f32.mrf.mxu0
        %4216 = vdwg.mxu0
        %4217 = vmatpush.bf16.msra.mxu0 %v3267
        %4218 = vmatpush.bf16.msra.mxu0 %v3251
        %4219 = vmatpush.bf16.msra.mxu0 %v3235
        %4220 = vmatpush.bf16.msra.mxu0 %v3219
        %4221 = vmatpush.bf16.msra.mxu0 %v3203
        %4222 = vmatpush.bf16.msra.mxu0 %v3187
        %4223 = vmatpush.bf16.msra.mxu0 %v3171
        %4224 = vmatpush.bf16.msra.mxu0 %v3155
        %4225 = vmatmul.bf16.gmra.mxu0 %v1481
        %v4226 = vpop.f32.mrf.mxu0
        %v4227 = vadd.f32 %v4214, %v4226
        %v4228 = vpop.f32.mrf.mxu0
        %4229 = vdwg.mxu0
        %4230 = vmatpush.bf16.msra.mxu0 %v3395
        %4231 = vmatpush.bf16.msra.mxu0 %v3379
        %4232 = vmatpush.bf16.msra.mxu0 %v3363
        %4233 = vmatpush.bf16.msra.mxu0 %v3347
        %4234 = vmatpush.bf16.msra.mxu0 %v3331
        %4235 = vmatpush.bf16.msra.mxu0 %v3315
        %4236 = vmatpush.bf16.msra.mxu0 %v3299
        %4237 = vmatpush.bf16.msra.mxu0 %v3283
        %4238 = vmatmul.bf16.gmra.mxu0 %v1482
        %v4239 = vpop.f32.mrf.mxu0
        %v4240 = vadd.f32 %v4227, %v4239
        %v4241 = vpop.f32.mrf.mxu0
        %4242 = vdwg.mxu0
        %4243 = vmatpush.bf16.msra.mxu0 %v3523
        %4244 = vmatpush.bf16.msra.mxu0 %v3507
        %4245 = vmatpush.bf16.msra.mxu0 %v3491
        %4246 = vmatpush.bf16.msra.mxu0 %v3475
        %4247 = vmatpush.bf16.msra.mxu0 %v3459
        %4248 = vmatpush.bf16.msra.mxu0 %v3443
        %4249 = vmatpush.bf16.msra.mxu0 %v3427
        %4250 = vmatpush.bf16.msra.mxu0 %v3411
        %4251 = vmatmul.bf16.gmra.mxu0 %v1483
        %v4252 = vpop.f32.mrf.mxu0
        %v4253 = vadd.f32 %v4240, %v4252
        %v4254 = vpop.f32.mrf.mxu0
        %4255 = vdwg.mxu0
        %4256 = vmatpush.bf16.msra.mxu0 %v3140
        %4257 = vmatpush.bf16.msra.mxu0 %v3124
        %4258 = vmatpush.bf16.msra.mxu0 %v3108
        %4259 = vmatpush.bf16.msra.mxu0 %v3092
        %4260 = vmatpush.bf16.msra.mxu0 %v3076
        %4261 = vmatpush.bf16.msra.mxu0 %v3060
        %4262 = vmatpush.bf16.msra.mxu0 %v3044
        %4263 = vmatpush.bf16.msra.mxu0 %v3028
        %4264 = vmatmul.bf16.gmra.mxu0 %v1480
        %v4265 = vpop.f32.mrf.mxu0
        %v4266 = vadd.f32 %v1446, %v4265
        %v4267 = vpop.f32.mrf.mxu0
        %4268 = vdwg.mxu0
        %4269 = vmatpush.bf16.msra.mxu0 %v3268
        %4270 = vmatpush.bf16.msra.mxu0 %v3252
        %4271 = vmatpush.bf16.msra.mxu0 %v3236
        %4272 = vmatpush.bf16.msra.mxu0 %v3220
        %4273 = vmatpush.bf16.msra.mxu0 %v3204
        %4274 = vmatpush.bf16.msra.mxu0 %v3188
        %4275 = vmatpush.bf16.msra.mxu0 %v3172
        %4276 = vmatpush.bf16.msra.mxu0 %v3156
        %4277 = vmatmul.bf16.gmra.mxu0 %v1481
        %v4278 = vpop.f32.mrf.mxu0
        %v4279 = vadd.f32 %v4266, %v4278
        %v4280 = vpop.f32.mrf.mxu0
        %4281 = vdwg.mxu0
        %4282 = vmatpush.bf16.msra.mxu0 %v3396
        %4283 = vmatpush.bf16.msra.mxu0 %v3380
        %4284 = vmatpush.bf16.msra.mxu0 %v3364
        %4285 = vmatpush.bf16.msra.mxu0 %v3348
        %4286 = vmatpush.bf16.msra.mxu0 %v3332
        %4287 = vmatpush.bf16.msra.mxu0 %v3316
        %4288 = vmatpush.bf16.msra.mxu0 %v3300
        %4289 = vmatpush.bf16.msra.mxu0 %v3284
        %4290 = vmatmul.bf16.gmra.mxu0 %v1482
        %v4291 = vpop.f32.mrf.mxu0
        %v4292 = vadd.f32 %v4279, %v4291
        %v4293 = vpop.f32.mrf.mxu0
        %4294 = vdwg.mxu0
        %4295 = vmatpush.bf16.msra.mxu0 %v3524
        %4296 = vmatpush.bf16.msra.mxu0 %v3508
        %4297 = vmatpush.bf16.msra.mxu0 %v3492
        %4298 = vmatpush.bf16.msra.mxu0 %v3476
        %4299 = vmatpush.bf16.msra.mxu0 %v3460
        %4300 = vmatpush.bf16.msra.mxu0 %v3444
        %4301 = vmatpush.bf16.msra.mxu0 %v3428
        %4302 = vmatpush.bf16.msra.mxu0 %v3412
        %4303 = vmatmul.bf16.gmra.mxu0 %v1483
        %v4304 = vpop.f32.mrf.mxu0
        %v4305 = vadd.f32 %v4292, %v4304
        %v4306 = vpop.f32.mrf.mxu0
        %4307 = vdwg.mxu0
        %4308 = vmatpush.bf16.msra.mxu0 %v3141
        %4309 = vmatpush.bf16.msra.mxu0 %v3125
        %4310 = vmatpush.bf16.msra.mxu0 %v3109
        %4311 = vmatpush.bf16.msra.mxu0 %v3093
        %4312 = vmatpush.bf16.msra.mxu0 %v3077
        %4313 = vmatpush.bf16.msra.mxu0 %v3061
        %4314 = vmatpush.bf16.msra.mxu0 %v3045
        %4315 = vmatpush.bf16.msra.mxu0 %v3029
        %4316 = vmatmul.bf16.gmra.mxu0 %v1480
        %v4317 = vpop.f32.mrf.mxu0
        %v4318 = vadd.f32 %v1447, %v4317
        %v4319 = vpop.f32.mrf.mxu0
        %4320 = vdwg.mxu0
        %4321 = vmatpush.bf16.msra.mxu0 %v3269
        %4322 = vmatpush.bf16.msra.mxu0 %v3253
        %4323 = vmatpush.bf16.msra.mxu0 %v3237
        %4324 = vmatpush.bf16.msra.mxu0 %v3221
        %4325 = vmatpush.bf16.msra.mxu0 %v3205
        %4326 = vmatpush.bf16.msra.mxu0 %v3189
        %4327 = vmatpush.bf16.msra.mxu0 %v3173
        %4328 = vmatpush.bf16.msra.mxu0 %v3157
        %4329 = vmatmul.bf16.gmra.mxu0 %v1481
        %v4330 = vpop.f32.mrf.mxu0
        %v4331 = vadd.f32 %v4318, %v4330
        %v4332 = vpop.f32.mrf.mxu0
        %4333 = vdwg.mxu0
        %4334 = vmatpush.bf16.msra.mxu0 %v3397
        %4335 = vmatpush.bf16.msra.mxu0 %v3381
        %4336 = vmatpush.bf16.msra.mxu0 %v3365
        %4337 = vmatpush.bf16.msra.mxu0 %v3349
        %4338 = vmatpush.bf16.msra.mxu0 %v3333
        %4339 = vmatpush.bf16.msra.mxu0 %v3317
        %4340 = vmatpush.bf16.msra.mxu0 %v3301
        %4341 = vmatpush.bf16.msra.mxu0 %v3285
        %4342 = vmatmul.bf16.gmra.mxu0 %v1482
        %v4343 = vpop.f32.mrf.mxu0
        %v4344 = vadd.f32 %v4331, %v4343
        %v4345 = vpop.f32.mrf.mxu0
        %4346 = vdwg.mxu0
        %4347 = vmatpush.bf16.msra.mxu0 %v3525
        %4348 = vmatpush.bf16.msra.mxu0 %v3509
        %4349 = vmatpush.bf16.msra.mxu0 %v3493
        %4350 = vmatpush.bf16.msra.mxu0 %v3477
        %4351 = vmatpush.bf16.msra.mxu0 %v3461
        %4352 = vmatpush.bf16.msra.mxu0 %v3445
        %4353 = vmatpush.bf16.msra.mxu0 %v3429
        %4354 = vmatpush.bf16.msra.mxu0 %v3413
        %4355 = vmatmul.bf16.gmra.mxu0 %v1483
        %v4356 = vpop.f32.mrf.mxu0
        %v4357 = vadd.f32 %v4344, %v4356
        %v4358 = vpop.f32.mrf.mxu0
        %4359 = vdwg.mxu0
        %4360 = vmatpush.bf16.msra.mxu0 %v3142
        %4361 = vmatpush.bf16.msra.mxu0 %v3126
        %4362 = vmatpush.bf16.msra.mxu0 %v3110
        %4363 = vmatpush.bf16.msra.mxu0 %v3094
        %4364 = vmatpush.bf16.msra.mxu0 %v3078
        %4365 = vmatpush.bf16.msra.mxu0 %v3062
        %4366 = vmatpush.bf16.msra.mxu0 %v3046
        %4367 = vmatpush.bf16.msra.mxu0 %v3030
        %4368 = vmatmul.bf16.gmra.mxu0 %v1480
        %v4369 = vpop.f32.mrf.mxu0
        %v4370 = vadd.f32 %v1448, %v4369
        %v4371 = vpop.f32.mrf.mxu0
        %4372 = vdwg.mxu0
        %4373 = vmatpush.bf16.msra.mxu0 %v3270
        %4374 = vmatpush.bf16.msra.mxu0 %v3254
        %4375 = vmatpush.bf16.msra.mxu0 %v3238
        %4376 = vmatpush.bf16.msra.mxu0 %v3222
        %4377 = vmatpush.bf16.msra.mxu0 %v3206
        %4378 = vmatpush.bf16.msra.mxu0 %v3190
        %4379 = vmatpush.bf16.msra.mxu0 %v3174
        %4380 = vmatpush.bf16.msra.mxu0 %v3158
        %4381 = vmatmul.bf16.gmra.mxu0 %v1481
        %v4382 = vpop.f32.mrf.mxu0
        %v4383 = vadd.f32 %v4370, %v4382
        %v4384 = vpop.f32.mrf.mxu0
        %4385 = vdwg.mxu0
        %4386 = vmatpush.bf16.msra.mxu0 %v3398
        %4387 = vmatpush.bf16.msra.mxu0 %v3382
        %4388 = vmatpush.bf16.msra.mxu0 %v3366
        %4389 = vmatpush.bf16.msra.mxu0 %v3350
        %4390 = vmatpush.bf16.msra.mxu0 %v3334
        %4391 = vmatpush.bf16.msra.mxu0 %v3318
        %4392 = vmatpush.bf16.msra.mxu0 %v3302
        %4393 = vmatpush.bf16.msra.mxu0 %v3286
        %4394 = vmatmul.bf16.gmra.mxu0 %v1482
        %v4395 = vpop.f32.mrf.mxu0
        %v4396 = vadd.f32 %v4383, %v4395
        %v4397 = vpop.f32.mrf.mxu0
        %4398 = vdwg.mxu0
        %4399 = vmatpush.bf16.msra.mxu0 %v3526
        %4400 = vmatpush.bf16.msra.mxu0 %v3510
        %4401 = vmatpush.bf16.msra.mxu0 %v3494
        %4402 = vmatpush.bf16.msra.mxu0 %v3478
        %4403 = vmatpush.bf16.msra.mxu0 %v3462
        %4404 = vmatpush.bf16.msra.mxu0 %v3446
        %4405 = vmatpush.bf16.msra.mxu0 %v3430
        %4406 = vmatpush.bf16.msra.mxu0 %v3414
        %4407 = vmatmul.bf16.gmra.mxu0 %v1483
        %v4408 = vpop.f32.mrf.mxu0
        %v4409 = vadd.f32 %v4396, %v4408
        %v4410 = vpop.f32.mrf.mxu0
        %4411 = vdwg.mxu0
        %4412 = vmatpush.bf16.msra.mxu0 %v3143
        %4413 = vmatpush.bf16.msra.mxu0 %v3127
        %4414 = vmatpush.bf16.msra.mxu0 %v3111
        %4415 = vmatpush.bf16.msra.mxu0 %v3095
        %4416 = vmatpush.bf16.msra.mxu0 %v3079
        %4417 = vmatpush.bf16.msra.mxu0 %v3063
        %4418 = vmatpush.bf16.msra.mxu0 %v3047
        %4419 = vmatpush.bf16.msra.mxu0 %v3031
        %4420 = vmatmul.bf16.gmra.mxu0 %v1480
        %v4421 = vpop.f32.mrf.mxu0
        %v4422 = vadd.f32 %v1449, %v4421
        %v4423 = vpop.f32.mrf.mxu0
        %4424 = vdwg.mxu0
        %4425 = vmatpush.bf16.msra.mxu0 %v3271
        %4426 = vmatpush.bf16.msra.mxu0 %v3255
        %4427 = vmatpush.bf16.msra.mxu0 %v3239
        %4428 = vmatpush.bf16.msra.mxu0 %v3223
        %4429 = vmatpush.bf16.msra.mxu0 %v3207
        %4430 = vmatpush.bf16.msra.mxu0 %v3191
        %4431 = vmatpush.bf16.msra.mxu0 %v3175
        %4432 = vmatpush.bf16.msra.mxu0 %v3159
        %4433 = vmatmul.bf16.gmra.mxu0 %v1481
        %v4434 = vpop.f32.mrf.mxu0
        %v4435 = vadd.f32 %v4422, %v4434
        %v4436 = vpop.f32.mrf.mxu0
        %4437 = vdwg.mxu0
        %4438 = vmatpush.bf16.msra.mxu0 %v3399
        %4439 = vmatpush.bf16.msra.mxu0 %v3383
        %4440 = vmatpush.bf16.msra.mxu0 %v3367
        %4441 = vmatpush.bf16.msra.mxu0 %v3351
        %4442 = vmatpush.bf16.msra.mxu0 %v3335
        %4443 = vmatpush.bf16.msra.mxu0 %v3319
        %4444 = vmatpush.bf16.msra.mxu0 %v3303
        %4445 = vmatpush.bf16.msra.mxu0 %v3287
        %4446 = vmatmul.bf16.gmra.mxu0 %v1482
        %v4447 = vpop.f32.mrf.mxu0
        %v4448 = vadd.f32 %v4435, %v4447
        %v4449 = vpop.f32.mrf.mxu0
        %4450 = vdwg.mxu0
        %4451 = vmatpush.bf16.msra.mxu0 %v3527
        %4452 = vmatpush.bf16.msra.mxu0 %v3511
        %4453 = vmatpush.bf16.msra.mxu0 %v3495
        %4454 = vmatpush.bf16.msra.mxu0 %v3479
        %4455 = vmatpush.bf16.msra.mxu0 %v3463
        %4456 = vmatpush.bf16.msra.mxu0 %v3447
        %4457 = vmatpush.bf16.msra.mxu0 %v3431
        %4458 = vmatpush.bf16.msra.mxu0 %v3415
        %4459 = vmatmul.bf16.gmra.mxu0 %v1483
        %v4460 = vpop.f32.mrf.mxu0
        %v4461 = vadd.f32 %v4448, %v4460
        %v4462 = vpop.f32.mrf.mxu0
        %4463 = vdwg.mxu0
        %4464 = vmatpush.bf16.msra.mxu0 %v3144
        %4465 = vmatpush.bf16.msra.mxu0 %v3128
        %4466 = vmatpush.bf16.msra.mxu0 %v3112
        %4467 = vmatpush.bf16.msra.mxu0 %v3096
        %4468 = vmatpush.bf16.msra.mxu0 %v3080
        %4469 = vmatpush.bf16.msra.mxu0 %v3064
        %4470 = vmatpush.bf16.msra.mxu0 %v3048
        %4471 = vmatpush.bf16.msra.mxu0 %v3032
        %4472 = vmatmul.bf16.gmra.mxu0 %v1480
        %v4473 = vpop.f32.mrf.mxu0
        %v4474 = vadd.f32 %v1450, %v4473
        %v4475 = vpop.f32.mrf.mxu0
        %4476 = vdwg.mxu0
        %4477 = vmatpush.bf16.msra.mxu0 %v3272
        %4478 = vmatpush.bf16.msra.mxu0 %v3256
        %4479 = vmatpush.bf16.msra.mxu0 %v3240
        %4480 = vmatpush.bf16.msra.mxu0 %v3224
        %4481 = vmatpush.bf16.msra.mxu0 %v3208
        %4482 = vmatpush.bf16.msra.mxu0 %v3192
        %4483 = vmatpush.bf16.msra.mxu0 %v3176
        %4484 = vmatpush.bf16.msra.mxu0 %v3160
        %4485 = vmatmul.bf16.gmra.mxu0 %v1481
        %v4486 = vpop.f32.mrf.mxu0
        %v4487 = vadd.f32 %v4474, %v4486
        %v4488 = vpop.f32.mrf.mxu0
        %4489 = vdwg.mxu0
        %4490 = vmatpush.bf16.msra.mxu0 %v3400
        %4491 = vmatpush.bf16.msra.mxu0 %v3384
        %4492 = vmatpush.bf16.msra.mxu0 %v3368
        %4493 = vmatpush.bf16.msra.mxu0 %v3352
        %4494 = vmatpush.bf16.msra.mxu0 %v3336
        %4495 = vmatpush.bf16.msra.mxu0 %v3320
        %4496 = vmatpush.bf16.msra.mxu0 %v3304
        %4497 = vmatpush.bf16.msra.mxu0 %v3288
        %4498 = vmatmul.bf16.gmra.mxu0 %v1482
        %v4499 = vpop.f32.mrf.mxu0
        %v4500 = vadd.f32 %v4487, %v4499
        %v4501 = vpop.f32.mrf.mxu0
        %4502 = vdwg.mxu0
        %4503 = vmatpush.bf16.msra.mxu0 %v3528
        %4504 = vmatpush.bf16.msra.mxu0 %v3512
        %4505 = vmatpush.bf16.msra.mxu0 %v3496
        %4506 = vmatpush.bf16.msra.mxu0 %v3480
        %4507 = vmatpush.bf16.msra.mxu0 %v3464
        %4508 = vmatpush.bf16.msra.mxu0 %v3448
        %4509 = vmatpush.bf16.msra.mxu0 %v3432
        %4510 = vmatpush.bf16.msra.mxu0 %v3416
        %4511 = vmatmul.bf16.gmra.mxu0 %v1483
        %v4512 = vpop.f32.mrf.mxu0
        %v4513 = vadd.f32 %v4500, %v4512
        %v4514 = vpop.f32.mrf.mxu0
        %4515 = vdwg.mxu0
        %4516 = vmatpush.bf16.msra.mxu0 %v3145
        %4517 = vmatpush.bf16.msra.mxu0 %v3129
        %4518 = vmatpush.bf16.msra.mxu0 %v3113
        %4519 = vmatpush.bf16.msra.mxu0 %v3097
        %4520 = vmatpush.bf16.msra.mxu0 %v3081
        %4521 = vmatpush.bf16.msra.mxu0 %v3065
        %4522 = vmatpush.bf16.msra.mxu0 %v3049
        %4523 = vmatpush.bf16.msra.mxu0 %v3033
        %4524 = vmatmul.bf16.gmra.mxu0 %v1480
        %v4525 = vpop.f32.mrf.mxu0
        %v4526 = vadd.f32 %v1451, %v4525
        %v4527 = vpop.f32.mrf.mxu0
        %4528 = vdwg.mxu0
        %4529 = vmatpush.bf16.msra.mxu0 %v3273
        %4530 = vmatpush.bf16.msra.mxu0 %v3257
        %4531 = vmatpush.bf16.msra.mxu0 %v3241
        %4532 = vmatpush.bf16.msra.mxu0 %v3225
        %4533 = vmatpush.bf16.msra.mxu0 %v3209
        %4534 = vmatpush.bf16.msra.mxu0 %v3193
        %4535 = vmatpush.bf16.msra.mxu0 %v3177
        %4536 = vmatpush.bf16.msra.mxu0 %v3161
        %4537 = vmatmul.bf16.gmra.mxu0 %v1481
        %v4538 = vpop.f32.mrf.mxu0
        %v4539 = vadd.f32 %v4526, %v4538
        %v4540 = vpop.f32.mrf.mxu0
        %4541 = vdwg.mxu0
        %4542 = vmatpush.bf16.msra.mxu0 %v3401
        %4543 = vmatpush.bf16.msra.mxu0 %v3385
        %4544 = vmatpush.bf16.msra.mxu0 %v3369
        %4545 = vmatpush.bf16.msra.mxu0 %v3353
        %4546 = vmatpush.bf16.msra.mxu0 %v3337
        %4547 = vmatpush.bf16.msra.mxu0 %v3321
        %4548 = vmatpush.bf16.msra.mxu0 %v3305
        %4549 = vmatpush.bf16.msra.mxu0 %v3289
        %4550 = vmatmul.bf16.gmra.mxu0 %v1482
        %v4551 = vpop.f32.mrf.mxu0
        %v4552 = vadd.f32 %v4539, %v4551
        %v4553 = vpop.f32.mrf.mxu0
        %4554 = vdwg.mxu0
        %4555 = vmatpush.bf16.msra.mxu0 %v3529
        %4556 = vmatpush.bf16.msra.mxu0 %v3513
        %4557 = vmatpush.bf16.msra.mxu0 %v3497
        %4558 = vmatpush.bf16.msra.mxu0 %v3481
        %4559 = vmatpush.bf16.msra.mxu0 %v3465
        %4560 = vmatpush.bf16.msra.mxu0 %v3449
        %4561 = vmatpush.bf16.msra.mxu0 %v3433
        %4562 = vmatpush.bf16.msra.mxu0 %v3417
        %4563 = vmatmul.bf16.gmra.mxu0 %v1483
        %v4564 = vpop.f32.mrf.mxu0
        %v4565 = vadd.f32 %v4552, %v4564
        %v4566 = vpop.f32.mrf.mxu0
        %4567 = vdwg.mxu0
        %4568 = vmatpush.bf16.msra.mxu0 %v3146
        %4569 = vmatpush.bf16.msra.mxu0 %v3130
        %4570 = vmatpush.bf16.msra.mxu0 %v3114
        %4571 = vmatpush.bf16.msra.mxu0 %v3098
        %4572 = vmatpush.bf16.msra.mxu0 %v3082
        %4573 = vmatpush.bf16.msra.mxu0 %v3066
        %4574 = vmatpush.bf16.msra.mxu0 %v3050
        %4575 = vmatpush.bf16.msra.mxu0 %v3034
        %4576 = vmatmul.bf16.gmra.mxu0 %v1480
        %v4577 = vpop.f32.mrf.mxu0
        %v4578 = vadd.f32 %v1452, %v4577
        %v4579 = vpop.f32.mrf.mxu0
        %4580 = vdwg.mxu0
        %4581 = vmatpush.bf16.msra.mxu0 %v3274
        %4582 = vmatpush.bf16.msra.mxu0 %v3258
        %4583 = vmatpush.bf16.msra.mxu0 %v3242
        %4584 = vmatpush.bf16.msra.mxu0 %v3226
        %4585 = vmatpush.bf16.msra.mxu0 %v3210
        %4586 = vmatpush.bf16.msra.mxu0 %v3194
        %4587 = vmatpush.bf16.msra.mxu0 %v3178
        %4588 = vmatpush.bf16.msra.mxu0 %v3162
        %4589 = vmatmul.bf16.gmra.mxu0 %v1481
        %v4590 = vpop.f32.mrf.mxu0
        %v4591 = vadd.f32 %v4578, %v4590
        %v4592 = vpop.f32.mrf.mxu0
        %4593 = vdwg.mxu0
        %4594 = vmatpush.bf16.msra.mxu0 %v3402
        %4595 = vmatpush.bf16.msra.mxu0 %v3386
        %4596 = vmatpush.bf16.msra.mxu0 %v3370
        %4597 = vmatpush.bf16.msra.mxu0 %v3354
        %4598 = vmatpush.bf16.msra.mxu0 %v3338
        %4599 = vmatpush.bf16.msra.mxu0 %v3322
        %4600 = vmatpush.bf16.msra.mxu0 %v3306
        %4601 = vmatpush.bf16.msra.mxu0 %v3290
        %4602 = vmatmul.bf16.gmra.mxu0 %v1482
        %v4603 = vpop.f32.mrf.mxu0
        %v4604 = vadd.f32 %v4591, %v4603
        %v4605 = vpop.f32.mrf.mxu0
        %4606 = vdwg.mxu0
        %4607 = vmatpush.bf16.msra.mxu0 %v3530
        %4608 = vmatpush.bf16.msra.mxu0 %v3514
        %4609 = vmatpush.bf16.msra.mxu0 %v3498
        %4610 = vmatpush.bf16.msra.mxu0 %v3482
        %4611 = vmatpush.bf16.msra.mxu0 %v3466
        %4612 = vmatpush.bf16.msra.mxu0 %v3450
        %4613 = vmatpush.bf16.msra.mxu0 %v3434
        %4614 = vmatpush.bf16.msra.mxu0 %v3418
        %4615 = vmatmul.bf16.gmra.mxu0 %v1483
        %v4616 = vpop.f32.mrf.mxu0
        %v4617 = vadd.f32 %v4604, %v4616
        %v4618 = vpop.f32.mrf.mxu0
        %4619 = vdwg.mxu0
        %4620 = vmatpush.bf16.msra.mxu0 %v3147
        %4621 = vmatpush.bf16.msra.mxu0 %v3131
        %4622 = vmatpush.bf16.msra.mxu0 %v3115
        %4623 = vmatpush.bf16.msra.mxu0 %v3099
        %4624 = vmatpush.bf16.msra.mxu0 %v3083
        %4625 = vmatpush.bf16.msra.mxu0 %v3067
        %4626 = vmatpush.bf16.msra.mxu0 %v3051
        %4627 = vmatpush.bf16.msra.mxu0 %v3035
        %4628 = vmatmul.bf16.gmra.mxu0 %v1480
        %v4629 = vpop.f32.mrf.mxu0
        %v4630 = vadd.f32 %v1453, %v4629
        %v4631 = vpop.f32.mrf.mxu0
        %4632 = vdwg.mxu0
        %4633 = vmatpush.bf16.msra.mxu0 %v3275
        %4634 = vmatpush.bf16.msra.mxu0 %v3259
        %4635 = vmatpush.bf16.msra.mxu0 %v3243
        %4636 = vmatpush.bf16.msra.mxu0 %v3227
        %4637 = vmatpush.bf16.msra.mxu0 %v3211
        %4638 = vmatpush.bf16.msra.mxu0 %v3195
        %4639 = vmatpush.bf16.msra.mxu0 %v3179
        %4640 = vmatpush.bf16.msra.mxu0 %v3163
        %4641 = vmatmul.bf16.gmra.mxu0 %v1481
        %v4642 = vpop.f32.mrf.mxu0
        %v4643 = vadd.f32 %v4630, %v4642
        %v4644 = vpop.f32.mrf.mxu0
        %4645 = vdwg.mxu0
        %4646 = vmatpush.bf16.msra.mxu0 %v3403
        %4647 = vmatpush.bf16.msra.mxu0 %v3387
        %4648 = vmatpush.bf16.msra.mxu0 %v3371
        %4649 = vmatpush.bf16.msra.mxu0 %v3355
        %4650 = vmatpush.bf16.msra.mxu0 %v3339
        %4651 = vmatpush.bf16.msra.mxu0 %v3323
        %4652 = vmatpush.bf16.msra.mxu0 %v3307
        %4653 = vmatpush.bf16.msra.mxu0 %v3291
        %4654 = vmatmul.bf16.gmra.mxu0 %v1482
        %v4655 = vpop.f32.mrf.mxu0
        %v4656 = vadd.f32 %v4643, %v4655
        %v4657 = vpop.f32.mrf.mxu0
        %4658 = vdwg.mxu0
        %4659 = vmatpush.bf16.msra.mxu0 %v3531
        %4660 = vmatpush.bf16.msra.mxu0 %v3515
        %4661 = vmatpush.bf16.msra.mxu0 %v3499
        %4662 = vmatpush.bf16.msra.mxu0 %v3483
        %4663 = vmatpush.bf16.msra.mxu0 %v3467
        %4664 = vmatpush.bf16.msra.mxu0 %v3451
        %4665 = vmatpush.bf16.msra.mxu0 %v3435
        %4666 = vmatpush.bf16.msra.mxu0 %v3419
        %4667 = vmatmul.bf16.gmra.mxu0 %v1483
        %v4668 = vpop.f32.mrf.mxu0
        %v4669 = vadd.f32 %v4656, %v4668
        %v4670 = vpop.f32.mrf.mxu0
        %4671 = vdwg.mxu0
        %4672 = vmatpush.bf16.msra.mxu0 %v3148
        %4673 = vmatpush.bf16.msra.mxu0 %v3132
        %4674 = vmatpush.bf16.msra.mxu0 %v3116
        %4675 = vmatpush.bf16.msra.mxu0 %v3100
        %4676 = vmatpush.bf16.msra.mxu0 %v3084
        %4677 = vmatpush.bf16.msra.mxu0 %v3068
        %4678 = vmatpush.bf16.msra.mxu0 %v3052
        %4679 = vmatpush.bf16.msra.mxu0 %v3036
        %4680 = vmatmul.bf16.gmra.mxu0 %v1480
        %v4681 = vpop.f32.mrf.mxu0
        %v4682 = vadd.f32 %v1454, %v4681
        %v4683 = vpop.f32.mrf.mxu0
        %4684 = vdwg.mxu0
        %4685 = vmatpush.bf16.msra.mxu0 %v3276
        %4686 = vmatpush.bf16.msra.mxu0 %v3260
        %4687 = vmatpush.bf16.msra.mxu0 %v3244
        %4688 = vmatpush.bf16.msra.mxu0 %v3228
        %4689 = vmatpush.bf16.msra.mxu0 %v3212
        %4690 = vmatpush.bf16.msra.mxu0 %v3196
        %4691 = vmatpush.bf16.msra.mxu0 %v3180
        %4692 = vmatpush.bf16.msra.mxu0 %v3164
        %4693 = vmatmul.bf16.gmra.mxu0 %v1481
        %v4694 = vpop.f32.mrf.mxu0
        %v4695 = vadd.f32 %v4682, %v4694
        %v4696 = vpop.f32.mrf.mxu0
        %4697 = vdwg.mxu0
        %4698 = vmatpush.bf16.msra.mxu0 %v3404
        %4699 = vmatpush.bf16.msra.mxu0 %v3388
        %4700 = vmatpush.bf16.msra.mxu0 %v3372
        %4701 = vmatpush.bf16.msra.mxu0 %v3356
        %4702 = vmatpush.bf16.msra.mxu0 %v3340
        %4703 = vmatpush.bf16.msra.mxu0 %v3324
        %4704 = vmatpush.bf16.msra.mxu0 %v3308
        %4705 = vmatpush.bf16.msra.mxu0 %v3292
        %4706 = vmatmul.bf16.gmra.mxu0 %v1482
        %v4707 = vpop.f32.mrf.mxu0
        %v4708 = vadd.f32 %v4695, %v4707
        %v4709 = vpop.f32.mrf.mxu0
        %4710 = vdwg.mxu0
        %4711 = vmatpush.bf16.msra.mxu0 %v3532
        %4712 = vmatpush.bf16.msra.mxu0 %v3516
        %4713 = vmatpush.bf16.msra.mxu0 %v3500
        %4714 = vmatpush.bf16.msra.mxu0 %v3484
        %4715 = vmatpush.bf16.msra.mxu0 %v3468
        %4716 = vmatpush.bf16.msra.mxu0 %v3452
        %4717 = vmatpush.bf16.msra.mxu0 %v3436
        %4718 = vmatpush.bf16.msra.mxu0 %v3420
        %4719 = vmatmul.bf16.gmra.mxu0 %v1483
        %v4720 = vpop.f32.mrf.mxu0
        %v4721 = vadd.f32 %v4708, %v4720
        %v4722 = vpop.f32.mrf.mxu0
        %4723 = vdwg.mxu0
        %4724 = vmatpush.bf16.msra.mxu0 %v3149
        %4725 = vmatpush.bf16.msra.mxu0 %v3133
        %4726 = vmatpush.bf16.msra.mxu0 %v3117
        %4727 = vmatpush.bf16.msra.mxu0 %v3101
        %4728 = vmatpush.bf16.msra.mxu0 %v3085
        %4729 = vmatpush.bf16.msra.mxu0 %v3069
        %4730 = vmatpush.bf16.msra.mxu0 %v3053
        %4731 = vmatpush.bf16.msra.mxu0 %v3037
        %4732 = vmatmul.bf16.gmra.mxu0 %v1480
        %v4733 = vpop.f32.mrf.mxu0
        %v4734 = vadd.f32 %v1455, %v4733
        %v4735 = vpop.f32.mrf.mxu0
        %4736 = vdwg.mxu0
        %4737 = vmatpush.bf16.msra.mxu0 %v3277
        %4738 = vmatpush.bf16.msra.mxu0 %v3261
        %4739 = vmatpush.bf16.msra.mxu0 %v3245
        %4740 = vmatpush.bf16.msra.mxu0 %v3229
        %4741 = vmatpush.bf16.msra.mxu0 %v3213
        %4742 = vmatpush.bf16.msra.mxu0 %v3197
        %4743 = vmatpush.bf16.msra.mxu0 %v3181
        %4744 = vmatpush.bf16.msra.mxu0 %v3165
        %4745 = vmatmul.bf16.gmra.mxu0 %v1481
        %v4746 = vpop.f32.mrf.mxu0
        %v4747 = vadd.f32 %v4734, %v4746
        %v4748 = vpop.f32.mrf.mxu0
        %4749 = vdwg.mxu0
        %4750 = vmatpush.bf16.msra.mxu0 %v3405
        %4751 = vmatpush.bf16.msra.mxu0 %v3389
        %4752 = vmatpush.bf16.msra.mxu0 %v3373
        %4753 = vmatpush.bf16.msra.mxu0 %v3357
        %4754 = vmatpush.bf16.msra.mxu0 %v3341
        %4755 = vmatpush.bf16.msra.mxu0 %v3325
        %4756 = vmatpush.bf16.msra.mxu0 %v3309
        %4757 = vmatpush.bf16.msra.mxu0 %v3293
        %4758 = vmatmul.bf16.gmra.mxu0 %v1482
        %v4759 = vpop.f32.mrf.mxu0
        %v4760 = vadd.f32 %v4747, %v4759
        %v4761 = vpop.f32.mrf.mxu0
        %4762 = vdwg.mxu0
        %4763 = vmatpush.bf16.msra.mxu0 %v3533
        %4764 = vmatpush.bf16.msra.mxu0 %v3517
        %4765 = vmatpush.bf16.msra.mxu0 %v3501
        %4766 = vmatpush.bf16.msra.mxu0 %v3485
        %4767 = vmatpush.bf16.msra.mxu0 %v3469
        %4768 = vmatpush.bf16.msra.mxu0 %v3453
        %4769 = vmatpush.bf16.msra.mxu0 %v3437
        %4770 = vmatpush.bf16.msra.mxu0 %v3421
        %4771 = vmatmul.bf16.gmra.mxu0 %v1483
        %v4772 = vpop.f32.mrf.mxu0
        %v4773 = vadd.f32 %v4760, %v4772
        %v4774 = vpop.f32.mrf.mxu0
        %4775 = vdwg.mxu0
        %4776 = vmatpush.bf16.msra.mxu0 %v3150
        %4777 = vmatpush.bf16.msra.mxu0 %v3134
        %4778 = vmatpush.bf16.msra.mxu0 %v3118
        %4779 = vmatpush.bf16.msra.mxu0 %v3102
        %4780 = vmatpush.bf16.msra.mxu0 %v3086
        %4781 = vmatpush.bf16.msra.mxu0 %v3070
        %4782 = vmatpush.bf16.msra.mxu0 %v3054
        %4783 = vmatpush.bf16.msra.mxu0 %v3038
        %4784 = vmatmul.bf16.gmra.mxu0 %v1480
        %v4785 = vpop.f32.mrf.mxu0
        %v4786 = vadd.f32 %v1456, %v4785
        %v4787 = vpop.f32.mrf.mxu0
        %4788 = vdwg.mxu0
        %4789 = vmatpush.bf16.msra.mxu0 %v3278
        %4790 = vmatpush.bf16.msra.mxu0 %v3262
        %4791 = vmatpush.bf16.msra.mxu0 %v3246
        %4792 = vmatpush.bf16.msra.mxu0 %v3230
        %4793 = vmatpush.bf16.msra.mxu0 %v3214
        %4794 = vmatpush.bf16.msra.mxu0 %v3198
        %4795 = vmatpush.bf16.msra.mxu0 %v3182
        %4796 = vmatpush.bf16.msra.mxu0 %v3166
        %4797 = vmatmul.bf16.gmra.mxu0 %v1481
        %v4798 = vpop.f32.mrf.mxu0
        %v4799 = vadd.f32 %v4786, %v4798
        %v4800 = vpop.f32.mrf.mxu0
        %4801 = vdwg.mxu0
        %4802 = vmatpush.bf16.msra.mxu0 %v3406
        %4803 = vmatpush.bf16.msra.mxu0 %v3390
        %4804 = vmatpush.bf16.msra.mxu0 %v3374
        %4805 = vmatpush.bf16.msra.mxu0 %v3358
        %4806 = vmatpush.bf16.msra.mxu0 %v3342
        %4807 = vmatpush.bf16.msra.mxu0 %v3326
        %4808 = vmatpush.bf16.msra.mxu0 %v3310
        %4809 = vmatpush.bf16.msra.mxu0 %v3294
        %4810 = vmatmul.bf16.gmra.mxu0 %v1482
        %v4811 = vpop.f32.mrf.mxu0
        %v4812 = vadd.f32 %v4799, %v4811
        %v4813 = vpop.f32.mrf.mxu0
        %4814 = vdwg.mxu0
        %4815 = vmatpush.bf16.msra.mxu0 %v3534
        %4816 = vmatpush.bf16.msra.mxu0 %v3518
        %4817 = vmatpush.bf16.msra.mxu0 %v3502
        %4818 = vmatpush.bf16.msra.mxu0 %v3486
        %4819 = vmatpush.bf16.msra.mxu0 %v3470
        %4820 = vmatpush.bf16.msra.mxu0 %v3454
        %4821 = vmatpush.bf16.msra.mxu0 %v3438
        %4822 = vmatpush.bf16.msra.mxu0 %v3422
        %4823 = vmatmul.bf16.gmra.mxu0 %v1483
        %v4824 = vpop.f32.mrf.mxu0
        %v4825 = vadd.f32 %v4812, %v4824
        %v4826 = vpop.f32.mrf.mxu0
        %4827 = vdwg.mxu0
        %4828 = vmatpush.bf16.msra.mxu0 %v3151
        %4829 = vmatpush.bf16.msra.mxu0 %v3135
        %4830 = vmatpush.bf16.msra.mxu0 %v3119
        %4831 = vmatpush.bf16.msra.mxu0 %v3103
        %4832 = vmatpush.bf16.msra.mxu0 %v3087
        %4833 = vmatpush.bf16.msra.mxu0 %v3071
        %4834 = vmatpush.bf16.msra.mxu0 %v3055
        %4835 = vmatpush.bf16.msra.mxu0 %v3039
        %4836 = vmatmul.bf16.gmra.mxu0 %v1480
        %v4837 = vpop.f32.mrf.mxu0
        %v4838 = vadd.f32 %v1457, %v4837
        %v4839 = vpop.f32.mrf.mxu0
        %4840 = vdwg.mxu0
        %4841 = vmatpush.bf16.msra.mxu0 %v3279
        %4842 = vmatpush.bf16.msra.mxu0 %v3263
        %4843 = vmatpush.bf16.msra.mxu0 %v3247
        %4844 = vmatpush.bf16.msra.mxu0 %v3231
        %4845 = vmatpush.bf16.msra.mxu0 %v3215
        %4846 = vmatpush.bf16.msra.mxu0 %v3199
        %4847 = vmatpush.bf16.msra.mxu0 %v3183
        %4848 = vmatpush.bf16.msra.mxu0 %v3167
        %4849 = vmatmul.bf16.gmra.mxu0 %v1481
        %v4850 = vpop.f32.mrf.mxu0
        %v4851 = vadd.f32 %v4838, %v4850
        %v4852 = vpop.f32.mrf.mxu0
        %4853 = vdwg.mxu0
        %4854 = vmatpush.bf16.msra.mxu0 %v3407
        %4855 = vmatpush.bf16.msra.mxu0 %v3391
        %4856 = vmatpush.bf16.msra.mxu0 %v3375
        %4857 = vmatpush.bf16.msra.mxu0 %v3359
        %4858 = vmatpush.bf16.msra.mxu0 %v3343
        %4859 = vmatpush.bf16.msra.mxu0 %v3327
        %4860 = vmatpush.bf16.msra.mxu0 %v3311
        %4861 = vmatpush.bf16.msra.mxu0 %v3295
        %4862 = vmatmul.bf16.gmra.mxu0 %v1482
        %v4863 = vpop.f32.mrf.mxu0
        %v4864 = vadd.f32 %v4851, %v4863
        %v4865 = vpop.f32.mrf.mxu0
        %4866 = vdwg.mxu0
        %4867 = vmatpush.bf16.msra.mxu0 %v3535
        %4868 = vmatpush.bf16.msra.mxu0 %v3519
        %4869 = vmatpush.bf16.msra.mxu0 %v3503
        %4870 = vmatpush.bf16.msra.mxu0 %v3487
        %4871 = vmatpush.bf16.msra.mxu0 %v3471
        %4872 = vmatpush.bf16.msra.mxu0 %v3455
        %4873 = vmatpush.bf16.msra.mxu0 %v3439
        %4874 = vmatpush.bf16.msra.mxu0 %v3423
        %4875 = vmatmul.bf16.gmra.mxu0 %v1483
        %v4876 = vpop.f32.mrf.mxu0
        %v4877 = vadd.f32 %v4864, %v4876
        %v4878 = vpop.f32.mrf.mxu0
        %4879 = vdwg.mxu0
        %v4880 = vld [vmem:[%s557] sm:$0xff]
        %v4881 = vld [vmem:[%s557 + $0x8] sm:$0xff]
        %v4882 = vld [vmem:[%s567] sm:$0xff]
        %v4883 = vld [vmem:[%s567 + $0x8] sm:$0xff]
        %v4884 = vrot.slane %v4097, 4
        %v4885 = vadd.f32 %v4097, %v4884
        %v4886 = vrot.slane %v4885, 2
        %v4887 = vadd.f32 %v4885, %v4886
        %v4888 = vrot.slane %v4887, 1
        %v4889 = vadd.f32 %v4887, %v4888
        %v4890 = vrot.slane %v4149, 4
        %v4891 = vadd.f32 %v4149, %v4890
        %v4892 = vrot.slane %v4891, 2
        %v4893 = vadd.f32 %v4891, %v4892
        %v4894 = vrot.slane %v4893, 1
        %v4895 = vadd.f32 %v4893, %v4894
        %v4896 = vrot.slane %v4201, 4
        %v4897 = vadd.f32 %v4201, %v4896
        %v4898 = vrot.slane %v4897, 2
        %v4899 = vadd.f32 %v4897, %v4898
        %v4900 = vrot.slane %v4899, 1
        %v4901 = vadd.f32 %v4899, %v4900
        %v4902 = vrot.slane %v4253, 4
        %v4903 = vadd.f32 %v4253, %v4902
        %v4904 = vrot.slane %v4903, 2
        %v4905 = vadd.f32 %v4903, %v4904
        %v4906 = vrot.slane %v4905, 1
        %v4907 = vadd.f32 %v4905, %v4906
        %v4908 = vrot.slane %v4305, 4
        %v4909 = vadd.f32 %v4305, %v4908
        %v4910 = vrot.slane %v4909, 2
        %v4911 = vadd.f32 %v4909, %v4910
        %v4912 = vrot.slane %v4911, 1
        %v4913 = vadd.f32 %v4911, %v4912
        %v4914 = vrot.slane %v4357, 4
        %v4915 = vadd.f32 %v4357, %v4914
        %v4916 = vrot.slane %v4915, 2
        %v4917 = vadd.f32 %v4915, %v4916
        %v4918 = vrot.slane %v4917, 1
        %v4919 = vadd.f32 %v4917, %v4918
        %v4920 = vrot.slane %v4409, 4
        %v4921 = vadd.f32 %v4409, %v4920
        %v4922 = vrot.slane %v4921, 2
        %v4923 = vadd.f32 %v4921, %v4922
        %v4924 = vrot.slane %v4923, 1
        %v4925 = vadd.f32 %v4923, %v4924
        %v4926 = vrot.slane %v4461, 4
        %v4927 = vadd.f32 %v4461, %v4926
        %v4928 = vrot.slane %v4927, 2
        %v4929 = vadd.f32 %v4927, %v4928
        %v4930 = vrot.slane %v4929, 1
        %v4931 = vadd.f32 %v4929, %v4930
        %v4932 = vrot.slane %v4513, 4
        %v4933 = vadd.f32 %v4513, %v4932
        %v4934 = vrot.slane %v4933, 2
        %v4935 = vadd.f32 %v4933, %v4934
        %v4936 = vrot.slane %v4935, 1
        %v4937 = vadd.f32 %v4935, %v4936
        %v4938 = vrot.slane %v4565, 4
        %v4939 = vadd.f32 %v4565, %v4938
        %v4940 = vrot.slane %v4939, 2
        %v4941 = vadd.f32 %v4939, %v4940
        %v4942 = vrot.slane %v4941, 1
        %v4943 = vadd.f32 %v4941, %v4942
        %v4944 = vrot.slane %v4617, 4
        %v4945 = vadd.f32 %v4617, %v4944
        %v4946 = vrot.slane %v4945, 2
        %v4947 = vadd.f32 %v4945, %v4946
        %v4948 = vrot.slane %v4947, 1
        %v4949 = vadd.f32 %v4947, %v4948
        %v4950 = vrot.slane %v4669, 4
        %v4951 = vadd.f32 %v4669, %v4950
        %v4952 = vrot.slane %v4951, 2
        %v4953 = vadd.f32 %v4951, %v4952
        %v4954 = vrot.slane %v4953, 1
        %v4955 = vadd.f32 %v4953, %v4954
        %v4956 = vrot.slane %v4721, 4
        %v4957 = vadd.f32 %v4721, %v4956
        %v4958 = vrot.slane %v4957, 2
        %v4959 = vadd.f32 %v4957, %v4958
        %v4960 = vrot.slane %v4959, 1
        %v4961 = vadd.f32 %v4959, %v4960
        %v4962 = vrot.slane %v4773, 4
        %v4963 = vadd.f32 %v4773, %v4962
        %v4964 = vrot.slane %v4963, 2
        %v4965 = vadd.f32 %v4963, %v4964
        %v4966 = vrot.slane %v4965, 1
        %v4967 = vadd.f32 %v4965, %v4966
        %v4968 = vrot.slane %v4825, 4
        %v4969 = vadd.f32 %v4825, %v4968
        %v4970 = vrot.slane %v4969, 2
        %v4971 = vadd.f32 %v4969, %v4970
        %v4972 = vrot.slane %v4971, 1
        %v4973 = vadd.f32 %v4971, %v4972
        %v4974 = vrot.slane %v4877, 4
        %v4975 = vadd.f32 %v4877, %v4974
        %v4976 = vrot.slane %v4975, 2
        %v4977 = vadd.f32 %v4975, %v4976
        %v4978 = vrot.slane %v4977, 1
        %v4979 = vadd.f32 %v4977, %v4978
        %v4980 = vrcp.pop 8.0
        %v4981 = vmul.f32 8.0, %v4980
        %v4982 = vsub.f32 1.0, %v4981
        %v4983 = vmul.f32 %v4980, %v4982
        %v4984 = vadd.f32 %v4980, %v4983
        %vm4985 = vweird.f32 %v4980
        %v4986 = vsel %vm4985, %v4980, %v4984
        %v4987 = vmul.f32 %v4889, %v4986
        %v4988 = vmul.f32 %v4895, %v4986
        %v4989 = vmul.f32 %v4901, %v4986
        %v4990 = vmul.f32 %v4907, %v4986
        %v4991 = vmul.f32 %v4913, %v4986
        %v4992 = vmul.f32 %v4919, %v4986
        %v4993 = vmul.f32 %v4925, %v4986
        %v4994 = vmul.f32 %v4931, %v4986
        %v4995 = vmul.f32 %v4937, %v4986
        %v4996 = vmul.f32 %v4943, %v4986
        %v4997 = vmul.f32 %v4949, %v4986
        %v4998 = vmul.f32 %v4955, %v4986
        %v4999 = vmul.f32 %v4961, %v4986
        %v5000 = vmul.f32 %v4967, %v4986
        %v5001 = vmul.f32 %v4973, %v4986
        %v5002 = vmul.f32 %v4979, %v4986
        %v5003 = vsub.f32 %v4097, %v4987
        %v5004 = vsub.f32 %v4149, %v4988
        %v5005 = vsub.f32 %v4201, %v4989
        %v5006 = vsub.f32 %v4253, %v4990
        %v5007 = vsub.f32 %v4305, %v4991
        %v5008 = vsub.f32 %v4357, %v4992
        %v5009 = vsub.f32 %v4409, %v4993
        %v5010 = vsub.f32 %v4461, %v4994
        %v5011 = vsub.f32 %v4513, %v4995
        %v5012 = vsub.f32 %v4565, %v4996
        %v5013 = vsub.f32 %v4617, %v4997
        %v5014 = vsub.f32 %v4669, %v4998
        %v5015 = vsub.f32 %v4721, %v4999
        %v5016 = vsub.f32 %v4773, %v5000
        %v5017 = vsub.f32 %v4825, %v5001
        %v5018 = vsub.f32 %v4877, %v5002
        %v5019 = vmul.f32 %v5003, %v5003
        %v5020 = vmul.f32 %v5004, %v5004
        %v5021 = vmul.f32 %v5005, %v5005
        %v5022 = vmul.f32 %v5006, %v5006
        %v5023 = vmul.f32 %v5007, %v5007
        %v5024 = vmul.f32 %v5008, %v5008
        %v5025 = vmul.f32 %v5009, %v5009
        %v5026 = vmul.f32 %v5010, %v5010
        %v5027 = vmul.f32 %v5011, %v5011
        %v5028 = vmul.f32 %v5012, %v5012
        %v5029 = vmul.f32 %v5013, %v5013
        %v5030 = vmul.f32 %v5014, %v5014
        %v5031 = vmul.f32 %v5015, %v5015
        %v5032 = vmul.f32 %v5016, %v5016
        %v5033 = vmul.f32 %v5017, %v5017
        %v5034 = vmul.f32 %v5018, %v5018
        %v5035 = vrot.slane %v5019, 4
        %v5036 = vadd.f32 %v5019, %v5035
        %v5037 = vrot.slane %v5036, 2
        %v5038 = vadd.f32 %v5036, %v5037
        %v5039 = vrot.slane %v5038, 1
        %v5040 = vadd.f32 %v5038, %v5039
        %v5041 = vrot.slane %v5020, 4
        %v5042 = vadd.f32 %v5020, %v5041
        %v5043 = vrot.slane %v5042, 2
        %v5044 = vadd.f32 %v5042, %v5043
        %v5045 = vrot.slane %v5044, 1
        %v5046 = vadd.f32 %v5044, %v5045
        %v5047 = vrot.slane %v5021, 4
        %v5048 = vadd.f32 %v5021, %v5047
        %v5049 = vrot.slane %v5048, 2
        %v5050 = vadd.f32 %v5048, %v5049
        %v5051 = vrot.slane %v5050, 1
        %v5052 = vadd.f32 %v5050, %v5051
        %v5053 = vrot.slane %v5022, 4
        %v5054 = vadd.f32 %v5022, %v5053
        %v5055 = vrot.slane %v5054, 2
        %v5056 = vadd.f32 %v5054, %v5055
        %v5057 = vrot.slane %v5056, 1
        %v5058 = vadd.f32 %v5056, %v5057
        %v5059 = vrot.slane %v5023, 4
        %v5060 = vadd.f32 %v5023, %v5059
        %v5061 = vrot.slane %v5060, 2
        %v5062 = vadd.f32 %v5060, %v5061
        %v5063 = vrot.slane %v5062, 1
        %v5064 = vadd.f32 %v5062, %v5063
        %v5065 = vrot.slane %v5024, 4
        %v5066 = vadd.f32 %v5024, %v5065
        %v5067 = vrot.slane %v5066, 2
        %v5068 = vadd.f32 %v5066, %v5067
        %v5069 = vrot.slane %v5068, 1
        %v5070 = vadd.f32 %v5068, %v5069
        %v5071 = vrot.slane %v5025, 4
        %v5072 = vadd.f32 %v5025, %v5071
        %v5073 = vrot.slane %v5072, 2
        %v5074 = vadd.f32 %v5072, %v5073
        %v5075 = vrot.slane %v5074, 1
        %v5076 = vadd.f32 %v5074, %v5075
        %v5077 = vrot.slane %v5026, 4
        %v5078 = vadd.f32 %v5026, %v5077
        %v5079 = vrot.slane %v5078, 2
        %v5080 = vadd.f32 %v5078, %v5079
        %v5081 = vrot.slane %v5080, 1
        %v5082 = vadd.f32 %v5080, %v5081
        %v5083 = vrot.slane %v5027, 4
        %v5084 = vadd.f32 %v5027, %v5083
        %v5085 = vrot.slane %v5084, 2
        %v5086 = vadd.f32 %v5084, %v5085
        %v5087 = vrot.slane %v5086, 1
        %v5088 = vadd.f32 %v5086, %v5087
        %v5089 = vrot.slane %v5028, 4
        %v5090 = vadd.f32 %v5028, %v5089
        %v5091 = vrot.slane %v5090, 2
        %v5092 = vadd.f32 %v5090, %v5091
        %v5093 = vrot.slane %v5092, 1
        %v5094 = vadd.f32 %v5092, %v5093
        %v5095 = vrot.slane %v5029, 4
        %v5096 = vadd.f32 %v5029, %v5095
        %v5097 = vrot.slane %v5096, 2
        %v5098 = vadd.f32 %v5096, %v5097
        %v5099 = vrot.slane %v5098, 1
        %v5100 = vadd.f32 %v5098, %v5099
        %v5101 = vrot.slane %v5030, 4
        %v5102 = vadd.f32 %v5030, %v5101
        %v5103 = vrot.slane %v5102, 2
        %v5104 = vadd.f32 %v5102, %v5103
        %v5105 = vrot.slane %v5104, 1
        %v5106 = vadd.f32 %v5104, %v5105
        %v5107 = vrot.slane %v5031, 4
        %v5108 = vadd.f32 %v5031, %v5107
        %v5109 = vrot.slane %v5108, 2
        %v5110 = vadd.f32 %v5108, %v5109
        %v5111 = vrot.slane %v5110, 1
        %v5112 = vadd.f32 %v5110, %v5111
        %v5113 = vrot.slane %v5032, 4
        %v5114 = vadd.f32 %v5032, %v5113
        %v5115 = vrot.slane %v5114, 2
        %v5116 = vadd.f32 %v5114, %v5115
        %v5117 = vrot.slane %v5116, 1
        %v5118 = vadd.f32 %v5116, %v5117
        %v5119 = vrot.slane %v5033, 4
        %v5120 = vadd.f32 %v5033, %v5119
        %v5121 = vrot.slane %v5120, 2
        %v5122 = vadd.f32 %v5120, %v5121
        %v5123 = vrot.slane %v5122, 1
        %v5124 = vadd.f32 %v5122, %v5123
        %v5125 = vrot.slane %v5034, 4
        %v5126 = vadd.f32 %v5034, %v5125
        %v5127 = vrot.slane %v5126, 2
        %v5128 = vadd.f32 %v5126, %v5127
        %v5129 = vrot.slane %v5128, 1
        %v5130 = vadd.f32 %v5128, %v5129
        %v5131 = vmul.f32 %v5040, %v4986
        %v5132 = vmul.f32 %v5046, %v4986
        %v5133 = vmul.f32 %v5052, %v4986
        %v5134 = vmul.f32 %v5058, %v4986
        %v5135 = vmul.f32 %v5064, %v4986
        %v5136 = vmul.f32 %v5070, %v4986
        %v5137 = vmul.f32 %v5076, %v4986
        %v5138 = vmul.f32 %v5082, %v4986
        %v5139 = vmul.f32 %v5088, %v4986
        %v5140 = vmul.f32 %v5094, %v4986
        %v5141 = vmul.f32 %v5100, %v4986
        %v5142 = vmul.f32 %v5106, %v4986
        %v5143 = vmul.f32 %v5112, %v4986
        %v5144 = vmul.f32 %v5118, %v4986
        %v5145 = vmul.f32 %v5124, %v4986
        %v5146 = vmul.f32 %v5130, %v4986
        %v5147 = vadd.f32 %v5131, 1e-05
        %v5148 = vadd.f32 %v5132, 1e-05
        %v5149 = vadd.f32 %v5133, 1e-05
        %v5150 = vadd.f32 %v5134, 1e-05
        %v5151 = vadd.f32 %v5135, 1e-05
        %v5152 = vadd.f32 %v5136, 1e-05
        %v5153 = vadd.f32 %v5137, 1e-05
        %v5154 = vadd.f32 %v5138, 1e-05
        %v5155 = vadd.f32 %v5139, 1e-05
        %v5156 = vadd.f32 %v5140, 1e-05
        %v5157 = vadd.f32 %v5141, 1e-05
        %v5158 = vadd.f32 %v5142, 1e-05
        %v5159 = vadd.f32 %v5143, 1e-05
        %v5160 = vadd.f32 %v5144, 1e-05
        %v5161 = vadd.f32 %v5145, 1e-05
        %v5162 = vadd.f32 %v5146, 1e-05
        %v5163 = vrsqrt.pop %v5147
        %v5164 = vmul.f32 %v5163, %v5147
        %v5165 = vmul.f32 %v5164, %v5163
        %v5166 = vmul.f32 0.5, %v5165
        %v5167 = vsub.f32 1.5, %v5166
        %v5168 = vmul.f32 %v5163, %v5167
        %vm5169 = vweird.f32 %v5147
        %vm5170 = vweird.f32 %v5163
        %vm5171 = vmor %vm5169, %vm5170
        %v5172 = vsel %vm5171, %v5163, %v5168
        %v5173 = vrsqrt.pop %v5148
        %v5174 = vmul.f32 %v5173, %v5148
        %v5175 = vmul.f32 %v5174, %v5173
        %v5176 = vmul.f32 0.5, %v5175
        %v5177 = vsub.f32 1.5, %v5176
        %v5178 = vmul.f32 %v5173, %v5177
        %vm5179 = vweird.f32 %v5148
        %vm5180 = vweird.f32 %v5173
        %vm5181 = vmor %vm5179, %vm5180
        %v5182 = vsel %vm5181, %v5173, %v5178
        %v5183 = vrsqrt.pop %v5149
        %v5184 = vmul.f32 %v5183, %v5149
        %v5185 = vmul.f32 %v5184, %v5183
        %v5186 = vmul.f32 0.5, %v5185
        %v5187 = vsub.f32 1.5, %v5186
        %v5188 = vmul.f32 %v5183, %v5187
        %vm5189 = vweird.f32 %v5149
        %vm5190 = vweird.f32 %v5183
        %vm5191 = vmor %vm5189, %vm5190
        %v5192 = vsel %vm5191, %v5183, %v5188
        %v5193 = vrsqrt.pop %v5150
        %v5194 = vmul.f32 %v5193, %v5150
        %v5195 = vmul.f32 %v5194, %v5193
        %v5196 = vmul.f32 0.5, %v5195
        %v5197 = vsub.f32 1.5, %v5196
        %v5198 = vmul.f32 %v5193, %v5197
        %vm5199 = vweird.f32 %v5150
        %vm5200 = vweird.f32 %v5193
        %vm5201 = vmor %vm5199, %vm5200
        %v5202 = vsel %vm5201, %v5193, %v5198
        %v5203 = vrsqrt.pop %v5151
        %v5204 = vmul.f32 %v5203, %v5151
        %v5205 = vmul.f32 %v5204, %v5203
        %v5206 = vmul.f32 0.5, %v5205
        %v5207 = vsub.f32 1.5, %v5206
        %v5208 = vmul.f32 %v5203, %v5207
        %vm5209 = vweird.f32 %v5151
        %vm5210 = vweird.f32 %v5203
        %vm5211 = vmor %vm5209, %vm5210
        %v5212 = vsel %vm5211, %v5203, %v5208
        %v5213 = vrsqrt.pop %v5152
        %v5214 = vmul.f32 %v5213, %v5152
        %v5215 = vmul.f32 %v5214, %v5213
        %v5216 = vmul.f32 0.5, %v5215
        %v5217 = vsub.f32 1.5, %v5216
        %v5218 = vmul.f32 %v5213, %v5217
        %vm5219 = vweird.f32 %v5152
        %vm5220 = vweird.f32 %v5213
        %vm5221 = vmor %vm5219, %vm5220
        %v5222 = vsel %vm5221, %v5213, %v5218
        %v5223 = vrsqrt.pop %v5153
        %v5224 = vmul.f32 %v5223, %v5153
        %v5225 = vmul.f32 %v5224, %v5223
        %v5226 = vmul.f32 0.5, %v5225
        %v5227 = vsub.f32 1.5, %v5226
        %v5228 = vmul.f32 %v5223, %v5227
        %vm5229 = vweird.f32 %v5153
        %vm5230 = vweird.f32 %v5223
        %vm5231 = vmor %vm5229, %vm5230
        %v5232 = vsel %vm5231, %v5223, %v5228
        %v5233 = vrsqrt.pop %v5154
        %v5234 = vmul.f32 %v5233, %v5154
        %v5235 = vmul.f32 %v5234, %v5233
        %v5236 = vmul.f32 0.5, %v5235
        %v5237 = vsub.f32 1.5, %v5236
        %v5238 = vmul.f32 %v5233, %v5237
        %vm5239 = vweird.f32 %v5154
        %vm5240 = vweird.f32 %v5233
        %vm5241 = vmor %vm5239, %vm5240
        %v5242 = vsel %vm5241, %v5233, %v5238
        %v5243 = vrsqrt.pop %v5155
        %v5244 = vmul.f32 %v5243, %v5155
        %v5245 = vmul.f32 %v5244, %v5243
        %v5246 = vmul.f32 0.5, %v5245
        %v5247 = vsub.f32 1.5, %v5246
        %v5248 = vmul.f32 %v5243, %v5247
        %vm5249 = vweird.f32 %v5155
        %vm5250 = vweird.f32 %v5243
        %vm5251 = vmor %vm5249, %vm5250
        %v5252 = vsel %vm5251, %v5243, %v5248
        %v5253 = vrsqrt.pop %v5156
        %v5254 = vmul.f32 %v5253, %v5156
        %v5255 = vmul.f32 %v5254, %v5253
        %v5256 = vmul.f32 0.5, %v5255
        %v5257 = vsub.f32 1.5, %v5256
        %v5258 = vmul.f32 %v5253, %v5257
        %vm5259 = vweird.f32 %v5156
        %vm5260 = vweird.f32 %v5253
        %vm5261 = vmor %vm5259, %vm5260
        %v5262 = vsel %vm5261, %v5253, %v5258
        %v5263 = vrsqrt.pop %v5157
        %v5264 = vmul.f32 %v5263, %v5157
        %v5265 = vmul.f32 %v5264, %v5263
        %v5266 = vmul.f32 0.5, %v5265
        %v5267 = vsub.f32 1.5, %v5266
        %v5268 = vmul.f32 %v5263, %v5267
        %vm5269 = vweird.f32 %v5157
        %vm5270 = vweird.f32 %v5263
        %vm5271 = vmor %vm5269, %vm5270
        %v5272 = vsel %vm5271, %v5263, %v5268
        %v5273 = vrsqrt.pop %v5158
        %v5274 = vmul.f32 %v5273, %v5158
        %v5275 = vmul.f32 %v5274, %v5273
        %v5276 = vmul.f32 0.5, %v5275
        %v5277 = vsub.f32 1.5, %v5276
        %v5278 = vmul.f32 %v5273, %v5277
        %vm5279 = vweird.f32 %v5158
        %vm5280 = vweird.f32 %v5273
        %vm5281 = vmor %vm5279, %vm5280
        %v5282 = vsel %vm5281, %v5273, %v5278
        %v5283 = vrsqrt.pop %v5159
        %v5284 = vmul.f32 %v5283, %v5159
        %v5285 = vmul.f32 %v5284, %v5283
        %v5286 = vmul.f32 0.5, %v5285
        %v5287 = vsub.f32 1.5, %v5286
        %v5288 = vmul.f32 %v5283, %v5287
        %vm5289 = vweird.f32 %v5159
        %vm5290 = vweird.f32 %v5283
        %vm5291 = vmor %vm5289, %vm5290
        %v5292 = vsel %vm5291, %v5283, %v5288
        %v5293 = vrsqrt.pop %v5160
        %v5294 = vmul.f32 %v5293, %v5160
        %v5295 = vmul.f32 %v5294, %v5293
        %v5296 = vmul.f32 0.5, %v5295
        %v5297 = vsub.f32 1.5, %v5296
        %v5298 = vmul.f32 %v5293, %v5297
        %vm5299 = vweird.f32 %v5160
        %vm5300 = vweird.f32 %v5293
        %vm5301 = vmor %vm5299, %vm5300
        %v5302 = vsel %vm5301, %v5293, %v5298
        %v5303 = vrsqrt.pop %v5161
        %v5304 = vmul.f32 %v5303, %v5161
        %v5305 = vmul.f32 %v5304, %v5303
        %v5306 = vmul.f32 0.5, %v5305
        %v5307 = vsub.f32 1.5, %v5306
        %v5308 = vmul.f32 %v5303, %v5307
        %vm5309 = vweird.f32 %v5161
        %vm5310 = vweird.f32 %v5303
        %vm5311 = vmor %vm5309, %vm5310
        %v5312 = vsel %vm5311, %v5303, %v5308
        %v5313 = vrsqrt.pop %v5162
        %v5314 = vmul.f32 %v5313, %v5162
        %v5315 = vmul.f32 %v5314, %v5313
        %v5316 = vmul.f32 0.5, %v5315
        %v5317 = vsub.f32 1.5, %v5316
        %v5318 = vmul.f32 %v5313, %v5317
        %vm5319 = vweird.f32 %v5162
        %vm5320 = vweird.f32 %v5313
        %vm5321 = vmor %vm5319, %vm5320
        %v5322 = vsel %vm5321, %v5313, %v5318
        %v5339 = vrot.slane %v5182, 7
        %v5340 = vrot.slane %v5192, 6
        %v5341 = vrot.slane %v5202, 5
        %v5342 = vrot.slane %v5212, 4
        %v5343 = vrot.slane %v5222, 3
        %v5344 = vrot.slane %v5232, 2
        %v5345 = vrot.slane %v5242, 1
        %v5346 = vrot.slane %v5262, 7
        %v5347 = vrot.slane %v5272, 6
        %v5348 = vrot.slane %v5282, 5
        %v5349 = vrot.slane %v5292, 4
        %v5350 = vrot.slane %v5302, 3
        %v5351 = vrot.slane %v5312, 2
        %v5352 = vrot.slane %v5322, 1
        %vm5353 = vcmask 1040384
        %v5354 = vsel %vm5353, %v5172, %v5339
        %vm5355 = vcmask 1042434
        %v5356 = vsel %vm5355, %v5340, %v5341
        %vm5357 = vcmask 1041408
        %v5358 = vsel %vm5357, %v5354, %v5356
        %vm5359 = vcmask 1044484
        %v5360 = vsel %vm5359, %v5342, %v5343
        %vm5361 = vcmask 1046534
        %v5362 = vsel %vm5361, %v5344, %v5345
        %vm5363 = vcmask 1045508
        %v5364 = vsel %vm5363, %v5360, %v5362
        %vm5365 = vcmask 1043456
        %v5366 = vsel %vm5365, %v5358, %v5364
        %v5367 = vsel %vm5353, %v5252, %v5346
        %v5368 = vsel %vm5355, %v5347, %v5348
        %v5369 = vsel %vm5357, %v5367, %v5368
        %v5370 = vsel %vm5359, %v5349, %v5350
        %v5371 = vsel %vm5361, %v5351, %v5352
        %v5372 = vsel %vm5363, %v5370, %v5371
        %v5373 = vsel %vm5365, %v5369, %v5372
        %v5376 = vmul.f32 %v4880, %v5366
        %v5377 = vmul.f32 %v4881, %v5373
        %v5380 = vperm.slane %v5376, 0
        %v5381 = vperm.slane %v5376, 1
        %v5382 = vperm.slane %v5376, 2
        %v5383 = vperm.slane %v5376, 3
        %v5384 = vperm.slane %v5376, 4
        %v5385 = vperm.slane %v5376, 5
        %v5386 = vperm.slane %v5376, 6
        %v5387 = vperm.slane %v5376, 7
        %v5388 = vperm.slane %v5377, 0
        %v5389 = vperm.slane %v5377, 1
        %v5390 = vperm.slane %v5377, 2
        %v5391 = vperm.slane %v5377, 3
        %v5392 = vperm.slane %v5377, 4
        %v5393 = vperm.slane %v5377, 5
        %v5394 = vperm.slane %v5377, 6
        %v5395 = vperm.slane %v5377, 7
        %v5412 = vmul.f32 %v5003, %v5380
        %v5413 = vmul.f32 %v5004, %v5381
        %v5414 = vmul.f32 %v5005, %v5382
        %v5415 = vmul.f32 %v5006, %v5383
        %v5416 = vmul.f32 %v5007, %v5384
        %v5417 = vmul.f32 %v5008, %v5385
        %v5418 = vmul.f32 %v5009, %v5386
        %v5419 = vmul.f32 %v5010, %v5387
        %v5420 = vmul.f32 %v5011, %v5388
        %v5421 = vmul.f32 %v5012, %v5389
        %v5422 = vmul.f32 %v5013, %v5390
        %v5423 = vmul.f32 %v5014, %v5391
        %v5424 = vmul.f32 %v5015, %v5392
        %v5425 = vmul.f32 %v5016, %v5393
        %v5426 = vmul.f32 %v5017, %v5394
        %v5427 = vmul.f32 %v5018, %v5395
        %v5430 = vperm.slane %v4882, 0
        %v5431 = vperm.slane %v4882, 1
        %v5432 = vperm.slane %v4882, 2
        %v5433 = vperm.slane %v4882, 3
        %v5434 = vperm.slane %v4882, 4
        %v5435 = vperm.slane %v4882, 5
        %v5436 = vperm.slane %v4882, 6
        %v5437 = vperm.slane %v4882, 7
        %v5438 = vperm.slane %v4883, 0
        %v5439 = vperm.slane %v4883, 1
        %v5440 = vperm.slane %v4883, 2
        %v5441 = vperm.slane %v4883, 3
        %v5442 = vperm.slane %v4883, 4
        %v5443 = vperm.slane %v4883, 5
        %v5444 = vperm.slane %v4883, 6
        %v5445 = vperm.slane %v4883, 7
        %v5462 = vadd.f32 %v5412, %v5430
        %v5463 = vadd.f32 %v5413, %v5431
        %v5464 = vadd.f32 %v5414, %v5432
        %v5465 = vadd.f32 %v5415, %v5433
        %v5466 = vadd.f32 %v5416, %v5434
        %v5467 = vadd.f32 %v5417, %v5435
        %v5468 = vadd.f32 %v5418, %v5436
        %v5469 = vadd.f32 %v5419, %v5437
        %v5470 = vadd.f32 %v5420, %v5438
        %v5471 = vadd.f32 %v5421, %v5439
        %v5472 = vadd.f32 %v5422, %v5440
        %v5473 = vadd.f32 %v5423, %v5441
        %v5474 = vadd.f32 %v5424, %v5442
        %v5475 = vadd.f32 %v5425, %v5443
        %v5476 = vadd.f32 %v5426, %v5444
        %v5477 = vadd.f32 %v5427, %v5445
        %v5478 = vmax.f32 %v5462, 0.0
        %v5479 = vmax.f32 %v5463, 0.0
        %v5480 = vmax.f32 %v5464, 0.0
        %v5481 = vmax.f32 %v5465, 0.0
        %v5482 = vmax.f32 %v5466, 0.0
        %v5483 = vmax.f32 %v5467, 0.0
        %v5484 = vmax.f32 %v5468, 0.0
        %v5485 = vmax.f32 %v5469, 0.0
        %v5486 = vmax.f32 %v5470, 0.0
        %v5487 = vmax.f32 %v5471, 0.0
        %v5488 = vmax.f32 %v5472, 0.0
        %v5489 = vmax.f32 %v5473, 0.0
        %v5490 = vmax.f32 %v5474, 0.0
        %v5491 = vmax.f32 %v5475, 0.0
        %v5492 = vmax.f32 %v5476, 0.0
        %v5493 = vmax.f32 %v5477, 0.0
        %v5494 = vld [vmem:[#allocation21] sm:$0xff]
        %v5495 = vpack.c.bf16 %v5478, %v5478
        %v5496 = vpack.c.bf16 %v5479, %v5479
        %v5497 = vpack.c.bf16 %v5480, %v5480
        %v5498 = vpack.c.bf16 %v5481, %v5481
        %v5499 = vpack.c.bf16 %v5482, %v5482
        %v5500 = vpack.c.bf16 %v5483, %v5483
        %v5501 = vpack.c.bf16 %v5484, %v5484
        %v5502 = vpack.c.bf16 %v5485, %v5485
        %v5503 = vpack.c.bf16 %v5486, %v5486
        %v5504 = vpack.c.bf16 %v5487, %v5487
        %v5505 = vpack.c.bf16 %v5488, %v5488
        %v5506 = vpack.c.bf16 %v5489, %v5489
        %v5507 = vpack.c.bf16 %v5490, %v5490
        %v5508 = vpack.c.bf16 %v5491, %v5491
        %v5509 = vpack.c.bf16 %v5492, %v5492
        %v5510 = vpack.c.bf16 %v5493, %v5493
        %v5511 = vld [vmem:[%s577] sm:$0xf]
        %v5512 = vld [vmem:[%s577 + $0x4] sm:$0xf]
        %v5513 = vld [vmem:[%s577 + $0x8] sm:$0xf]
        %v5514 = vld [vmem:[%s577 + $0xc] sm:$0xf]
        %v5515 = vld [vmem:[%s577 + $0x10] sm:$0xf]
        %v5516 = vld [vmem:[%s577 + $0x14] sm:$0xf]
        %v5517 = vld [vmem:[%s577 + $0x18] sm:$0xf]
        %v5518 = vld [vmem:[%s577 + $0x1c] sm:$0xf]
        %v5519 = vld [vmem:[%s577 + $0x20] sm:$0xf]
        %v5520 = vld [vmem:[%s577 + $0x24] sm:$0xf]
        %v5521 = vld [vmem:[%s577 + $0x28] sm:$0xf]
        %v5522 = vld [vmem:[%s577 + $0x2c] sm:$0xf]
        %v5523 = vld [vmem:[%s577 + $0x30] sm:$0xf]
        %v5524 = vld [vmem:[%s577 + $0x34] sm:$0xf]
        %v5525 = vld [vmem:[%s577 + $0x38] sm:$0xf]
        %v5526 = vld [vmem:[%s577 + $0x3c] sm:$0xf]
        %v5527 = vld [vmem:[%s577 + $0x40] sm:$0xf]
        %v5528 = vld [vmem:[%s577 + $0x44] sm:$0xf]
        %v5529 = vld [vmem:[%s577 + $0x48] sm:$0xf]
        %v5530 = vld [vmem:[%s577 + $0x4c] sm:$0xf]
        %v5531 = vld [vmem:[%s577 + $0x50] sm:$0xf]
        %v5532 = vld [vmem:[%s577 + $0x54] sm:$0xf]
        %v5533 = vld [vmem:[%s577 + $0x58] sm:$0xf]
        %v5534 = vld [vmem:[%s577 + $0x5c] sm:$0xf]
        %v5535 = vld [vmem:[%s577 + $0x60] sm:$0xf]
        %v5536 = vld [vmem:[%s577 + $0x64] sm:$0xf]
        %v5537 = vld [vmem:[%s577 + $0x68] sm:$0xf]
        %v5538 = vld [vmem:[%s577 + $0x6c] sm:$0xf]
        %v5539 = vld [vmem:[%s577 + $0x70] sm:$0xf]
        %v5540 = vld [vmem:[%s577 + $0x74] sm:$0xf]
        %v5541 = vld [vmem:[%s577 + $0x78] sm:$0xf]
        %v5542 = vld [vmem:[%s577 + $0x7c] sm:$0xf]
        %v5543 = vld [vmem:[%s577 + $0x80] sm:$0xf]
        %v5544 = vld [vmem:[%s577 + $0x84] sm:$0xf]
        %v5545 = vld [vmem:[%s577 + $0x88] sm:$0xf]
        %v5546 = vld [vmem:[%s577 + $0x8c] sm:$0xf]
        %v5547 = vld [vmem:[%s577 + $0x90] sm:$0xf]
        %v5548 = vld [vmem:[%s577 + $0x94] sm:$0xf]
        %v5549 = vld [vmem:[%s577 + $0x98] sm:$0xf]
        %v5550 = vld [vmem:[%s577 + $0x9c] sm:$0xf]
        %v5551 = vld [vmem:[%s577 + $0xa0] sm:$0xf]
        %v5552 = vld [vmem:[%s577 + $0xa4] sm:$0xf]
        %v5553 = vld [vmem:[%s577 + $0xa8] sm:$0xf]
        %v5554 = vld [vmem:[%s577 + $0xac] sm:$0xf]
        %v5555 = vld [vmem:[%s577 + $0xb0] sm:$0xf]
        %v5556 = vld [vmem:[%s577 + $0xb4] sm:$0xf]
        %v5557 = vld [vmem:[%s577 + $0xb8] sm:$0xf]
        %v5558 = vld [vmem:[%s577 + $0xbc] sm:$0xf]
        %v5559 = vld [vmem:[%s577 + $0xc0] sm:$0xf]
        %v5560 = vld [vmem:[%s577 + $0xc4] sm:$0xf]
        %v5561 = vld [vmem:[%s577 + $0xc8] sm:$0xf]
        %v5562 = vld [vmem:[%s577 + $0xcc] sm:$0xf]
        %v5563 = vld [vmem:[%s577 + $0xd0] sm:$0xf]
        %v5564 = vld [vmem:[%s577 + $0xd4] sm:$0xf]
        %v5565 = vld [vmem:[%s577 + $0xd8] sm:$0xf]
        %v5566 = vld [vmem:[%s577 + $0xdc] sm:$0xf]
        %v5567 = vld [vmem:[%s577 + $0xe0] sm:$0xf]
        %v5568 = vld [vmem:[%s577 + $0xe4] sm:$0xf]
        %v5569 = vld [vmem:[%s577 + $0xe8] sm:$0xf]
        %v5570 = vld [vmem:[%s577 + $0xec] sm:$0xf]
        %v5571 = vld [vmem:[%s577 + $0xf0] sm:$0xf]
        %v5572 = vld [vmem:[%s577 + $0xf4] sm:$0xf]
        %v5573 = vld [vmem:[%s577 + $0xf8] sm:$0xf]
        %v5574 = vld [vmem:[%s577 + $0xfc] sm:$0xf]
        %v5575 = vld [vmem:[%s577 + $0x100] sm:$0xf]
        %v5576 = vld [vmem:[%s577 + $0x104] sm:$0xf]
        %v5577 = vld [vmem:[%s577 + $0x108] sm:$0xf]
        %v5578 = vld [vmem:[%s577 + $0x10c] sm:$0xf]
        %v5579 = vld [vmem:[%s577 + $0x110] sm:$0xf]
        %v5580 = vld [vmem:[%s577 + $0x114] sm:$0xf]
        %v5581 = vld [vmem:[%s577 + $0x118] sm:$0xf]
        %v5582 = vld [vmem:[%s577 + $0x11c] sm:$0xf]
        %v5583 = vld [vmem:[%s577 + $0x120] sm:$0xf]
        %v5584 = vld [vmem:[%s577 + $0x124] sm:$0xf]
        %v5585 = vld [vmem:[%s577 + $0x128] sm:$0xf]
        %v5586 = vld [vmem:[%s577 + $0x12c] sm:$0xf]
        %v5587 = vld [vmem:[%s577 + $0x130] sm:$0xf]
        %v5588 = vld [vmem:[%s577 + $0x134] sm:$0xf]
        %v5589 = vld [vmem:[%s577 + $0x138] sm:$0xf]
        %v5590 = vld [vmem:[%s577 + $0x13c] sm:$0xf]
        %v5591 = vld [vmem:[%s577 + $0x140] sm:$0xf]
        %v5592 = vld [vmem:[%s577 + $0x144] sm:$0xf]
        %v5593 = vld [vmem:[%s577 + $0x148] sm:$0xf]
        %v5594 = vld [vmem:[%s577 + $0x14c] sm:$0xf]
        %v5595 = vld [vmem:[%s577 + $0x150] sm:$0xf]
        %v5596 = vld [vmem:[%s577 + $0x154] sm:$0xf]
        %v5597 = vld [vmem:[%s577 + $0x158] sm:$0xf]
        %v5598 = vld [vmem:[%s577 + $0x15c] sm:$0xf]
        %v5599 = vld [vmem:[%s577 + $0x160] sm:$0xf]
        %v5600 = vld [vmem:[%s577 + $0x164] sm:$0xf]
        %v5601 = vld [vmem:[%s577 + $0x168] sm:$0xf]
        %v5602 = vld [vmem:[%s577 + $0x16c] sm:$0xf]
        %v5603 = vld [vmem:[%s577 + $0x170] sm:$0xf]
        %v5604 = vld [vmem:[%s577 + $0x174] sm:$0xf]
        %v5605 = vld [vmem:[%s577 + $0x178] sm:$0xf]
        %v5606 = vld [vmem:[%s577 + $0x17c] sm:$0xf]
        %v5607 = vld [vmem:[%s577 + $0x180] sm:$0xf]
        %v5608 = vld [vmem:[%s577 + $0x184] sm:$0xf]
        %v5609 = vld [vmem:[%s577 + $0x188] sm:$0xf]
        %v5610 = vld [vmem:[%s577 + $0x18c] sm:$0xf]
        %v5611 = vld [vmem:[%s577 + $0x190] sm:$0xf]
        %v5612 = vld [vmem:[%s577 + $0x194] sm:$0xf]
        %v5613 = vld [vmem:[%s577 + $0x198] sm:$0xf]
        %v5614 = vld [vmem:[%s577 + $0x19c] sm:$0xf]
        %v5615 = vld [vmem:[%s577 + $0x1a0] sm:$0xf]
        %v5616 = vld [vmem:[%s577 + $0x1a4] sm:$0xf]
        %v5617 = vld [vmem:[%s577 + $0x1a8] sm:$0xf]
        %v5618 = vld [vmem:[%s577 + $0x1ac] sm:$0xf]
        %v5619 = vld [vmem:[%s577 + $0x1b0] sm:$0xf]
        %v5620 = vld [vmem:[%s577 + $0x1b4] sm:$0xf]
        %v5621 = vld [vmem:[%s577 + $0x1b8] sm:$0xf]
        %v5622 = vld [vmem:[%s577 + $0x1bc] sm:$0xf]
        %v5623 = vld [vmem:[%s577 + $0x1c0] sm:$0xf]
        %v5624 = vld [vmem:[%s577 + $0x1c4] sm:$0xf]
        %v5625 = vld [vmem:[%s577 + $0x1c8] sm:$0xf]
        %v5626 = vld [vmem:[%s577 + $0x1cc] sm:$0xf]
        %v5627 = vld [vmem:[%s577 + $0x1d0] sm:$0xf]
        %v5628 = vld [vmem:[%s577 + $0x1d4] sm:$0xf]
        %v5629 = vld [vmem:[%s577 + $0x1d8] sm:$0xf]
        %v5630 = vld [vmem:[%s577 + $0x1dc] sm:$0xf]
        %v5631 = vld [vmem:[%s577 + $0x1e0] sm:$0xf]
        %v5632 = vld [vmem:[%s577 + $0x1e4] sm:$0xf]
        %v5633 = vld [vmem:[%s577 + $0x1e8] sm:$0xf]
        %v5634 = vld [vmem:[%s577 + $0x1ec] sm:$0xf]
        %v5635 = vld [vmem:[%s577 + $0x1f0] sm:$0xf]
        %v5636 = vld [vmem:[%s577 + $0x1f4] sm:$0xf]
        %v5637 = vld [vmem:[%s577 + $0x1f8] sm:$0xf]
        %v5638 = vld [vmem:[%s577 + $0x1fc] sm:$0xf]
        %v5639 = vld [vmem:[%s577 + $0x200] sm:$0xf]
        %v5640 = vld [vmem:[%s577 + $0x204] sm:$0xf]
        %v5641 = vld [vmem:[%s577 + $0x208] sm:$0xf]
        %v5642 = vld [vmem:[%s577 + $0x20c] sm:$0xf]
        %v5643 = vld [vmem:[%s577 + $0x210] sm:$0xf]
        %v5644 = vld [vmem:[%s577 + $0x214] sm:$0xf]
        %v5645 = vld [vmem:[%s577 + $0x218] sm:$0xf]
        %v5646 = vld [vmem:[%s577 + $0x21c] sm:$0xf]
        %v5647 = vld [vmem:[%s577 + $0x220] sm:$0xf]
        %v5648 = vld [vmem:[%s577 + $0x224] sm:$0xf]
        %v5649 = vld [vmem:[%s577 + $0x228] sm:$0xf]
        %v5650 = vld [vmem:[%s577 + $0x22c] sm:$0xf]
        %v5651 = vld [vmem:[%s577 + $0x230] sm:$0xf]
        %v5652 = vld [vmem:[%s577 + $0x234] sm:$0xf]
        %v5653 = vld [vmem:[%s577 + $0x238] sm:$0xf]
        %v5654 = vld [vmem:[%s577 + $0x23c] sm:$0xf]
        %v5655 = vld [vmem:[%s577 + $0x240] sm:$0xf]
        %v5656 = vld [vmem:[%s577 + $0x244] sm:$0xf]
        %v5657 = vld [vmem:[%s577 + $0x248] sm:$0xf]
        %v5658 = vld [vmem:[%s577 + $0x24c] sm:$0xf]
        %v5659 = vld [vmem:[%s577 + $0x250] sm:$0xf]
        %v5660 = vld [vmem:[%s577 + $0x254] sm:$0xf]
        %v5661 = vld [vmem:[%s577 + $0x258] sm:$0xf]
        %v5662 = vld [vmem:[%s577 + $0x25c] sm:$0xf]
        %v5663 = vld [vmem:[%s577 + $0x260] sm:$0xf]
        %v5664 = vld [vmem:[%s577 + $0x264] sm:$0xf]
        %v5665 = vld [vmem:[%s577 + $0x268] sm:$0xf]
        %v5666 = vld [vmem:[%s577 + $0x26c] sm:$0xf]
        %v5667 = vld [vmem:[%s577 + $0x270] sm:$0xf]
        %v5668 = vld [vmem:[%s577 + $0x274] sm:$0xf]
        %v5669 = vld [vmem:[%s577 + $0x278] sm:$0xf]
        %v5670 = vld [vmem:[%s577 + $0x27c] sm:$0xf]
        %v5671 = vld [vmem:[%s577 + $0x280] sm:$0xf]
        %v5672 = vld [vmem:[%s577 + $0x284] sm:$0xf]
        %v5673 = vld [vmem:[%s577 + $0x288] sm:$0xf]
        %v5674 = vld [vmem:[%s577 + $0x28c] sm:$0xf]
        %v5675 = vld [vmem:[%s577 + $0x290] sm:$0xf]
        %v5676 = vld [vmem:[%s577 + $0x294] sm:$0xf]
        %v5677 = vld [vmem:[%s577 + $0x298] sm:$0xf]
        %v5678 = vld [vmem:[%s577 + $0x29c] sm:$0xf]
        %v5679 = vld [vmem:[%s577 + $0x2a0] sm:$0xf]
        %v5680 = vld [vmem:[%s577 + $0x2a4] sm:$0xf]
        %v5681 = vld [vmem:[%s577 + $0x2a8] sm:$0xf]
        %v5682 = vld [vmem:[%s577 + $0x2ac] sm:$0xf]
        %v5683 = vld [vmem:[%s577 + $0x2b0] sm:$0xf]
        %v5684 = vld [vmem:[%s577 + $0x2b4] sm:$0xf]
        %v5685 = vld [vmem:[%s577 + $0x2b8] sm:$0xf]
        %v5686 = vld [vmem:[%s577 + $0x2bc] sm:$0xf]
        %v5687 = vld [vmem:[%s577 + $0x2c0] sm:$0xf]
        %v5688 = vld [vmem:[%s577 + $0x2c4] sm:$0xf]
        %v5689 = vld [vmem:[%s577 + $0x2c8] sm:$0xf]
        %v5690 = vld [vmem:[%s577 + $0x2cc] sm:$0xf]
        %v5691 = vld [vmem:[%s577 + $0x2d0] sm:$0xf]
        %v5692 = vld [vmem:[%s577 + $0x2d4] sm:$0xf]
        %v5693 = vld [vmem:[%s577 + $0x2d8] sm:$0xf]
        %v5694 = vld [vmem:[%s577 + $0x2dc] sm:$0xf]
        %v5695 = vld [vmem:[%s577 + $0x2e0] sm:$0xf]
        %v5696 = vld [vmem:[%s577 + $0x2e4] sm:$0xf]
        %v5697 = vld [vmem:[%s577 + $0x2e8] sm:$0xf]
        %v5698 = vld [vmem:[%s577 + $0x2ec] sm:$0xf]
        %v5699 = vld [vmem:[%s577 + $0x2f0] sm:$0xf]
        %v5700 = vld [vmem:[%s577 + $0x2f4] sm:$0xf]
        %v5701 = vld [vmem:[%s577 + $0x2f8] sm:$0xf]
        %v5702 = vld [vmem:[%s577 + $0x2fc] sm:$0xf]
        %v5703 = vld [vmem:[%s577 + $0x300] sm:$0xf]
        %v5704 = vld [vmem:[%s577 + $0x304] sm:$0xf]
        %v5705 = vld [vmem:[%s577 + $0x308] sm:$0xf]
        %v5706 = vld [vmem:[%s577 + $0x30c] sm:$0xf]
        %v5707 = vld [vmem:[%s577 + $0x310] sm:$0xf]
        %v5708 = vld [vmem:[%s577 + $0x314] sm:$0xf]
        %v5709 = vld [vmem:[%s577 + $0x318] sm:$0xf]
        %v5710 = vld [vmem:[%s577 + $0x31c] sm:$0xf]
        %v5711 = vld [vmem:[%s577 + $0x320] sm:$0xf]
        %v5712 = vld [vmem:[%s577 + $0x324] sm:$0xf]
        %v5713 = vld [vmem:[%s577 + $0x328] sm:$0xf]
        %v5714 = vld [vmem:[%s577 + $0x32c] sm:$0xf]
        %v5715 = vld [vmem:[%s577 + $0x330] sm:$0xf]
        %v5716 = vld [vmem:[%s577 + $0x334] sm:$0xf]
        %v5717 = vld [vmem:[%s577 + $0x338] sm:$0xf]
        %v5718 = vld [vmem:[%s577 + $0x33c] sm:$0xf]
        %v5719 = vld [vmem:[%s577 + $0x340] sm:$0xf]
        %v5720 = vld [vmem:[%s577 + $0x344] sm:$0xf]
        %v5721 = vld [vmem:[%s577 + $0x348] sm:$0xf]
        %v5722 = vld [vmem:[%s577 + $0x34c] sm:$0xf]
        %v5723 = vld [vmem:[%s577 + $0x350] sm:$0xf]
        %v5724 = vld [vmem:[%s577 + $0x354] sm:$0xf]
        %v5725 = vld [vmem:[%s577 + $0x358] sm:$0xf]
        %v5726 = vld [vmem:[%s577 + $0x35c] sm:$0xf]
        %v5727 = vld [vmem:[%s577 + $0x360] sm:$0xf]
        %v5728 = vld [vmem:[%s577 + $0x364] sm:$0xf]
        %v5729 = vld [vmem:[%s577 + $0x368] sm:$0xf]
        %v5730 = vld [vmem:[%s577 + $0x36c] sm:$0xf]
        %v5731 = vld [vmem:[%s577 + $0x370] sm:$0xf]
        %v5732 = vld [vmem:[%s577 + $0x374] sm:$0xf]
        %v5733 = vld [vmem:[%s577 + $0x378] sm:$0xf]
        %v5734 = vld [vmem:[%s577 + $0x37c] sm:$0xf]
        %v5735 = vld [vmem:[%s577 + $0x380] sm:$0xf]
        %v5736 = vld [vmem:[%s577 + $0x384] sm:$0xf]
        %v5737 = vld [vmem:[%s577 + $0x388] sm:$0xf]
        %v5738 = vld [vmem:[%s577 + $0x38c] sm:$0xf]
        %v5739 = vld [vmem:[%s577 + $0x390] sm:$0xf]
        %v5740 = vld [vmem:[%s577 + $0x394] sm:$0xf]
        %v5741 = vld [vmem:[%s577 + $0x398] sm:$0xf]
        %v5742 = vld [vmem:[%s577 + $0x39c] sm:$0xf]
        %v5743 = vld [vmem:[%s577 + $0x3a0] sm:$0xf]
        %v5744 = vld [vmem:[%s577 + $0x3a4] sm:$0xf]
        %v5745 = vld [vmem:[%s577 + $0x3a8] sm:$0xf]
        %v5746 = vld [vmem:[%s577 + $0x3ac] sm:$0xf]
        %v5747 = vld [vmem:[%s577 + $0x3b0] sm:$0xf]
        %v5748 = vld [vmem:[%s577 + $0x3b4] sm:$0xf]
        %v5749 = vld [vmem:[%s577 + $0x3b8] sm:$0xf]
        %v5750 = vld [vmem:[%s577 + $0x3bc] sm:$0xf]
        %v5751 = vld [vmem:[%s577 + $0x3c0] sm:$0xf]
        %v5752 = vld [vmem:[%s577 + $0x3c4] sm:$0xf]
        %v5753 = vld [vmem:[%s577 + $0x3c8] sm:$0xf]
        %v5754 = vld [vmem:[%s577 + $0x3cc] sm:$0xf]
        %v5755 = vld [vmem:[%s577 + $0x3d0] sm:$0xf]
        %v5756 = vld [vmem:[%s577 + $0x3d4] sm:$0xf]
        %v5757 = vld [vmem:[%s577 + $0x3d8] sm:$0xf]
        %v5758 = vld [vmem:[%s577 + $0x3dc] sm:$0xf]
        %v5759 = vld [vmem:[%s577 + $0x3e0] sm:$0xf]
        %v5760 = vld [vmem:[%s577 + $0x3e4] sm:$0xf]
        %v5761 = vld [vmem:[%s577 + $0x3e8] sm:$0xf]
        %v5762 = vld [vmem:[%s577 + $0x3ec] sm:$0xf]
        %v5763 = vld [vmem:[%s577 + $0x3f0] sm:$0xf]
        %v5764 = vld [vmem:[%s577 + $0x3f4] sm:$0xf]
        %v5765 = vld [vmem:[%s577 + $0x3f8] sm:$0xf]
        %v5766 = vld [vmem:[%s577 + $0x3fc] sm:$0xf]
        %v6023 = vunpack.c.l.b16 %v5511
        %v6024 = vunpack.c.l.b16 %v5512
        %v6025 = vunpack.c.l.b16 %v5513
        %v6026 = vunpack.c.l.b16 %v5514
        %v6027 = vunpack.c.l.b16 %v5515
        %v6028 = vunpack.c.l.b16 %v5516
        %v6029 = vunpack.c.l.b16 %v5517
        %v6030 = vunpack.c.l.b16 %v5518
        %v6031 = vunpack.c.l.b16 %v5519
        %v6032 = vunpack.c.l.b16 %v5520
        %v6033 = vunpack.c.l.b16 %v5521
        %v6034 = vunpack.c.l.b16 %v5522
        %v6035 = vunpack.c.l.b16 %v5523
        %v6036 = vunpack.c.l.b16 %v5524
        %v6037 = vunpack.c.l.b16 %v5525
        %v6038 = vunpack.c.l.b16 %v5526
        %v6039 = vunpack.c.l.b16 %v5527
        %v6040 = vunpack.c.l.b16 %v5528
        %v6041 = vunpack.c.l.b16 %v5529
        %v6042 = vunpack.c.l.b16 %v5530
        %v6043 = vunpack.c.l.b16 %v5531
        %v6044 = vunpack.c.l.b16 %v5532
        %v6045 = vunpack.c.l.b16 %v5533
        %v6046 = vunpack.c.l.b16 %v5534
        %v6047 = vunpack.c.l.b16 %v5535
        %v6048 = vunpack.c.l.b16 %v5536
        %v6049 = vunpack.c.l.b16 %v5537
        %v6050 = vunpack.c.l.b16 %v5538
        %v6051 = vunpack.c.l.b16 %v5539
        %v6052 = vunpack.c.l.b16 %v5540
        %v6053 = vunpack.c.l.b16 %v5541
        %v6054 = vunpack.c.l.b16 %v5542
        %v6055 = vunpack.c.l.b16 %v5543
        %v6056 = vunpack.c.l.b16 %v5544
        %v6057 = vunpack.c.l.b16 %v5545
        %v6058 = vunpack.c.l.b16 %v5546
        %v6059 = vunpack.c.l.b16 %v5547
        %v6060 = vunpack.c.l.b16 %v5548
        %v6061 = vunpack.c.l.b16 %v5549
        %v6062 = vunpack.c.l.b16 %v5550
        %v6063 = vunpack.c.l.b16 %v5551
        %v6064 = vunpack.c.l.b16 %v5552
        %v6065 = vunpack.c.l.b16 %v5553
        %v6066 = vunpack.c.l.b16 %v5554
        %v6067 = vunpack.c.l.b16 %v5555
        %v6068 = vunpack.c.l.b16 %v5556
        %v6069 = vunpack.c.l.b16 %v5557
        %v6070 = vunpack.c.l.b16 %v5558
        %v6071 = vunpack.c.l.b16 %v5559
        %v6072 = vunpack.c.l.b16 %v5560
        %v6073 = vunpack.c.l.b16 %v5561
        %v6074 = vunpack.c.l.b16 %v5562
        %v6075 = vunpack.c.l.b16 %v5563
        %v6076 = vunpack.c.l.b16 %v5564
        %v6077 = vunpack.c.l.b16 %v5565
        %v6078 = vunpack.c.l.b16 %v5566
        %v6079 = vunpack.c.l.b16 %v5567
        %v6080 = vunpack.c.l.b16 %v5568
        %v6081 = vunpack.c.l.b16 %v5569
        %v6082 = vunpack.c.l.b16 %v5570
        %v6083 = vunpack.c.l.b16 %v5571
        %v6084 = vunpack.c.l.b16 %v5572
        %v6085 = vunpack.c.l.b16 %v5573
        %v6086 = vunpack.c.l.b16 %v5574
        %v6087 = vunpack.c.l.b16 %v5575
        %v6088 = vunpack.c.l.b16 %v5576
        %v6089 = vunpack.c.l.b16 %v5577
        %v6090 = vunpack.c.l.b16 %v5578
        %v6091 = vunpack.c.l.b16 %v5579
        %v6092 = vunpack.c.l.b16 %v5580
        %v6093 = vunpack.c.l.b16 %v5581
        %v6094 = vunpack.c.l.b16 %v5582
        %v6095 = vunpack.c.l.b16 %v5583
        %v6096 = vunpack.c.l.b16 %v5584
        %v6097 = vunpack.c.l.b16 %v5585
        %v6098 = vunpack.c.l.b16 %v5586
        %v6099 = vunpack.c.l.b16 %v5587
        %v6100 = vunpack.c.l.b16 %v5588
        %v6101 = vunpack.c.l.b16 %v5589
        %v6102 = vunpack.c.l.b16 %v5590
        %v6103 = vunpack.c.l.b16 %v5591
        %v6104 = vunpack.c.l.b16 %v5592
        %v6105 = vunpack.c.l.b16 %v5593
        %v6106 = vunpack.c.l.b16 %v5594
        %v6107 = vunpack.c.l.b16 %v5595
        %v6108 = vunpack.c.l.b16 %v5596
        %v6109 = vunpack.c.l.b16 %v5597
        %v6110 = vunpack.c.l.b16 %v5598
        %v6111 = vunpack.c.l.b16 %v5599
        %v6112 = vunpack.c.l.b16 %v5600
        %v6113 = vunpack.c.l.b16 %v5601
        %v6114 = vunpack.c.l.b16 %v5602
        %v6115 = vunpack.c.l.b16 %v5603
        %v6116 = vunpack.c.l.b16 %v5604
        %v6117 = vunpack.c.l.b16 %v5605
        %v6118 = vunpack.c.l.b16 %v5606
        %v6119 = vunpack.c.l.b16 %v5607
        %v6120 = vunpack.c.l.b16 %v5608
        %v6121 = vunpack.c.l.b16 %v5609
        %v6122 = vunpack.c.l.b16 %v5610
        %v6123 = vunpack.c.l.b16 %v5611
        %v6124 = vunpack.c.l.b16 %v5612
        %v6125 = vunpack.c.l.b16 %v5613
        %v6126 = vunpack.c.l.b16 %v5614
        %v6127 = vunpack.c.l.b16 %v5615
        %v6128 = vunpack.c.l.b16 %v5616
        %v6129 = vunpack.c.l.b16 %v5617
        %v6130 = vunpack.c.l.b16 %v5618
        %v6131 = vunpack.c.l.b16 %v5619
        %v6132 = vunpack.c.l.b16 %v5620
        %v6133 = vunpack.c.l.b16 %v5621
        %v6134 = vunpack.c.l.b16 %v5622
        %v6135 = vunpack.c.l.b16 %v5623
        %v6136 = vunpack.c.l.b16 %v5624
        %v6137 = vunpack.c.l.b16 %v5625
        %v6138 = vunpack.c.l.b16 %v5626
        %v6139 = vunpack.c.l.b16 %v5627
        %v6140 = vunpack.c.l.b16 %v5628
        %v6141 = vunpack.c.l.b16 %v5629
        %v6142 = vunpack.c.l.b16 %v5630
        %v6143 = vunpack.c.l.b16 %v5631
        %v6144 = vunpack.c.l.b16 %v5632
        %v6145 = vunpack.c.l.b16 %v5633
        %v6146 = vunpack.c.l.b16 %v5634
        %v6147 = vunpack.c.l.b16 %v5635
        %v6148 = vunpack.c.l.b16 %v5636
        %v6149 = vunpack.c.l.b16 %v5637
        %v6150 = vunpack.c.l.b16 %v5638
        %v6151 = vunpack.c.l.b16 %v5639
        %v6152 = vunpack.c.l.b16 %v5640
        %v6153 = vunpack.c.l.b16 %v5641
        %v6154 = vunpack.c.l.b16 %v5642
        %v6155 = vunpack.c.l.b16 %v5643
        %v6156 = vunpack.c.l.b16 %v5644
        %v6157 = vunpack.c.l.b16 %v5645
        %v6158 = vunpack.c.l.b16 %v5646
        %v6159 = vunpack.c.l.b16 %v5647
        %v6160 = vunpack.c.l.b16 %v5648
        %v6161 = vunpack.c.l.b16 %v5649
        %v6162 = vunpack.c.l.b16 %v5650
        %v6163 = vunpack.c.l.b16 %v5651
        %v6164 = vunpack.c.l.b16 %v5652
        %v6165 = vunpack.c.l.b16 %v5653
        %v6166 = vunpack.c.l.b16 %v5654
        %v6167 = vunpack.c.l.b16 %v5655
        %v6168 = vunpack.c.l.b16 %v5656
        %v6169 = vunpack.c.l.b16 %v5657
        %v6170 = vunpack.c.l.b16 %v5658
        %v6171 = vunpack.c.l.b16 %v5659
        %v6172 = vunpack.c.l.b16 %v5660
        %v6173 = vunpack.c.l.b16 %v5661
        %v6174 = vunpack.c.l.b16 %v5662
        %v6175 = vunpack.c.l.b16 %v5663
        %v6176 = vunpack.c.l.b16 %v5664
        %v6177 = vunpack.c.l.b16 %v5665
        %v6178 = vunpack.c.l.b16 %v5666
        %v6179 = vunpack.c.l.b16 %v5667
        %v6180 = vunpack.c.l.b16 %v5668
        %v6181 = vunpack.c.l.b16 %v5669
        %v6182 = vunpack.c.l.b16 %v5670
        %v6183 = vunpack.c.l.b16 %v5671
        %v6184 = vunpack.c.l.b16 %v5672
        %v6185 = vunpack.c.l.b16 %v5673
        %v6186 = vunpack.c.l.b16 %v5674
        %v6187 = vunpack.c.l.b16 %v5675
        %v6188 = vunpack.c.l.b16 %v5676
        %v6189 = vunpack.c.l.b16 %v5677
        %v6190 = vunpack.c.l.b16 %v5678
        %v6191 = vunpack.c.l.b16 %v5679
        %v6192 = vunpack.c.l.b16 %v5680
        %v6193 = vunpack.c.l.b16 %v5681
        %v6194 = vunpack.c.l.b16 %v5682
        %v6195 = vunpack.c.l.b16 %v5683
        %v6196 = vunpack.c.l.b16 %v5684
        %v6197 = vunpack.c.l.b16 %v5685
        %v6198 = vunpack.c.l.b16 %v5686
        %v6199 = vunpack.c.l.b16 %v5687
        %v6200 = vunpack.c.l.b16 %v5688
        %v6201 = vunpack.c.l.b16 %v5689
        %v6202 = vunpack.c.l.b16 %v5690
        %v6203 = vunpack.c.l.b16 %v5691
        %v6204 = vunpack.c.l.b16 %v5692
        %v6205 = vunpack.c.l.b16 %v5693
        %v6206 = vunpack.c.l.b16 %v5694
        %v6207 = vunpack.c.l.b16 %v5695
        %v6208 = vunpack.c.l.b16 %v5696
        %v6209 = vunpack.c.l.b16 %v5697
        %v6210 = vunpack.c.l.b16 %v5698
        %v6211 = vunpack.c.l.b16 %v5699
        %v6212 = vunpack.c.l.b16 %v5700
        %v6213 = vunpack.c.l.b16 %v5701
        %v6214 = vunpack.c.l.b16 %v5702
        %v6215 = vunpack.c.l.b16 %v5703
        %v6216 = vunpack.c.l.b16 %v5704
        %v6217 = vunpack.c.l.b16 %v5705
        %v6218 = vunpack.c.l.b16 %v5706
        %v6219 = vunpack.c.l.b16 %v5707
        %v6220 = vunpack.c.l.b16 %v5708
        %v6221 = vunpack.c.l.b16 %v5709
        %v6222 = vunpack.c.l.b16 %v5710
        %v6223 = vunpack.c.l.b16 %v5711
        %v6224 = vunpack.c.l.b16 %v5712
        %v6225 = vunpack.c.l.b16 %v5713
        %v6226 = vunpack.c.l.b16 %v5714
        %v6227 = vunpack.c.l.b16 %v5715
        %v6228 = vunpack.c.l.b16 %v5716
        %v6229 = vunpack.c.l.b16 %v5717
        %v6230 = vunpack.c.l.b16 %v5718
        %v6231 = vunpack.c.l.b16 %v5719
        %v6232 = vunpack.c.l.b16 %v5720
        %v6233 = vunpack.c.l.b16 %v5721
        %v6234 = vunpack.c.l.b16 %v5722
        %v6235 = vunpack.c.l.b16 %v5723
        %v6236 = vunpack.c.l.b16 %v5724
        %v6237 = vunpack.c.l.b16 %v5725
        %v6238 = vunpack.c.l.b16 %v5726
        %v6239 = vunpack.c.l.b16 %v5727
        %v6240 = vunpack.c.l.b16 %v5728
        %v6241 = vunpack.c.l.b16 %v5729
        %v6242 = vunpack.c.l.b16 %v5730
        %v6243 = vunpack.c.l.b16 %v5731
        %v6244 = vunpack.c.l.b16 %v5732
        %v6245 = vunpack.c.l.b16 %v5733
        %v6246 = vunpack.c.l.b16 %v5734
        %v6247 = vunpack.c.l.b16 %v5735
        %v6248 = vunpack.c.l.b16 %v5736
        %v6249 = vunpack.c.l.b16 %v5737
        %v6250 = vunpack.c.l.b16 %v5738
        %v6251 = vunpack.c.l.b16 %v5739
        %v6252 = vunpack.c.l.b16 %v5740
        %v6253 = vunpack.c.l.b16 %v5741
        %v6254 = vunpack.c.l.b16 %v5742
        %v6255 = vunpack.c.l.b16 %v5743
        %v6256 = vunpack.c.l.b16 %v5744
        %v6257 = vunpack.c.l.b16 %v5745
        %v6258 = vunpack.c.l.b16 %v5746
        %v6259 = vunpack.c.l.b16 %v5747
        %v6260 = vunpack.c.l.b16 %v5748
        %v6261 = vunpack.c.l.b16 %v5749
        %v6262 = vunpack.c.l.b16 %v5750
        %v6263 = vunpack.c.l.b16 %v5751
        %v6264 = vunpack.c.l.b16 %v5752
        %v6265 = vunpack.c.l.b16 %v5753
        %v6266 = vunpack.c.l.b16 %v5754
        %v6267 = vunpack.c.l.b16 %v5755
        %v6268 = vunpack.c.l.b16 %v5756
        %v6269 = vunpack.c.l.b16 %v5757
        %v6270 = vunpack.c.l.b16 %v5758
        %v6271 = vunpack.c.l.b16 %v5759
        %v6272 = vunpack.c.l.b16 %v5760
        %v6273 = vunpack.c.l.b16 %v5761
        %v6274 = vunpack.c.l.b16 %v5762
        %v6275 = vunpack.c.l.b16 %v5763
        %v6276 = vunpack.c.l.b16 %v5764
        %v6277 = vunpack.c.l.b16 %v5765
        %v6278 = vunpack.c.l.b16 %v5766
        %v6279 = vpack.c.b16 %v6024, %v6023
        %v6280 = vpack.c.b16 %v6026, %v6025
        %v6281 = vpack.c.b16 %v6028, %v6027
        %v6282 = vpack.c.b16 %v6030, %v6029
        %v6283 = vpack.c.b16 %v6032, %v6031
        %v6284 = vpack.c.b16 %v6034, %v6033
        %v6285 = vpack.c.b16 %v6036, %v6035
        %v6286 = vpack.c.b16 %v6038, %v6037
        %v6287 = vpack.c.b16 %v6040, %v6039
        %v6288 = vpack.c.b16 %v6042, %v6041
        %v6289 = vpack.c.b16 %v6044, %v6043
        %v6290 = vpack.c.b16 %v6046, %v6045
        %v6291 = vpack.c.b16 %v6048, %v6047
        %v6292 = vpack.c.b16 %v6050, %v6049
        %v6293 = vpack.c.b16 %v6052, %v6051
        %v6294 = vpack.c.b16 %v6054, %v6053
        %v6295 = vpack.c.b16 %v6056, %v6055
        %v6296 = vpack.c.b16 %v6058, %v6057
        %v6297 = vpack.c.b16 %v6060, %v6059
        %v6298 = vpack.c.b16 %v6062, %v6061
        %v6299 = vpack.c.b16 %v6064, %v6063
        %v6300 = vpack.c.b16 %v6066, %v6065
        %v6301 = vpack.c.b16 %v6068, %v6067
        %v6302 = vpack.c.b16 %v6070, %v6069
        %v6303 = vpack.c.b16 %v6072, %v6071
        %v6304 = vpack.c.b16 %v6074, %v6073
        %v6305 = vpack.c.b16 %v6076, %v6075
        %v6306 = vpack.c.b16 %v6078, %v6077
        %v6307 = vpack.c.b16 %v6080, %v6079
        %v6308 = vpack.c.b16 %v6082, %v6081
        %v6309 = vpack.c.b16 %v6084, %v6083
        %v6310 = vpack.c.b16 %v6086, %v6085
        %v6311 = vpack.c.b16 %v6088, %v6087
        %v6312 = vpack.c.b16 %v6090, %v6089
        %v6313 = vpack.c.b16 %v6092, %v6091
        %v6314 = vpack.c.b16 %v6094, %v6093
        %v6315 = vpack.c.b16 %v6096, %v6095
        %v6316 = vpack.c.b16 %v6098, %v6097
        %v6317 = vpack.c.b16 %v6100, %v6099
        %v6318 = vpack.c.b16 %v6102, %v6101
        %v6319 = vpack.c.b16 %v6104, %v6103
        %v6320 = vpack.c.b16 %v6106, %v6105
        %v6321 = vpack.c.b16 %v6108, %v6107
        %v6322 = vpack.c.b16 %v6110, %v6109
        %v6323 = vpack.c.b16 %v6112, %v6111
        %v6324 = vpack.c.b16 %v6114, %v6113
        %v6325 = vpack.c.b16 %v6116, %v6115
        %v6326 = vpack.c.b16 %v6118, %v6117
        %v6327 = vpack.c.b16 %v6120, %v6119
        %v6328 = vpack.c.b16 %v6122, %v6121
        %v6329 = vpack.c.b16 %v6124, %v6123
        %v6330 = vpack.c.b16 %v6126, %v6125
        %v6331 = vpack.c.b16 %v6128, %v6127
        %v6332 = vpack.c.b16 %v6130, %v6129
        %v6333 = vpack.c.b16 %v6132, %v6131
        %v6334 = vpack.c.b16 %v6134, %v6133
        %v6335 = vpack.c.b16 %v6136, %v6135
        %v6336 = vpack.c.b16 %v6138, %v6137
        %v6337 = vpack.c.b16 %v6140, %v6139
        %v6338 = vpack.c.b16 %v6142, %v6141
        %v6339 = vpack.c.b16 %v6144, %v6143
        %v6340 = vpack.c.b16 %v6146, %v6145
        %v6341 = vpack.c.b16 %v6148, %v6147
        %v6342 = vpack.c.b16 %v6150, %v6149
        %v6343 = vpack.c.b16 %v6152, %v6151
        %v6344 = vpack.c.b16 %v6154, %v6153
        %v6345 = vpack.c.b16 %v6156, %v6155
        %v6346 = vpack.c.b16 %v6158, %v6157
        %v6347 = vpack.c.b16 %v6160, %v6159
        %v6348 = vpack.c.b16 %v6162, %v6161
        %v6349 = vpack.c.b16 %v6164, %v6163
        %v6350 = vpack.c.b16 %v6166, %v6165
        %v6351 = vpack.c.b16 %v6168, %v6167
        %v6352 = vpack.c.b16 %v6170, %v6169
        %v6353 = vpack.c.b16 %v6172, %v6171
        %v6354 = vpack.c.b16 %v6174, %v6173
        %v6355 = vpack.c.b16 %v6176, %v6175
        %v6356 = vpack.c.b16 %v6178, %v6177
        %v6357 = vpack.c.b16 %v6180, %v6179
        %v6358 = vpack.c.b16 %v6182, %v6181
        %v6359 = vpack.c.b16 %v6184, %v6183
        %v6360 = vpack.c.b16 %v6186, %v6185
        %v6361 = vpack.c.b16 %v6188, %v6187
        %v6362 = vpack.c.b16 %v6190, %v6189
        %v6363 = vpack.c.b16 %v6192, %v6191
        %v6364 = vpack.c.b16 %v6194, %v6193
        %v6365 = vpack.c.b16 %v6196, %v6195
        %v6366 = vpack.c.b16 %v6198, %v6197
        %v6367 = vpack.c.b16 %v6200, %v6199
        %v6368 = vpack.c.b16 %v6202, %v6201
        %v6369 = vpack.c.b16 %v6204, %v6203
        %v6370 = vpack.c.b16 %v6206, %v6205
        %v6371 = vpack.c.b16 %v6208, %v6207
        %v6372 = vpack.c.b16 %v6210, %v6209
        %v6373 = vpack.c.b16 %v6212, %v6211
        %v6374 = vpack.c.b16 %v6214, %v6213
        %v6375 = vpack.c.b16 %v6216, %v6215
        %v6376 = vpack.c.b16 %v6218, %v6217
        %v6377 = vpack.c.b16 %v6220, %v6219
        %v6378 = vpack.c.b16 %v6222, %v6221
        %v6379 = vpack.c.b16 %v6224, %v6223
        %v6380 = vpack.c.b16 %v6226, %v6225
        %v6381 = vpack.c.b16 %v6228, %v6227
        %v6382 = vpack.c.b16 %v6230, %v6229
        %v6383 = vpack.c.b16 %v6232, %v6231
        %v6384 = vpack.c.b16 %v6234, %v6233
        %v6385 = vpack.c.b16 %v6236, %v6235
        %v6386 = vpack.c.b16 %v6238, %v6237
        %v6387 = vpack.c.b16 %v6240, %v6239
        %v6388 = vpack.c.b16 %v6242, %v6241
        %v6389 = vpack.c.b16 %v6244, %v6243
        %v6390 = vpack.c.b16 %v6246, %v6245
        %v6391 = vpack.c.b16 %v6248, %v6247
        %v6392 = vpack.c.b16 %v6250, %v6249
        %v6393 = vpack.c.b16 %v6252, %v6251
        %v6394 = vpack.c.b16 %v6254, %v6253
        %v6395 = vpack.c.b16 %v6256, %v6255
        %v6396 = vpack.c.b16 %v6258, %v6257
        %v6397 = vpack.c.b16 %v6260, %v6259
        %v6398 = vpack.c.b16 %v6262, %v6261
        %v6399 = vpack.c.b16 %v6264, %v6263
        %v6400 = vpack.c.b16 %v6266, %v6265
        %v6401 = vpack.c.b16 %v6268, %v6267
        %v6402 = vpack.c.b16 %v6270, %v6269
        %v6403 = vpack.c.b16 %v6272, %v6271
        %v6404 = vpack.c.b16 %v6274, %v6273
        %v6405 = vpack.c.b16 %v6276, %v6275
        %v6406 = vpack.c.b16 %v6278, %v6277
        %6535 = vmatpush.bf16.msra.mxu0 %v6286
        %6536 = vmatpush.bf16.msra.mxu0 %v6285
        %6537 = vmatpush.bf16.msra.mxu0 %v6284
        %6538 = vmatpush.bf16.msra.mxu0 %v6283
        %6539 = vmatpush.bf16.msra.mxu0 %v6282
        %6540 = vmatpush.bf16.msra.mxu0 %v6281
        %6541 = vmatpush.bf16.msra.mxu0 %v6280
        %6542 = vmatpush.bf16.msra.mxu0 %v6279
        %6543 = vmatmul.bf16.gmra.mxu0 %v5495
        %v6544 = vpop.f32.mrf.mxu0
        %v6545 = vadd.f32 0.0, %v6544
        %v6546 = vpop.f32.mrf.mxu0
        %6547 = vdwg.mxu0
        %6548 = vmatpush.bf16.msra.mxu0 %v6294
        %6549 = vmatpush.bf16.msra.mxu0 %v6293
        %6550 = vmatpush.bf16.msra.mxu0 %v6292
        %6551 = vmatpush.bf16.msra.mxu0 %v6291
        %6552 = vmatpush.bf16.msra.mxu0 %v6290
        %6553 = vmatpush.bf16.msra.mxu0 %v6289
        %6554 = vmatpush.bf16.msra.mxu0 %v6288
        %6555 = vmatpush.bf16.msra.mxu0 %v6287
        %6556 = vmatmul.bf16.gmra.mxu0 %v5496
        %v6557 = vpop.f32.mrf.mxu0
        %v6558 = vadd.f32 %v6545, %v6557
        %v6559 = vpop.f32.mrf.mxu0
        %6560 = vdwg.mxu0
        %6561 = vmatpush.bf16.msra.mxu0 %v6302
        %6562 = vmatpush.bf16.msra.mxu0 %v6301
        %6563 = vmatpush.bf16.msra.mxu0 %v6300
        %6564 = vmatpush.bf16.msra.mxu0 %v6299
        %6565 = vmatpush.bf16.msra.mxu0 %v6298
        %6566 = vmatpush.bf16.msra.mxu0 %v6297
        %6567 = vmatpush.bf16.msra.mxu0 %v6296
        %6568 = vmatpush.bf16.msra.mxu0 %v6295
        %6569 = vmatmul.bf16.gmra.mxu0 %v5497
        %v6570 = vpop.f32.mrf.mxu0
        %v6571 = vadd.f32 %v6558, %v6570
        %v6572 = vpop.f32.mrf.mxu0
        %6573 = vdwg.mxu0
        %6574 = vmatpush.bf16.msra.mxu0 %v6310
        %6575 = vmatpush.bf16.msra.mxu0 %v6309
        %6576 = vmatpush.bf16.msra.mxu0 %v6308
        %6577 = vmatpush.bf16.msra.mxu0 %v6307
        %6578 = vmatpush.bf16.msra.mxu0 %v6306
        %6579 = vmatpush.bf16.msra.mxu0 %v6305
        %6580 = vmatpush.bf16.msra.mxu0 %v6304
        %6581 = vmatpush.bf16.msra.mxu0 %v6303
        %6582 = vmatmul.bf16.gmra.mxu0 %v5498
        %v6583 = vpop.f32.mrf.mxu0
        %v6584 = vadd.f32 %v6571, %v6583
        %v6585 = vpop.f32.mrf.mxu0
        %6586 = vdwg.mxu0
        %6587 = vmatpush.bf16.msra.mxu0 %v6318
        %6588 = vmatpush.bf16.msra.mxu0 %v6317
        %6589 = vmatpush.bf16.msra.mxu0 %v6316
        %6590 = vmatpush.bf16.msra.mxu0 %v6315
        %6591 = vmatpush.bf16.msra.mxu0 %v6314
        %6592 = vmatpush.bf16.msra.mxu0 %v6313
        %6593 = vmatpush.bf16.msra.mxu0 %v6312
        %6594 = vmatpush.bf16.msra.mxu0 %v6311
        %6595 = vmatmul.bf16.gmra.mxu0 %v5499
        %v6596 = vpop.f32.mrf.mxu0
        %v6597 = vadd.f32 %v6584, %v6596
        %v6598 = vpop.f32.mrf.mxu0
        %6599 = vdwg.mxu0
        %6600 = vmatpush.bf16.msra.mxu0 %v6326
        %6601 = vmatpush.bf16.msra.mxu0 %v6325
        %6602 = vmatpush.bf16.msra.mxu0 %v6324
        %6603 = vmatpush.bf16.msra.mxu0 %v6323
        %6604 = vmatpush.bf16.msra.mxu0 %v6322
        %6605 = vmatpush.bf16.msra.mxu0 %v6321
        %6606 = vmatpush.bf16.msra.mxu0 %v6320
        %6607 = vmatpush.bf16.msra.mxu0 %v6319
        %6608 = vmatmul.bf16.gmra.mxu0 %v5500
        %v6609 = vpop.f32.mrf.mxu0
        %v6610 = vadd.f32 %v6597, %v6609
        %v6611 = vpop.f32.mrf.mxu0
        %6612 = vdwg.mxu0
        %6613 = vmatpush.bf16.msra.mxu0 %v6334
        %6614 = vmatpush.bf16.msra.mxu0 %v6333
        %6615 = vmatpush.bf16.msra.mxu0 %v6332
        %6616 = vmatpush.bf16.msra.mxu0 %v6331
        %6617 = vmatpush.bf16.msra.mxu0 %v6330
        %6618 = vmatpush.bf16.msra.mxu0 %v6329
        %6619 = vmatpush.bf16.msra.mxu0 %v6328
        %6620 = vmatpush.bf16.msra.mxu0 %v6327
        %6621 = vmatmul.bf16.gmra.mxu0 %v5501
        %v6622 = vpop.f32.mrf.mxu0
        %v6623 = vadd.f32 %v6610, %v6622
        %v6624 = vpop.f32.mrf.mxu0
        %6625 = vdwg.mxu0
        %6626 = vmatpush.bf16.msra.mxu0 %v6342
        %6627 = vmatpush.bf16.msra.mxu0 %v6341
        %6628 = vmatpush.bf16.msra.mxu0 %v6340
        %6629 = vmatpush.bf16.msra.mxu0 %v6339
        %6630 = vmatpush.bf16.msra.mxu0 %v6338
        %6631 = vmatpush.bf16.msra.mxu0 %v6337
        %6632 = vmatpush.bf16.msra.mxu0 %v6336
        %6633 = vmatpush.bf16.msra.mxu0 %v6335
        %6634 = vmatmul.bf16.gmra.mxu0 %v5502
        %v6635 = vpop.f32.mrf.mxu0
        %v6636 = vadd.f32 %v6623, %v6635
        %v6637 = vpop.f32.mrf.mxu0
        %6638 = vdwg.mxu0
        %6639 = vmatpush.bf16.msra.mxu0 %v6350
        %6640 = vmatpush.bf16.msra.mxu0 %v6349
        %6641 = vmatpush.bf16.msra.mxu0 %v6348
        %6642 = vmatpush.bf16.msra.mxu0 %v6347
        %6643 = vmatpush.bf16.msra.mxu0 %v6346
        %6644 = vmatpush.bf16.msra.mxu0 %v6345
        %6645 = vmatpush.bf16.msra.mxu0 %v6344
        %6646 = vmatpush.bf16.msra.mxu0 %v6343
        %6647 = vmatmul.bf16.gmra.mxu0 %v5503
        %v6648 = vpop.f32.mrf.mxu0
        %v6649 = vadd.f32 %v6636, %v6648
        %v6650 = vpop.f32.mrf.mxu0
        %6651 = vdwg.mxu0
        %6652 = vmatpush.bf16.msra.mxu0 %v6358
        %6653 = vmatpush.bf16.msra.mxu0 %v6357
        %6654 = vmatpush.bf16.msra.mxu0 %v6356
        %6655 = vmatpush.bf16.msra.mxu0 %v6355
        %6656 = vmatpush.bf16.msra.mxu0 %v6354
        %6657 = vmatpush.bf16.msra.mxu0 %v6353
        %6658 = vmatpush.bf16.msra.mxu0 %v6352
        %6659 = vmatpush.bf16.msra.mxu0 %v6351
        %6660 = vmatmul.bf16.gmra.mxu0 %v5504
        %v6661 = vpop.f32.mrf.mxu0
        %v6662 = vadd.f32 %v6649, %v6661
        %v6663 = vpop.f32.mrf.mxu0
        %6664 = vdwg.mxu0
        %6665 = vmatpush.bf16.msra.mxu0 %v6366
        %6666 = vmatpush.bf16.msra.mxu0 %v6365
        %6667 = vmatpush.bf16.msra.mxu0 %v6364
        %6668 = vmatpush.bf16.msra.mxu0 %v6363
        %6669 = vmatpush.bf16.msra.mxu0 %v6362
        %6670 = vmatpush.bf16.msra.mxu0 %v6361
        %6671 = vmatpush.bf16.msra.mxu0 %v6360
        %6672 = vmatpush.bf16.msra.mxu0 %v6359
        %6673 = vmatmul.bf16.gmra.mxu0 %v5505
        %v6674 = vpop.f32.mrf.mxu0
        %v6675 = vadd.f32 %v6662, %v6674
        %v6676 = vpop.f32.mrf.mxu0
        %6677 = vdwg.mxu0
        %6678 = vmatpush.bf16.msra.mxu0 %v6374
        %6679 = vmatpush.bf16.msra.mxu0 %v6373
        %6680 = vmatpush.bf16.msra.mxu0 %v6372
        %6681 = vmatpush.bf16.msra.mxu0 %v6371
        %6682 = vmatpush.bf16.msra.mxu0 %v6370
        %6683 = vmatpush.bf16.msra.mxu0 %v6369
        %6684 = vmatpush.bf16.msra.mxu0 %v6368
        %6685 = vmatpush.bf16.msra.mxu0 %v6367
        %6686 = vmatmul.bf16.gmra.mxu0 %v5506
        %v6687 = vpop.f32.mrf.mxu0
        %v6688 = vadd.f32 %v6675, %v6687
        %v6689 = vpop.f32.mrf.mxu0
        %6690 = vdwg.mxu0
        %6691 = vmatpush.bf16.msra.mxu0 %v6382
        %6692 = vmatpush.bf16.msra.mxu0 %v6381
        %6693 = vmatpush.bf16.msra.mxu0 %v6380
        %6694 = vmatpush.bf16.msra.mxu0 %v6379
        %6695 = vmatpush.bf16.msra.mxu0 %v6378
        %6696 = vmatpush.bf16.msra.mxu0 %v6377
        %6697 = vmatpush.bf16.msra.mxu0 %v6376
        %6698 = vmatpush.bf16.msra.mxu0 %v6375
        %6699 = vmatmul.bf16.gmra.mxu0 %v5507
        %v6700 = vpop.f32.mrf.mxu0
        %v6701 = vadd.f32 %v6688, %v6700
        %v6702 = vpop.f32.mrf.mxu0
        %6703 = vdwg.mxu0
        %6704 = vmatpush.bf16.msra.mxu0 %v6390
        %6705 = vmatpush.bf16.msra.mxu0 %v6389
        %6706 = vmatpush.bf16.msra.mxu0 %v6388
        %6707 = vmatpush.bf16.msra.mxu0 %v6387
        %6708 = vmatpush.bf16.msra.mxu0 %v6386
        %6709 = vmatpush.bf16.msra.mxu0 %v6385
        %6710 = vmatpush.bf16.msra.mxu0 %v6384
        %6711 = vmatpush.bf16.msra.mxu0 %v6383
        %6712 = vmatmul.bf16.gmra.mxu0 %v5508
        %v6713 = vpop.f32.mrf.mxu0
        %v6714 = vadd.f32 %v6701, %v6713
        %v6715 = vpop.f32.mrf.mxu0
        %6716 = vdwg.mxu0
        %6717 = vmatpush.bf16.msra.mxu0 %v6398
        %6718 = vmatpush.bf16.msra.mxu0 %v6397
        %6719 = vmatpush.bf16.msra.mxu0 %v6396
        %6720 = vmatpush.bf16.msra.mxu0 %v6395
        %6721 = vmatpush.bf16.msra.mxu0 %v6394
        %6722 = vmatpush.bf16.msra.mxu0 %v6393
        %6723 = vmatpush.bf16.msra.mxu0 %v6392
        %6724 = vmatpush.bf16.msra.mxu0 %v6391
        %6725 = vmatmul.bf16.gmra.mxu0 %v5509
        %v6726 = vpop.f32.mrf.mxu0
        %v6727 = vadd.f32 %v6714, %v6726
        %v6728 = vpop.f32.mrf.mxu0
        %6729 = vdwg.mxu0
        %6730 = vmatpush.bf16.msra.mxu0 %v6406
        %6731 = vmatpush.bf16.msra.mxu0 %v6405
        %6732 = vmatpush.bf16.msra.mxu0 %v6404
        %6733 = vmatpush.bf16.msra.mxu0 %v6403
        %6734 = vmatpush.bf16.msra.mxu0 %v6402
        %6735 = vmatpush.bf16.msra.mxu0 %v6401
        %6736 = vmatpush.bf16.msra.mxu0 %v6400
        %6737 = vmatpush.bf16.msra.mxu0 %v6399
        %6738 = vmatmul.bf16.gmra.mxu0 %v5510
        %v6739 = vpop.f32.mrf.mxu0
        %v6740 = vadd.f32 %v6727, %v6739
        %v6741 = vpop.f32.mrf.mxu0
        %6742 = vdwg.mxu0
        %v6743 = vadd.f32 %v5494, %v6740
        %6744 = vst [vmem:[#allocation21] sm:$0xff] %v6743
        %p6745 = scmp.eq.s32.totalorder %s35, 1
        // Predicated region
        $region113: #{tpu_custom_call.1} parent=63 // pred_check
          %p6746 = pneg %p6745
        $region114: #{tpu_custom_call.1} parent=63 // pred_check_branch
          %6748 = sbr.rel (%p6746) target = $region116
        $region115: #{tpu_custom_call.1} parent=63 // pred_region
          %v6749 = vld [vmem:[#allocation21] sm:$0xff]
          %v6750 = vld [vmem:[#allocation20] sm:$0x1]
          %v6752 = vperm.slane %v6750, 0
          %v6754 = vadd.f32 %v6749, %v6752
          %v6755 = vsub.f32 0.0, %v6754
          %v6756 = vmul.f32 %v6755, 1.442695
          %v6757 = vpow.pop %v6756
          %v6758 = vadd.f32 %v6757, 1.0
          %v6759 = vrcp.pop %v6758
          %v6760 = vmul.f32 %v6758, %v6759
          %v6761 = vsub.f32 1.0, %v6760
          %v6762 = vmul.f32 %v6759, %v6761
          %v6763 = vadd.f32 %v6759, %v6762
          %vm6764 = vweird.f32 %v6758
          %vm6765 = vweird.f32 %v6759
          %vm6766 = vmor %vm6764, %vm6765
          %v6767 = vsel %vm6766, %v6759, %v6763
          %v6768 = vand.u32 2147483647, %v6758
          %vm6769 = vcmp.eq.f32.partialorder %v6768, 8.507059e+37
          %v6770 = vand.u32 %v6758, 2147483648
          %v6771 = vor.u32 1.1754944e-38, %v6770
          %v6772 = vsel %vm6769, %v6771, %v6767
          %v6773 = vmul.f32 1.0, %v6772
          %6774 = vst [vmem:[#allocation21] sm:$0xff] %v6773
        $region116: #{tpu_custom_call.1} parent=63 // pred_fallthru
          _
        // Predicated region
        $region117: #{tpu_custom_call.1} parent=63 // pred_check
          %p6775 = pneg %p304
        $region118: #{tpu_custom_call.1} parent=63 // pred_check_branch
          %6777 = sbr.rel (%p6775) target = $region120
        $region119: #{tpu_custom_call.1} parent=63 // pred_region
          %6779 = vsyncadd [#allocation5], 0
          %s6781 = sshll.u32 [#allocation21], 4
          %s6782 = int_to_ptr.vmem [resolvable:$true] %s6781
          %s6783 = sshll.u32 %s11, 4
          %s6784 = int_to_ptr.hbm [resolvable:$true] %s6783
          %6786 = dma.vmem_to_hbm [thread:$0]  %s6782, 128, %s6784, [#allocation5]
        $region120: #{tpu_custom_call.1} parent=63 // pred_fallthru
          _
        // Predicated region
        $region121: #{tpu_custom_call.1} parent=63 // pred_check
          %p6787 = pneg %p304
        $region122: #{tpu_custom_call.1} parent=63 // pred_check_branch
          %6789 = sbr.rel (%p6787) target = $region124
        $region123: #{tpu_custom_call.1} parent=63 // pred_region
          %6791 = dma.done [#allocation5], 128
        $region124: #{tpu_custom_call.1} parent=63 // pred_fallthru
          _
      $region64: #{tpu_custom_call.1} parent=5 // pred_fallthru
        _
      %p6792 = scmp.le.s32.totalorder 2, %s30
      // Predicated region
      $region125: #{tpu_custom_call.1} parent=5 // pred_check
        %p6793 = pneg %p6792
      $region126: #{tpu_custom_call.1} parent=5 // pred_check_branch
        %6795 = sbr.rel (%p6793) target = $region128
      $region127: #{tpu_custom_call.1} parent=5 // pred_region
        %s6796 = ssub.s32 %s30, 2
      $region128: #{tpu_custom_call.1} parent=5 // pred_fallthru
        _
    $region6: #{tpu_custom_call.1} parent=1 // loop_footer
      %s34 = sadd.s32 1, %s30
    $region7: #{tpu_custom_call.1} parent=1 // loop_footer_branch
      %29 = sbr.rel target = $region3
    $region8: #{tpu_custom_call.1} parent=1 // loop_exit
      _
    %6797 = vsyncpa [#allocation4], 1
    %s6798 = scalar_lea.sflag [#allocation4], 1
    %6799 = vsyncpa %s6798, 1
    %6800 = vsyncpa [#allocation7], 1
    %6801 = vsyncpa [#allocation10], 1
    %6802 = vsyncpa [#allocation13], 1
    %s6803 = scalar_lea.sflag [#allocation13], 1
    %6804 = vsyncpa %s6803, 1
    %6805 = vsyncpa [#allocation16], 1
    %s6806 = scalar_lea.sflag [#allocation16], 1
    %6807 = vsyncpa %s6806, 1
    %6808 = vsyncpa [#allocation19], 1
    %s6809 = scalar_lea.sflag [#allocation19], 1
    %6810 = vsyncpa %s6809, 1
    %6811 = vsyncpa [#allocation5], 1
    %s6812 = scalar_lea.sflag [#allocation5], 1
    %6813 = vsyncpa %s6812, 1

</llo_original>
